<compile_context>
chip_gen: v7x
topology: tpu7x:2x2x1
jax: 0.10.0
libtpu: 0.0.40
codegen_flags: <defaults>
</compile_context>

<pallas_src>
import functools

import jax
import jax.numpy as jnp
import numpy as np
from jax.experimental import pallas as pl
from jax.experimental.pallas import tpu as pltpu


_LRELU_SLOPE = 0.2
_BN_EPS = 1e-5
_COL0 = 8                       # column halo (8 => sublane-aligned interior)
_CONV_DTYPE = jnp.bfloat16      # MXU tap dtype; jnp.float32 for strict parity


def _conv3x3_rows(src, wcat_ref, n_out):
    """3x3 / stride-1 conv over a row band as 3 MXU matmuls (K = 3*Cp).

    src      : (n_out+2, Wp, Cp) float32 in padded-column layout (interior data
               at columns [_COL0, _COL0+W); >=1 zero column each side).
    wcat_ref : (3, 3*Cp, Cp) ref; the 3 dx taps stacked along the contraction.
    returns  : (n_out, Wp, Cp) float32.  Columns outside the interior window are
               garbage and are never consumed downstream.
    """
    rows, wp, cp = src.shape
    # dx=0 / dx=2 taps: value at padded column c-1 / c+1.  Wrap-around only
    # pollutes padded columns 0 and Wp-1, which are never read.
    # TODO(synk): replace with pltpu.roll to do the shift on the XLU.
    left = jnp.roll(src, 1, axis=1)
    right = jnp.roll(src, -1, axis=1)
    big = jnp.concatenate(
        [left.astype(_CONV_DTYPE), src.astype(_CONV_DTYPE),
         right.astype(_CONV_DTYPE)], axis=-1).reshape(rows * wp, 3 * cp)
    acc = jnp.zeros((n_out * wp, cp), jnp.float32)
    for dy in range(3):                       # short static loop, stays unrolled
        band = big[dy * wp:(dy + n_out) * wp, :]
        acc = acc + jnp.dot(band, wcat_ref[dy],
                            preferred_element_type=jnp.float32)
    return acc.reshape(n_out, wp, cp)


def _col_sums(x):
    """Per-channel (sum, sum_sq) of a (rows, W, Cp) interior block -> (2, Cp)."""
    rows, w, cp = x.shape
    q = x.reshape(rows * w, cp)
    return jnp.concatenate([jnp.sum(q, axis=0, keepdims=True),
                            jnp.sum(q * q, axis=0, keepdims=True)], axis=0)


def _conv1_kernel(xpad_hbm, w1_ref, y1_ref, st1_ref, xband_ref, sem):
    """Pass 1: Conv1 over one (batch, row-tile) band + BN1 partial statistics."""
    n = pl.program_id(0)
    t = pl.program_id(1)
    th = y1_ref.shape[0] - 2                  # interior rows per tile
    wp = y1_ref.shape[1]
    w = wp - 2 * _COL0

    # Overlapping (TH+4)-row input windows cannot be expressed with Blocked
    # BlockSpecs, so the padded input stays in HBM (pl.ANY) and the band is
    # DMA'd manually.  TODO(synk): double-buffer this copy.
    copy = pltpu.make_async_copy(
        xpad_hbm.at[n, pl.ds(t * th, th + 4)], xband_ref, sem)
    copy.start()
    copy.wait()

    # Conv1 for TH+2 output rows: the extra top/bottom row is the halo conv2
    # needs (recomputed here so pass 2 reads clean, non-overlapping tiles).
    y = _conv3x3_rows(xband_ref[...], w1_ref, th + 2)
    y1_ref[...] = y
    # BN1 statistics over this tile's *interior* rows/columns only.
    st1_ref[...] = _col_sums(y[1:th + 1, _COL0:_COL0 + w, :])


def _conv2_kernel(y1_ref, w2_ref, sc1_ref, sh1_ref, y2_ref, st2_ref, h_ref):
    """Pass 2: BN1 scale/shift + LeakyReLU, Conv2, BN2 partial statistics."""
    t = pl.program_id(1)
    n_tiles = pl.num_programs(1)
    th = y2_ref.shape[0]
    wp = y1_ref.shape[1]
    cp = y1_ref.shape[2]
    w = wp - 2 * _COL0

    hh = y1_ref[...] * sc1_ref[...] + sh1_ref[...]
    h_ref[...] = jnp.maximum(hh, _LRELU_SLOPE * hh)

    # Conv2's zero padding: only the halo needs zeroing (interior was just
    # fully overwritten above -- no full-scratch zeroing pass).
    h_ref[:, 0:_COL0, :] = jnp.zeros((th + 2, _COL0, cp), jnp.float32)
    h_ref[:, _COL0 + w:wp, :] = jnp.zeros((th + 2, wp - _COL0 - w, cp),
                                          jnp.float32)

    @pl.when(t == 0)
    def _():                                  # image row -1 -> zero padding
        h_ref[0:1, :, :] = jnp.zeros((1, wp, cp), jnp.float32)

    @pl.when(t == n_tiles - 1)
    def _():                                  # image row H -> zero padding
        h_ref[th + 1:th + 2, :, :] = jnp.zeros((1, wp, cp), jnp.float32)

    acc = _conv3x3_rows(h_ref[...], w2_ref, th)          # (TH, Wp, Cp)
    inner = acc[:, _COL0:_COL0 + w, :]
    y2_ref[...] = inner
    st2_ref[...] = _col_sums(inner)


def _residual_kernel(x_ref, y2_ref, sc2_ref, sh2_ref, out_ref):
    """Pass 3: out = x + LeakyReLU(BN2-folded y2)."""
    y = y2_ref[...] * sc2_ref[...] + sh2_ref[...]
    out_ref[...] = x_ref[...] + jnp.maximum(y, _LRELU_SLOPE * y)


def _round_up(v, m):
    return (v + m - 1) // m * m


@functools.partial(jax.jit, static_argnames=("row_tile",))
def residual_block(x_nchw, params, *, row_tile=8):
    """x_nchw: (N, C, H, W) float32 -> (N, C, H, W) float32 (training-mode BN)."""
    x = jnp.transpose(x_nchw, (0, 2, 3, 1)).astype(jnp.float32)   # NCHW -> NHWC
    n, h, w, c = x.shape
    th = min(row_tile, h)
    assert h % th == 0, "row_tile must divide H"   # TODO(synk): ragged last tile
    n_tiles = h // th
    cp = _round_up(c, 128)
    pad_c = cp - c
    wp = w + 2 * _COL0

    # Boundary glue (layout only): lane-dense channel padding + spatial halo.
    # Padded channels stay exactly zero through conv/BN/LReLU (zero weights,
    # gamma=0).  In a real network this layout would stay resident.
    x_cp = jnp.pad(x, ((0, 0), (0, 0), (0, 0), (0, pad_c)))          # (N,H,W,Cp)
    xpad = jnp.pad(x_cp, ((0, 0), (2, 2), (_COL0, _COL0), (0, 0)))   # (N,H+4,Wp,Cp)

    def pack_w(wgt):
        wgt = jnp.pad(wgt.astype(jnp.float32),
                      ((0, 0), (0, 0), (0, pad_c), (0, pad_c)))      # (3,3,Cp,Cp)
        return wgt.reshape(3, 3 * cp, cp).astype(_CONV_DTYPE)        # K = 3*Cp

    w1 = pack_w(params["w1"])
    w2 = pack_w(params["w2"])
    g1 = jnp.pad(params["g1"].astype(jnp.float32), (0, pad_c))
    be1 = jnp.pad(params["be1"].astype(jnp.float32), (0, pad_c))
    g2 = jnp.pad(params["g2"].astype(jnp.float32), (0, pad_c))
    be2 = jnp.pad(params["be2"].astype(jnp.float32), (0, pad_c))
    # NOTE: conv biases b1/b2 are intentionally not used (cancelled by BN).

    cparams = pltpu.CompilerParams(
        dimension_semantics=("parallel", "parallel"),   # megacore-shardable (v7x)
        vmem_limit_bytes=56 * 1024 * 1024,              # below v7x's 64 MiB VMEM
    )

    w_spec = pl.BlockSpec((3, 3 * cp, cp), lambda i, j: (0, 0, 0))   # resident
    vec_spec = pl.BlockSpec((1, cp), lambda i, j: (0, 0))            # resident
    y1_spec = pl.BlockSpec((None, None, th + 2, wp, cp),
                           lambda i, j: (i, j, 0, 0, 0))
    st_spec = pl.BlockSpec((None, None, 2, cp), lambda i, j: (i, j, 0, 0))
    tile_spec = pl.BlockSpec((None, th, w, cp), lambda i, j: (i, j, 0, 0))

    # ---- pass 1: Conv1 + BN1 partial statistics ------------------------------
    y1, st1 = pl.pallas_call(
        _conv1_kernel,
        grid=(n, n_tiles),
        in_specs=[pl.BlockSpec(memory_space=pl.ANY), w_spec],
        out_specs=(y1_spec, st_spec),
        out_shape=(
            jax.ShapeDtypeStruct((n, n_tiles, th + 2, wp, cp), jnp.float32),
            jax.ShapeDtypeStruct((n, n_tiles, 2, cp), jnp.float32)),
        scratch_shapes=[pltpu.VMEM((th + 4, wp, cp), jnp.float32),
                        pltpu.SemaphoreType.DMA],
        compiler_params=cparams,
    )(xpad, w1)

    def fold_bn(stats, gamma, beta):
        s = jnp.sum(stats, axis=(0, 1))                   # (2, Cp) global sums
        m = float(n * h * w)
        mean = s[0] / m
        var = s[1] / m - mean * mean                      # one-pass variance
        scale = gamma * jax.lax.rsqrt(var + _BN_EPS)
        shift = beta - mean * scale
        return scale.reshape(1, cp), shift.reshape(1, cp)

    sc1, sh1 = fold_bn(st1, g1, be1)

    # ---- pass 2: BN1 + LReLU -> Conv2 + BN2 partial statistics ---------------
    y2, st2 = pl.pallas_call(
        _conv2_kernel,
        grid=(n, n_tiles),
        in_specs=[y1_spec, w_spec, vec_spec, vec_spec],
        out_specs=(tile_spec, st_spec),
        out_shape=(
            jax.ShapeDtypeStruct((n, h, w, cp), jnp.float32),
            jax.ShapeDtypeStruct((n, n_tiles, 2, cp), jnp.float32)),
        scratch_shapes=[pltpu.VMEM((th + 2, wp, cp), jnp.float32)],
        compiler_params=cparams,
    )(y1, w2, sc1, sh1)

    sc2, sh2 = fold_bn(st2, g2, be2)

    # ---- pass 3: BN2 + LReLU + residual add -----------------------------------
    out = pl.pallas_call(
        _residual_kernel,
        grid=(n, n_tiles),
        in_specs=[tile_spec, tile_spec, vec_spec, vec_spec],
        out_specs=tile_spec,
        out_shape=jax.ShapeDtypeStruct((n, h, w, cp), jnp.float32),
        compiler_params=cparams,
    )(x_cp, y2, sc2, sh2)

    out = out[..., :c]                                    # drop lane padding
    return jnp.transpose(out, (0, 3, 1, 2))               # NHWC -> NCHW


def _reference(x_nchw, params):
    """Pure-JAX f32 reference matching the PyTorch forward (training-mode BN)."""
    def conv(x, wgt, b):
        w_oihw = jnp.transpose(wgt, (3, 2, 0, 1))  # (kh,kw,Ci,Co) -> (O,I,kh,kw)
        y = jax.lax.conv_general_dilated(
            x, w_oihw, window_strides=(1, 1), padding=((1, 1), (1, 1)),
            dimension_numbers=("NCHW", "OIHW", "NCHW"))
        return y + b.reshape(1, -1, 1, 1)

    def bn(x, g, be):
        mean = jnp.mean(x, axis=(0, 2, 3), keepdims=True)
        var = jnp.mean(jnp.square(x - mean), axis=(0, 2, 3), keepdims=True)
        return ((x - mean) * jax.lax.rsqrt(var + _BN_EPS)
                * g.reshape(1, -1, 1, 1) + be.reshape(1, -1, 1, 1))

    def lrelu(x):
        return jnp.where(x > 0, x, _LRELU_SLOPE * x)

    hid = lrelu(bn(conv(x_nchw, params["w1"], params["b1"]),
                   params["g1"], params["be1"]))
    hid = lrelu(bn(conv(hid, params["w2"], params["b2"]),
                   params["g2"], params["be2"]))
    return x_nchw + hid


if __name__ == "__main__":
    N, C, H, W = 2, 4, 16, 16   # in_channels == out_channels == C

    key = jax.random.PRNGKey(0)
    k = jax.random.split(key, 9)
    params = {
        "w1": 0.1 * jax.random.normal(k[0], (3, 3, C, C), jnp.float32),  # HWIO
        "b1": 0.1 * jax.random.normal(k[1], (C,), jnp.float32),
        "g1": 1.0 + 0.1 * jax.random.normal(k[2], (C,), jnp.float32),
        "be1": 0.1 * jax.random.normal(k[3], (C,), jnp.float32),
        "w2": 0.1 * jax.random.normal(k[4], (3, 3, C, C), jnp.float32),
        "b2": 0.1 * jax.random.normal(k[5], (C,), jnp.float32),
        "g2": 1.0 + 0.1 * jax.random.normal(k[6], (C,), jnp.float32),
        "be2": 0.1 * jax.random.normal(k[7], (C,), jnp.float32),
    }
    x = jax.random.normal(k[8], (N, C, H, W), jnp.float32)

    out = jax.block_until_ready(residual_block(x, params, row_tile=8))
    ref = jax.block_until_ready(_reference(x, params))
    # bf16 MXU taps (f32 accumulation) deviate from the pure-f32 PyTorch forward
    # by ~1e-2 after two convs + BN; set _CONV_DTYPE = jnp.float32 to recover
    # ~1e-5 agreement (and tighten this tolerance).
    np.testing.assert_allclose(np.asarray(out), np.asarray(ref),
                               rtol=5e-2, atol=5e-2)
    print("KERNEL_OK")
</pallas_src>

<mosaic_0001>
module attributes {stable_mosaic.version = 11 : i64} {
  func.func @_conv1_kernel(%arg0: i32, %arg1: i32, %arg2: memref<2x20x32x128xf32, #tpu.memory_space<any>>, %arg3: memref<3x384x128xbf16, #tpu.memory_space<vmem>>, %arg4: memref<1x1x10x32x128xf32, #tpu.memory_space<vmem>>, %arg5: memref<1x1x2x128xf32, #tpu.memory_space<vmem>>, %arg6: memref<12x32x128xf32, #tpu.memory_space<vmem>>, %arg7: memref<!tpu.dma_semaphore, #tpu.memory_space<semaphore_mem>>) attributes {dimension_semantics = [#tpu.dimension_semantics<parallel>, #tpu.dimension_semantics<parallel>], iteration_bounds = array<i64: 2, 2>, scalar_prefetch = 0 : i64, scratch_operands = 2 : i64, tpu.core_type = #tpu.core_type<tc>, window_params = [{}, {pipeline_mode = #tpu.pipeline_mode<synchronous>, transform_indices = @transform_1, window_bounds = array<i64: 3, 384, 128>}, {transform_indices = @transform_2, window_bounds = array<i64: 1, 1, 10, 32, 128>}, {transform_indices = @transform_3, window_bounds = array<i64: 1, 1, 2, 128>}]} {
    %c8_i32 = arith.constant 8 : i32
    %0 = arith.muli %arg1, %c8_i32 : i32
    %c0_i32 = arith.constant 0 : i32
    %c0_i32_0 = arith.constant 0 : i32
    %1 = tpu.memref_slice %arg2[%arg0, %0, %c0_i32, %c0_i32_0] : memref<2x20x32x128xf32, #tpu.memory_space<any>> -> memref<1x12x32x128xf32, #tpu.memory_space<any>>
    %2 = tpu.memref_squeeze %1 : memref<1x12x32x128xf32, #tpu.memory_space<any>> -> memref<12x32x128xf32, #tpu.memory_space<any>>
    tpu.enqueue_dma source(%2 : memref<12x32x128xf32, #tpu.memory_space<any>>) target(%arg6 : memref<12x32x128xf32, #tpu.memory_space<vmem>>) target_semaphore(%arg7 : memref<!tpu.dma_semaphore, #tpu.memory_space<semaphore_mem>>)
    %c0_i32_1 = arith.constant 0 : i32
    %c0_i32_2 = arith.constant 0 : i32
    %3 = tpu.memref_slice %arg2[%arg0, %0, %c0_i32_1, %c0_i32_2] : memref<2x20x32x128xf32, #tpu.memory_space<any>> -> memref<1x12x32x128xf32, #tpu.memory_space<any>>
    %4 = tpu.memref_squeeze %3 : memref<1x12x32x128xf32, #tpu.memory_space<any>> -> memref<12x32x128xf32, #tpu.memory_space<any>>
    tpu.wait_dma2 semaphore(%arg7 : memref<!tpu.dma_semaphore, #tpu.memory_space<semaphore_mem>>) src(%4 : memref<12x32x128xf32, #tpu.memory_space<any>>) dst(%arg6 : memref<12x32x128xf32, #tpu.memory_space<vmem>>)
    %c0 = arith.constant 0 : index
    %c0_3 = arith.constant 0 : index
    %c0_4 = arith.constant 0 : index
    %5 = vector.load %arg6[%c0, %c0_3, %c0_4] : memref<12x32x128xf32, #tpu.memory_space<vmem>>, vector<12x32x128xf32>
    %6 = vector.extract_strided_slice %5 {offsets = [0, 31, 0], sizes = [12, 1, 128], strides = [1, 1, 1]} : vector<12x32x128xf32> to vector<12x1x128xf32>
    %7 = vector.extract_strided_slice %5 {offsets = [0, 0, 0], sizes = [12, 31, 128], strides = [1, 1, 1]} : vector<12x32x128xf32> to vector<12x31x128xf32>
    %8 = tpu.concatenate %6, %7 in 1 : vector<12x1x128xf32>, vector<12x31x128xf32> -> vector<12x32x128xf32>
    %9 = vector.extract_strided_slice %5 {offsets = [0, 1, 0], sizes = [12, 31, 128], strides = [1, 1, 1]} : vector<12x32x128xf32> to vector<12x31x128xf32>
    %10 = vector.extract_strided_slice %5 {offsets = [0, 0, 0], sizes = [12, 1, 128], strides = [1, 1, 1]} : vector<12x32x128xf32> to vector<12x1x128xf32>
    %11 = tpu.concatenate %9, %10 in 1 : vector<12x31x128xf32>, vector<12x1x128xf32> -> vector<12x32x128xf32>
    %12 = arith.truncf %8 : vector<12x32x128xf32> to vector<12x32x128xbf16>
    %13 = arith.truncf %5 : vector<12x32x128xf32> to vector<12x32x128xbf16>
    %14 = arith.truncf %11 : vector<12x32x128xf32> to vector<12x32x128xbf16>
    %15 = tpu.concatenate %12, %13, %14 in 2 : vector<12x32x128xbf16>, vector<12x32x128xbf16>, vector<12x32x128xbf16> -> vector<12x32x384xbf16>
    %16 = vector.shape_cast %15 : vector<12x32x384xbf16> to vector<384x384xbf16>
    %cst = arith.constant 0.000000e+00 : f32
    %17 = vector.broadcast %cst : f32 to vector<320x128xf32>
    %18 = vector.extract_strided_slice %16 {offsets = [0, 0], sizes = [320, 384], strides = [1, 1]} : vector<384x384xbf16> to vector<320x384xbf16>
    %c0_5 = arith.constant 0 : index
    %c0_6 = arith.constant 0 : index
    %c0_7 = arith.constant 0 : index
    %19 = vector.load %arg3[%c0_5, %c0_6, %c0_7] : memref<3x384x128xbf16, #tpu.memory_space<vmem>>, vector<1x384x128xbf16>
    %20 = vector.shape_cast %19 : vector<1x384x128xbf16> to vector<384x128xbf16>
    %cst_8 = arith.constant dense<0.000000e+00> : vector<320x128xf32>
    %21 = tpu.matmul %18, %20, %cst_8 {dimension_numbers = #tpu.dot_dimension_numbers<[1], [0], [0], [1], [0, 0, 1, 1], [], []>} : vector<320x384xbf16>, vector<384x128xbf16>, vector<320x128xf32> -> vector<320x128xf32>
    %22 = arith.addf %17, %21 : vector<320x128xf32>
    %23 = vector.extract_strided_slice %16 {offsets = [32, 0], sizes = [320, 384], strides = [1, 1]} : vector<384x384xbf16> to vector<320x384xbf16>
    %c1 = arith.constant 1 : index
    %c0_9 = arith.constant 0 : index
    %c0_10 = arith.constant 0 : index
    %24 = vector.load %arg3[%c1, %c0_9, %c0_10] : memref<3x384x128xbf16, #tpu.memory_space<vmem>>, vector<1x384x128xbf16>
    %25 = vector.shape_cast %24 : vector<1x384x128xbf16> to vector<384x128xbf16>
    %cst_11 = arith.constant dense<0.000000e+00> : vector<320x128xf32>
    %26 = tpu.matmul %23, %25, %cst_11 {dimension_numbers = #tpu.dot_dimension_numbers<[1], [0], [0], [1], [0, 0, 1, 1], [], []>} : vector<320x384xbf16>, vector<384x128xbf16>, vector<320x128xf32> -> vector<320x128xf32>
    %27 = arith.addf %22, %26 : vector<320x128xf32>
    %28 = vector.extract_strided_slice %16 {offsets = [64, 0], sizes = [320, 384], strides = [1, 1]} : vector<384x384xbf16> to vector<320x384xbf16>
    %c2 = arith.constant 2 : index
    %c0_12 = arith.constant 0 : index
    %c0_13 = arith.constant 0 : index
    %29 = vector.load %arg3[%c2, %c0_12, %c0_13] : memref<3x384x128xbf16, #tpu.memory_space<vmem>>, vector<1x384x128xbf16>
    %30 = vector.shape_cast %29 : vector<1x384x128xbf16> to vector<384x128xbf16>
    %cst_14 = arith.constant dense<0.000000e+00> : vector<320x128xf32>
    %31 = tpu.matmul %28, %30, %cst_14 {dimension_numbers = #tpu.dot_dimension_numbers<[1], [0], [0], [1], [0, 0, 1, 1], [], []>} : vector<320x384xbf16>, vector<384x128xbf16>, vector<320x128xf32> -> vector<320x128xf32>
    %32 = arith.addf %27, %31 : vector<320x128xf32>
    %33 = vector.shape_cast %32 : vector<320x128xf32> to vector<10x32x128xf32>
    %c0_15 = arith.constant 0 : index
    %c0_16 = arith.constant 0 : index
    %c0_17 = arith.constant 0 : index
    %c0_18 = arith.constant 0 : index
    %c0_19 = arith.constant 0 : index
    %34 = vector.load %arg4[%c0_15, %c0_16, %c0_17, %c0_18, %c0_19] : memref<1x1x10x32x128xf32, #tpu.memory_space<vmem>>, vector<1x1x10x32x128xf32>
    %35 = vector.shape_cast %34 : vector<1x1x10x32x128xf32> to vector<10x32x128xf32>
    %36 = vector.shape_cast %33 : vector<10x32x128xf32> to vector<1x1x10x32x128xf32>
    tpu.vector_store %arg4[%c0_15, %c0_16, %c0_17, %c0_18, %c0_19], %36 {strides = array<i32>} : memref<1x1x10x32x128xf32, #tpu.memory_space<vmem>>, vector<1x1x10x32x128xf32>,
    %37 = vector.extract_strided_slice %33 {offsets = [1, 8, 0], sizes = [8, 16, 128], strides = [1, 1, 1]} : vector<10x32x128xf32> to vector<8x16x128xf32>
    %38 = vector.shape_cast %37 : vector<8x16x128xf32> to vector<128x128xf32>
    %cst_20 = arith.constant dense<0.000000e+00> : vector<128xf32>
    %39 = vector.multi_reduction <add>, %38, %cst_20 [0] : vector<128x128xf32> to vector<128xf32>
    %40 = vector.shape_cast %39 : vector<128xf32> to vector<1x128xf32>
    %41 = arith.mulf %38, %38 : vector<128x128xf32>
    %cst_21 = arith.constant dense<0.000000e+00> : vector<128xf32>
    %42 = vector.multi_reduction <add>, %41, %cst_21 [0] : vector<128x128xf32> to vector<128xf32>
    %43 = vector.shape_cast %42 : vector<128xf32> to vector<1x128xf32>
    %44 = tpu.concatenate %40, %43 in 0 : vector<1x128xf32>, vector<1x128xf32> -> vector<2x128xf32>
    %c0_22 = arith.constant 0 : index
    %c0_23 = arith.constant 0 : index
    %c0_24 = arith.constant 0 : index
    %c0_25 = arith.constant 0 : index
    %45 = vector.load %arg5[%c0_22, %c0_23, %c0_24, %c0_25] : memref<1x1x2x128xf32, #tpu.memory_space<vmem>>, vector<1x1x2x128xf32>
    %46 = vector.shape_cast %45 : vector<1x1x2x128xf32> to vector<2x128xf32>
    %47 = vector.shape_cast %44 : vector<2x128xf32> to vector<1x1x2x128xf32>
    tpu.vector_store %arg5[%c0_22, %c0_23, %c0_24, %c0_25], %47 {strides = array<i32>} : memref<1x1x2x128xf32, #tpu.memory_space<vmem>>, vector<1x1x2x128xf32>,
    return
  }
  func.func @transform_1(%arg0: i32, %arg1: i32) -> (i32, i32, i32) {
    %c0_i32 = arith.constant 0 : i32
    %c0_i32_0 = arith.constant 0 : i32
    %c0_i32_1 = arith.constant 0 : i32
    %c0_i32_2 = arith.constant 0 : i32
    return %c0_i32, %c0_i32_0, %c0_i32_1 : i32, i32, i32
  }
  func.func @transform_2(%arg0: i32, %arg1: i32) -> (i32, i32, i32, i32, i32) {
    %c0_i32 = arith.constant 0 : i32
    %c0_i32_0 = arith.constant 0 : i32
    %c0_i32_1 = arith.constant 0 : i32
    %c0_i32_2 = arith.constant 0 : i32
    return %arg0, %arg1, %c0_i32, %c0_i32_0, %c0_i32_1 : i32, i32, i32, i32, i32
  }
  func.func @transform_3(%arg0: i32, %arg1: i32) -> (i32, i32, i32, i32) {
    %c0_i32 = arith.constant 0 : i32
    %c0_i32_0 = arith.constant 0 : i32
    %c0_i32_1 = arith.constant 0 : i32
    return %arg0, %arg1, %c0_i32, %c0_i32_0 : i32, i32, i32, i32
  }
}

module attributes {stable_mosaic.version = 11 : i64} {
  func.func @_residual_kernel(%arg0: i32, %arg1: i32, %arg2: memref<1x8x16x128xf32, #tpu.memory_space<vmem>>, %arg3: memref<1x8x16x128xf32, #tpu.memory_space<vmem>>, %arg4: memref<1x128xf32, #tpu.memory_space<vmem>>, %arg5: memref<1x128xf32, #tpu.memory_space<vmem>>, %arg6: memref<1x8x16x128xf32, #tpu.memory_space<vmem>>) attributes {dimension_semantics = [#tpu.dimension_semantics<parallel>, #tpu.dimension_semantics<parallel>], iteration_bounds = array<i64: 2, 2>, scalar_prefetch = 0 : i64, scratch_operands = 0 : i64, tpu.core_type = #tpu.core_type<tc>, window_params = [{transform_indices = @transform_0, window_bounds = array<i64: 1, 8, 16, 128>}, {transform_indices = @transform_1, window_bounds = array<i64: 1, 8, 16, 128>}, {pipeline_mode = #tpu.pipeline_mode<synchronous>, transform_indices = @transform_2, window_bounds = array<i64: 1, 128>}, {pipeline_mode = #tpu.pipeline_mode<synchronous>, transform_indices = @transform_3, window_bounds = array<i64: 1, 128>}, {transform_indices = @transform_4, window_bounds = array<i64: 1, 8, 16, 128>}]} {
    %c0 = arith.constant 0 : index
    %c0_0 = arith.constant 0 : index
    %c0_1 = arith.constant 0 : index
    %c0_2 = arith.constant 0 : index
    %0 = vector.load %arg3[%c0, %c0_0, %c0_1, %c0_2] : memref<1x8x16x128xf32, #tpu.memory_space<vmem>>, vector<1x8x16x128xf32>
    %1 = vector.shape_cast %0 : vector<1x8x16x128xf32> to vector<8x16x128xf32>
    %c0_3 = arith.constant 0 : index
    %c0_4 = arith.constant 0 : index
    %2 = vector.load %arg4[%c0_3, %c0_4] : memref<1x128xf32, #tpu.memory_space<vmem>>, vector<1x128xf32>
    %3 = vector.shape_cast %2 : vector<1x128xf32> to vector<1x1x128xf32>
    %4 = vector.broadcast %3 : vector<1x1x128xf32> to vector<8x16x128xf32>
    %5 = arith.mulf %1, %4 : vector<8x16x128xf32>
    %c0_5 = arith.constant 0 : index
    %c0_6 = arith.constant 0 : index
    %6 = vector.load %arg5[%c0_5, %c0_6] : memref<1x128xf32, #tpu.memory_space<vmem>>, vector<1x128xf32>
    %7 = vector.shape_cast %6 : vector<1x128xf32> to vector<1x1x128xf32>
    %8 = vector.broadcast %7 : vector<1x1x128xf32> to vector<8x16x128xf32>
    %9 = arith.addf %5, %8 : vector<8x16x128xf32>
    %c0_7 = arith.constant 0 : index
    %c0_8 = arith.constant 0 : index
    %c0_9 = arith.constant 0 : index
    %c0_10 = arith.constant 0 : index
    %10 = vector.load %arg2[%c0_7, %c0_8, %c0_9, %c0_10] : memref<1x8x16x128xf32, #tpu.memory_space<vmem>>, vector<1x8x16x128xf32>
    %11 = vector.shape_cast %10 : vector<1x8x16x128xf32> to vector<8x16x128xf32>
    %cst = arith.constant 2.000000e-01 : f32
    %12 = vector.broadcast %cst : f32 to vector<8x16x128xf32>
    %13 = arith.mulf %12, %9 : vector<8x16x128xf32>
    %14 = arith.maximumf %9, %13 : vector<8x16x128xf32>
    %15 = arith.addf %11, %14 : vector<8x16x128xf32>
    %c0_11 = arith.constant 0 : index
    %c0_12 = arith.constant 0 : index
    %c0_13 = arith.constant 0 : index
    %c0_14 = arith.constant 0 : index
    %16 = vector.load %arg6[%c0_11, %c0_12, %c0_13, %c0_14] : memref<1x8x16x128xf32, #tpu.memory_space<vmem>>, vector<1x8x16x128xf32>
    %17 = vector.shape_cast %16 : vector<1x8x16x128xf32> to vector<8x16x128xf32>
    %18 = vector.shape_cast %15 : vector<8x16x128xf32> to vector<1x8x16x128xf32>
    tpu.vector_store %arg6[%c0_11, %c0_12, %c0_13, %c0_14], %18 {strides = array<i32>} : memref<1x8x16x128xf32, #tpu.memory_space<vmem>>, vector<1x8x16x128xf32>,
    return
  }
  func.func @transform_0(%arg0: i32, %arg1: i32) -> (i32, i32, i32, i32) {
    %c0_i32 = arith.constant 0 : i32
    %c0_i32_0 = arith.constant 0 : i32
    %c0_i32_1 = arith.constant 0 : i32
    return %arg0, %arg1, %c0_i32, %c0_i32_0 : i32, i32, i32, i32
  }
  func.func @transform_1(%arg0: i32, %arg1: i32) -> (i32, i32, i32, i32) {
    %c0_i32 = arith.constant 0 : i32
    %c0_i32_0 = arith.constant 0 : i32
    %c0_i32_1 = arith.constant 0 : i32
    return %arg0, %arg1, %c0_i32, %c0_i32_0 : i32, i32, i32, i32
  }
  func.func @transform_2(%arg0: i32, %arg1: i32) -> (i32, i32) {
    %c0_i32 = arith.constant 0 : i32
    %c0_i32_0 = arith.constant 0 : i32
    %c0_i32_1 = arith.constant 0 : i32
    return %c0_i32, %c0_i32_0 : i32, i32
  }
  func.func @transform_3(%arg0: i32, %arg1: i32) -> (i32, i32) {
    %c0_i32 = arith.constant 0 : i32
    %c0_i32_0 = arith.constant 0 : i32
    %c0_i32_1 = arith.constant 0 : i32
    return %c0_i32, %c0_i32_0 : i32, i32
  }
  func.func @transform_4(%arg0: i32, %arg1: i32) -> (i32, i32, i32, i32) {
    %c0_i32 = arith.constant 0 : i32
    %c0_i32_0 = arith.constant 0 : i32
    %c0_i32_1 = arith.constant 0 : i32
    return %arg0, %arg1, %c0_i32, %c0_i32_0 : i32, i32, i32, i32
  }
}

module attributes {stable_mosaic.version = 11 : i64} {
  func.func @_conv2_kernel(%arg0: i32, %arg1: i32, %arg2: memref<1x1x10x32x128xf32, #tpu.memory_space<vmem>>, %arg3: memref<3x384x128xbf16, #tpu.memory_space<vmem>>, %arg4: memref<1x128xf32, #tpu.memory_space<vmem>>, %arg5: memref<1x128xf32, #tpu.memory_space<vmem>>, %arg6: memref<1x8x16x128xf32, #tpu.memory_space<vmem>>, %arg7: memref<1x1x2x128xf32, #tpu.memory_space<vmem>>, %arg8: memref<10x32x128xf32, #tpu.memory_space<vmem>>) attributes {dimension_semantics = [#tpu.dimension_semantics<parallel>, #tpu.dimension_semantics<parallel>], iteration_bounds = array<i64: 2, 2>, scalar_prefetch = 0 : i64, scratch_operands = 1 : i64, tpu.core_type = #tpu.core_type<tc>, window_params = [{transform_indices = @transform_0, window_bounds = array<i64: 1, 1, 10, 32, 128>}, {pipeline_mode = #tpu.pipeline_mode<synchronous>, transform_indices = @transform_1, window_bounds = array<i64: 3, 384, 128>}, {pipeline_mode = #tpu.pipeline_mode<synchronous>, transform_indices = @transform_2, window_bounds = array<i64: 1, 128>}, {pipeline_mode = #tpu.pipeline_mode<synchronous>, transform_indices = @transform_3, window_bounds = array<i64: 1, 128>}, {transform_indices = @transform_4, window_bounds = array<i64: 1, 8, 16, 128>}, {transform_indices = @transform_5, window_bounds = array<i64: 1, 1, 2, 128>}]} {
    %c0 = arith.constant 0 : index
    %c0_0 = arith.constant 0 : index
    %c0_1 = arith.constant 0 : index
    %c0_2 = arith.constant 0 : index
    %c0_3 = arith.constant 0 : index
    %0 = vector.load %arg2[%c0, %c0_0, %c0_1, %c0_2, %c0_3] : memref<1x1x10x32x128xf32, #tpu.memory_space<vmem>>, vector<1x1x10x32x128xf32>
    %1 = vector.shape_cast %0 : vector<1x1x10x32x128xf32> to vector<10x32x128xf32>
    %c0_4 = arith.constant 0 : index
    %c0_5 = arith.constant 0 : index
    %2 = vector.load %arg4[%c0_4, %c0_5] : memref<1x128xf32, #tpu.memory_space<vmem>>, vector<1x128xf32>
    %3 = vector.shape_cast %2 : vector<1x128xf32> to vector<1x1x128xf32>
    %4 = vector.broadcast %3 : vector<1x1x128xf32> to vector<10x32x128xf32>
    %5 = arith.mulf %1, %4 : vector<10x32x128xf32>
    %c0_6 = arith.constant 0 : index
    %c0_7 = arith.constant 0 : index
    %6 = vector.load %arg5[%c0_6, %c0_7] : memref<1x128xf32, #tpu.memory_space<vmem>>, vector<1x128xf32>
    %7 = vector.shape_cast %6 : vector<1x128xf32> to vector<1x1x128xf32>
    %8 = vector.broadcast %7 : vector<1x1x128xf32> to vector<10x32x128xf32>
    %9 = arith.addf %5, %8 : vector<10x32x128xf32>
    %cst = arith.constant 2.000000e-01 : f32
    %10 = vector.broadcast %cst : f32 to vector<10x32x128xf32>
    %11 = arith.mulf %10, %9 : vector<10x32x128xf32>
    %12 = arith.maximumf %9, %11 : vector<10x32x128xf32>
    %c0_8 = arith.constant 0 : index
    %c0_9 = arith.constant 0 : index
    %c0_10 = arith.constant 0 : index
    %13 = vector.load %arg8[%c0_8, %c0_9, %c0_10] : memref<10x32x128xf32, #tpu.memory_space<vmem>>, vector<10x32x128xf32>
    tpu.vector_store %arg8[%c0_8, %c0_9, %c0_10], %12 {strides = array<i32>} : memref<10x32x128xf32, #tpu.memory_space<vmem>>, vector<10x32x128xf32>,
    %cst_11 = arith.constant 0.000000e+00 : f32
    %14 = vector.broadcast %cst_11 : f32 to vector<10x8x128xf32>
    %c0_12 = arith.constant 0 : index
    %c0_13 = arith.constant 0 : index
    %c0_14 = arith.constant 0 : index
    %15 = vector.load %arg8[%c0_12, %c0_13, %c0_14] : memref<10x32x128xf32, #tpu.memory_space<vmem>>, vector<10x8x128xf32>
    tpu.vector_store %arg8[%c0_12, %c0_13, %c0_14], %14 {strides = array<i32>} : memref<10x32x128xf32, #tpu.memory_space<vmem>>, vector<10x8x128xf32>,
    %cst_15 = arith.constant 0.000000e+00 : f32
    %16 = vector.broadcast %cst_15 : f32 to vector<10x8x128xf32>
    %c0_16 = arith.constant 0 : index
    %c24 = arith.constant 24 : index
    %c0_17 = arith.constant 0 : index
    %17 = vector.load %arg8[%c0_16, %c24, %c0_17] : memref<10x32x128xf32, #tpu.memory_space<vmem>>, vector<10x8x128xf32>
    tpu.vector_store %arg8[%c0_16, %c24, %c0_17], %16 {strides = array<i32>} : memref<10x32x128xf32, #tpu.memory_space<vmem>>, vector<10x8x128xf32>,
    %c0_i32 = arith.constant 0 : i32
    %18 = arith.cmpi eq, %arg1, %c0_i32 : i32
    %19 = arith.extui %18 : i1 to i32
    %c0_i32_18 = arith.constant 0 : i32
    %20 = arith.cmpi ne, %19, %c0_i32_18 : i32
    scf.if %20 {
      %cst_44 = arith.constant 0.000000e+00 : f32
      %67 = vector.broadcast %cst_44 : f32 to vector<1x32x128xf32>
      %c0_45 = arith.constant 0 : index
      %c0_46 = arith.constant 0 : index
      %c0_47 = arith.constant 0 : index
      %68 = vector.load %arg8[%c0_45, %c0_46, %c0_47] : memref<10x32x128xf32, #tpu.memory_space<vmem>>, vector<1x32x128xf32>
      tpu.vector_store %arg8[%c0_45, %c0_46, %c0_47], %67 {strides = array<i32>} : memref<10x32x128xf32, #tpu.memory_space<vmem>>, vector<1x32x128xf32>,
    } else {
    }
    %c1_i32 = arith.constant 1 : i32
    %21 = arith.cmpi eq, %arg1, %c1_i32 : i32
    %22 = arith.extui %21 : i1 to i32
    %c0_i32_19 = arith.constant 0 : i32
    %23 = arith.cmpi ne, %22, %c0_i32_19 : i32
    scf.if %23 {
      %cst_44 = arith.constant 0.000000e+00 : f32
      %67 = vector.broadcast %cst_44 : f32 to vector<1x32x128xf32>
      %c9 = arith.constant 9 : index
      %c0_45 = arith.constant 0 : index
      %c0_46 = arith.constant 0 : index
      %68 = vector.load %arg8[%c9, %c0_45, %c0_46] : memref<10x32x128xf32, #tpu.memory_space<vmem>>, vector<1x32x128xf32>
      tpu.vector_store %arg8[%c9, %c0_45, %c0_46], %67 {strides = array<i32>} : memref<10x32x128xf32, #tpu.memory_space<vmem>>, vector<1x32x128xf32>,
    } else {
    }
    %c0_20 = arith.constant 0 : index
    %c0_21 = arith.constant 0 : index
    %c0_22 = arith.constant 0 : index
    %24 = vector.load %arg8[%c0_20, %c0_21, %c0_22] : memref<10x32x128xf32, #tpu.memory_space<vmem>>, vector<10x32x128xf32>
    %25 = vector.extract_strided_slice %24 {offsets = [0, 31, 0], sizes = [10, 1, 128], strides = [1, 1, 1]} : vector<10x32x128xf32> to vector<10x1x128xf32>
    %26 = vector.extract_strided_slice %24 {offsets = [0, 0, 0], sizes = [10, 31, 128], strides = [1, 1, 1]} : vector<10x32x128xf32> to vector<10x31x128xf32>
    %27 = tpu.concatenate %25, %26 in 1 : vector<10x1x128xf32>, vector<10x31x128xf32> -> vector<10x32x128xf32>
    %28 = vector.extract_strided_slice %24 {offsets = [0, 1, 0], sizes = [10, 31, 128], strides = [1, 1, 1]} : vector<10x32x128xf32> to vector<10x31x128xf32>
    %29 = vector.extract_strided_slice %24 {offsets = [0, 0, 0], sizes = [10, 1, 128], strides = [1, 1, 1]} : vector<10x32x128xf32> to vector<10x1x128xf32>
    %30 = tpu.concatenate %28, %29 in 1 : vector<10x31x128xf32>, vector<10x1x128xf32> -> vector<10x32x128xf32>
    %31 = arith.truncf %27 : vector<10x32x128xf32> to vector<10x32x128xbf16>
    %32 = arith.truncf %24 : vector<10x32x128xf32> to vector<10x32x128xbf16>
    %33 = arith.truncf %30 : vector<10x32x128xf32> to vector<10x32x128xbf16>
    %34 = tpu.concatenate %31, %32, %33 in 2 : vector<10x32x128xbf16>, vector<10x32x128xbf16>, vector<10x32x128xbf16> -> vector<10x32x384xbf16>
    %35 = vector.shape_cast %34 : vector<10x32x384xbf16> to vector<320x384xbf16>
    %cst_23 = arith.constant 0.000000e+00 : f32
    %36 = vector.broadcast %cst_23 : f32 to vector<256x128xf32>
    %37 = vector.extract_strided_slice %35 {offsets = [0, 0], sizes = [256, 384], strides = [1, 1]} : vector<320x384xbf16> to vector<256x384xbf16>
    %c0_24 = arith.constant 0 : index
    %c0_25 = arith.constant 0 : index
    %c0_26 = arith.constant 0 : index
    %38 = vector.load %arg3[%c0_24, %c0_25, %c0_26] : memref<3x384x128xbf16, #tpu.memory_space<vmem>>, vector<1x384x128xbf16>
    %39 = vector.shape_cast %38 : vector<1x384x128xbf16> to vector<384x128xbf16>
    %cst_27 = arith.constant dense<0.000000e+00> : vector<256x128xf32>
    %40 = tpu.matmul %37, %39, %cst_27 {dimension_numbers = #tpu.dot_dimension_numbers<[1], [0], [0], [1], [0, 0, 1, 1], [], []>} : vector<256x384xbf16>, vector<384x128xbf16>, vector<256x128xf32> -> vector<256x128xf32>
    %41 = arith.addf %36, %40 : vector<256x128xf32>
    %42 = vector.extract_strided_slice %35 {offsets = [32, 0], sizes = [256, 384], strides = [1, 1]} : vector<320x384xbf16> to vector<256x384xbf16>
    %c1 = arith.constant 1 : index
    %c0_28 = arith.constant 0 : index
    %c0_29 = arith.constant 0 : index
    %43 = vector.load %arg3[%c1, %c0_28, %c0_29] : memref<3x384x128xbf16, #tpu.memory_space<vmem>>, vector<1x384x128xbf16>
    %44 = vector.shape_cast %43 : vector<1x384x128xbf16> to vector<384x128xbf16>
    %cst_30 = arith.constant dense<0.000000e+00> : vector<256x128xf32>
    %45 = tpu.matmul %42, %44, %cst_30 {dimension_numbers = #tpu.dot_dimension_numbers<[1], [0], [0], [1], [0, 0, 1, 1], [], []>} : vector<256x384xbf16>, vector<384x128xbf16>, vector<256x128xf32> -> vector<256x128xf32>
    %46 = arith.addf %41, %45 : vector<256x128xf32>
    %47 = vector.extract_strided_slice %35 {offsets = [64, 0], sizes = [256, 384], strides = [1, 1]} : vector<320x384xbf16> to vector<256x384xbf16>
    %c2 = arith.constant 2 : index
    %c0_31 = arith.constant 0 : index
    %c0_32 = arith.constant 0 : index
    %48 = vector.load %arg3[%c2, %c0_31, %c0_32] : memref<3x384x128xbf16, #tpu.memory_space<vmem>>, vector<1x384x128xbf16>
    %49 = vector.shape_cast %48 : vector<1x384x128xbf16> to vector<384x128xbf16>
    %cst_33 = arith.constant dense<0.000000e+00> : vector<256x128xf32>
    %50 = tpu.matmul %47, %49, %cst_33 {dimension_numbers = #tpu.dot_dimension_numbers<[1], [0], [0], [1], [0, 0, 1, 1], [], []>} : vector<256x384xbf16>, vector<384x128xbf16>, vector<256x128xf32> -> vector<256x128xf32>
    %51 = arith.addf %46, %50 : vector<256x128xf32>
    %52 = vector.shape_cast %51 : vector<256x128xf32> to vector<8x32x128xf32>
    %53 = vector.extract_strided_slice %52 {offsets = [0, 8, 0], sizes = [8, 16, 128], strides = [1, 1, 1]} : vector<8x32x128xf32> to vector<8x16x128xf32>
    %c0_34 = arith.constant 0 : index
    %c0_35 = arith.constant 0 : index
    %c0_36 = arith.constant 0 : index
    %c0_37 = arith.constant 0 : index
    %54 = vector.load %arg6[%c0_34, %c0_35, %c0_36, %c0_37] : memref<1x8x16x128xf32, #tpu.memory_space<vmem>>, vector<1x8x16x128xf32>
    %55 = vector.shape_cast %54 : vector<1x8x16x128xf32> to vector<8x16x128xf32>
    %56 = vector.shape_cast %53 : vector<8x16x128xf32> to vector<1x8x16x128xf32>
    tpu.vector_store %arg6[%c0_34, %c0_35, %c0_36, %c0_37], %56 {strides = array<i32>} : memref<1x8x16x128xf32, #tpu.memory_space<vmem>>, vector<1x8x16x128xf32>,
    %57 = vector.shape_cast %53 : vector<8x16x128xf32> to vector<128x128xf32>
    %cst_38 = arith.constant dense<0.000000e+00> : vector<128xf32>
    %58 = vector.multi_reduction <add>, %57, %cst_38 [0] : vector<128x128xf32> to vector<128xf32>
    %59 = vector.shape_cast %58 : vector<128xf32> to vector<1x128xf32>
    %60 = arith.mulf %57, %57 : vector<128x128xf32>
    %cst_39 = arith.constant dense<0.000000e+00> : vector<128xf32>
    %61 = vector.multi_reduction <add>, %60, %cst_39 [0] : vector<128x128xf32> to vector<128xf32>
    %62 = vector.shape_cast %61 : vector<128xf32> to vector<1x128xf32>
    %63 = tpu.concatenate %59, %62 in 0 : vector<1x128xf32>, vector<1x128xf32> -> vector<2x128xf32>
    %c0_40 = arith.constant 0 : index
    %c0_41 = arith.constant 0 : index
    %c0_42 = arith.constant 0 : index
    %c0_43 = arith.constant 0 : index
    %64 = vector.load %arg7[%c0_40, %c0_41, %c0_42, %c0_43] : memref<1x1x2x128xf32, #tpu.memory_space<vmem>>, vector<1x1x2x128xf32>
    %65 = vector.shape_cast %64 : vector<1x1x2x128xf32> to vector<2x128xf32>
    %66 = vector.shape_cast %63 : vector<2x128xf32> to vector<1x1x2x128xf32>
    tpu.vector_store %arg7[%c0_40, %c0_41, %c0_42, %c0_43], %66 {strides = array<i32>} : memref<1x1x2x128xf32, #tpu.memory_space<vmem>>, vector<1x1x2x128xf32>,
    return
  }
  func.func @transform_0(%arg0: i32, %arg1: i32) -> (i32, i32, i32, i32, i32) {
    %c0_i32 = arith.constant 0 : i32
    %c0_i32_0 = arith.constant 0 : i32
    %c0_i32_1 = arith.constant 0 : i32
    %c0_i32_2 = arith.constant 0 : i32
    return %arg0, %arg1, %c0_i32, %c0_i32_0, %c0_i32_1 : i32, i32, i32, i32, i32
  }
  func.func @transform_1(%arg0: i32, %arg1: i32) -> (i32, i32, i32) {
    %c0_i32 = arith.constant 0 : i32
    %c0_i32_0 = arith.constant 0 : i32
    %c0_i32_1 = arith.constant 0 : i32
    %c0_i32_2 = arith.constant 0 : i32
    return %c0_i32, %c0_i32_0, %c0_i32_1 : i32, i32, i32
  }
  func.func @transform_2(%arg0: i32, %arg1: i32) -> (i32, i32) {
    %c0_i32 = arith.constant 0 : i32
    %c0_i32_0 = arith.constant 0 : i32
    %c0_i32_1 = arith.constant 0 : i32
    return %c0_i32, %c0_i32_0 : i32, i32
  }
  func.func @transform_3(%arg0: i32, %arg1: i32) -> (i32, i32) {
    %c0_i32 = arith.constant 0 : i32
    %c0_i32_0 = arith.constant 0 : i32
    %c0_i32_1 = arith.constant 0 : i32
    return %c0_i32, %c0_i32_0 : i32, i32
  }
  func.func @transform_4(%arg0: i32, %arg1: i32) -> (i32, i32, i32, i32) {
    %c0_i32 = arith.constant 0 : i32
    %c0_i32_0 = arith.constant 0 : i32
    %c0_i32_1 = arith.constant 0 : i32
    return %arg0, %arg1, %c0_i32, %c0_i32_0 : i32, i32, i32, i32
  }
  func.func @transform_5(%arg0: i32, %arg1: i32) -> (i32, i32, i32, i32) {
    %c0_i32 = arith.constant 0 : i32
    %c0_i32_0 = arith.constant 0 : i32
    %c0_i32_1 = arith.constant 0 : i32
    return %arg0, %arg1, %c0_i32, %c0_i32_0 : i32, i32, i32, i32
  }
}

</mosaic_0001>

<llo_original>
// kernel: residual_block.5
$region0: #{residual_block.5}
  #allocation0 [shape = 'u32[]', space=smem, size = 0x4, offset = 0x4, fixed_abs, tag = 'smem constant byte address 0x4 - core index']
  #allocation1 [shape = 'u32[144,128]{1,0:T(1,128)}', space=vmem, size = 0x12000, scoped, tag = 'internal scratch']
  %s0 = inlined_call_operand.vmem [shape: f32[2,16,16,128], index: 0, kind: input, shape index: {}]
  %s1 = inlined_call_operand.vmem [shape: f32[2,16,16,128], index: 1, kind: input, shape index: {}]
  %s2 = inlined_call_operand.vmem [shape: f32[1,128], index: 2, kind: input, shape index: {}]
  %s3 = inlined_call_operand.vmem [shape: f32[1,128], index: 3, kind: input, shape index: {}]
  %s4 = inlined_call_operand.vmem [shape: f32[2,16,16,128], index: 4, kind: output, shape index: {}]
  %s5 = sld [smem:[#allocation0]]
  $region49: #{residual_block.5} parent=0
    _
  %s7 = ssub.s32 1, %s5
  %s8 = scalar_select 0, %s7, %s5
  loop: start=0, step=1, limit=6
  $region2: #{residual_block.5} parent=0 // loop_pre_header
    _
  $region3: #{residual_block.5} parent=0 // loop_header
    %s10 = sphi 0, %s14
    %p11 = scmp.ge.s32.totalorder %s10, 6
    %s17 = sphi 0, %s29
    %s18 = sphi 0, %s25
    %s19 = sphi 0, %s17
    %s20 = sphi 0, %s18
    %s21 = sphi 0, %s19
    %s22 = sphi 0, %s20
    %s34 = sphi 0, %s36
    %s37 = sphi 0, %s34
    %s38 = sphi 0, %s37
    %s54 = sphi 0, %s38
    %s62 = sphi 0, %s64
    %s65 = sphi 0, %s62
    %s66 = sphi 0, %s65
    %s82 = sphi 0, %s66
    %s86 = sphi 0, %s86
    %s88 = sphi 0, %s86
    %s89 = sphi 0, %s88
    %s103 = sphi 0, %s89
    %s107 = sphi 0, %s107
    %s109 = sphi 0, %s107
    %s110 = sphi 0, %s109
    %s124 = sphi 0, %s110
    %s132 = sphi 0, %s134
    %s135 = sphi 0, %s132
    %s136 = sphi 0, %s135
    %s152 = sphi 0, %s136
  $region4: #{residual_block.5} parent=0 // loop_header_branch
    %13 = sbr.rel (%p11) target = $region8
  $region5: #{residual_block.5} parent=0 // loop_body
    %s15 = ssub.s32 %s10, 1
    %s16 = ssub.s32 %s10, 2
    %s23 = sadd.s32 1, %s18
    %p24 = scmp.ge.s32.totalorder %s23, 2
    %s25 = scalar_select %p24, 0, %s23
    %s26 = sadd.s32 1, %s17
    %s27 = scalar_select %p24, %s26, %s17
    %p28 = scmp.ge.s32.totalorder %s27, 2
    %s29 = scalar_select %p28, 0, %s27
    %s30 = ssub.s32 %s17, %s29
    %s31 = ssub.s32 %s18, %s25
    %s32 = sor.u32 %s30, %s31
    %p33 = scmp.eq.s32.totalorder %s32, 0
    %s35 = sadd.s32 %s34, 1
    %s36 = scalar_select %p33, %s34, %s35
    %p39 = pneg %p33
    %p40 = scmp.eq.s32.totalorder %s10, 3
    %p41 = por %p39, %p40
    %p42 = scmp.ne.s32.totalorder %s34, %s37
    %p43 = scmp.eq.s32.totalorder %s10, 0
    %p44 = por %p42, %p43
    %p45 = scmp.ne.s32.totalorder %s34, %s37
    %p46 = scmp.eq.s32.totalorder %s15, 3
    %p47 = por %p45, %p46
    %p48 = scmp.ne.s32.totalorder %s37, %s38
    %p49 = scmp.eq.s32.totalorder %s15, 0
    %p50 = por %p48, %p49
    %p51 = scmp.ne.s32.totalorder %s37, %s38
    %p52 = scmp.eq.s32.totalorder %s16, 3
    %p53 = por %p51, %p52
    %p55 = scmp.ne.s32.totalorder %s38, %s54
    %p56 = scmp.eq.s32.totalorder %s16, 0
    %p57 = por %p55, %p56
    %s58 = ssub.s32 %s17, %s29
    %s59 = ssub.s32 %s18, %s25
    %s60 = sor.u32 %s58, %s59
    %p61 = scmp.eq.s32.totalorder %s60, 0
    %s63 = sadd.s32 %s62, 1
    %s64 = scalar_select %p61, %s62, %s63
    %p67 = pneg %p61
    %p68 = scmp.eq.s32.totalorder %s10, 3
    %p69 = por %p67, %p68
    %p70 = scmp.ne.s32.totalorder %s62, %s65
    %p71 = scmp.eq.s32.totalorder %s10, 0
    %p72 = por %p70, %p71
    %p73 = scmp.ne.s32.totalorder %s62, %s65
    %p74 = scmp.eq.s32.totalorder %s15, 3
    %p75 = por %p73, %p74
    %p76 = scmp.ne.s32.totalorder %s65, %s66
    %p77 = scmp.eq.s32.totalorder %s15, 0
    %p78 = por %p76, %p77
    %p79 = scmp.ne.s32.totalorder %s65, %s66
    %p80 = scmp.eq.s32.totalorder %s16, 3
    %p81 = por %p79, %p80
    %p83 = scmp.ne.s32.totalorder %s66, %s82
    %p84 = scmp.eq.s32.totalorder %s16, 0
    %p85 = por %p83, %p84
    %s87 = sadd.s32 %s86, 1
    %p90 = scmp.eq.s32.totalorder %s10, 3
    %p91 = scmp.ne.s32.totalorder %s86, %s88
    %p92 = scmp.eq.s32.totalorder %s10, 0
    %p93 = por %p91, %p92
    %p94 = scmp.ne.s32.totalorder %s86, %s88
    %p95 = scmp.eq.s32.totalorder %s15, 3
    %p96 = por %p94, %p95
    %p97 = scmp.ne.s32.totalorder %s88, %s89
    %p98 = scmp.eq.s32.totalorder %s15, 0
    %p99 = por %p97, %p98
    %p100 = scmp.ne.s32.totalorder %s88, %s89
    %p101 = scmp.eq.s32.totalorder %s16, 3
    %p102 = por %p100, %p101
    %p104 = scmp.ne.s32.totalorder %s89, %s103
    %p105 = scmp.eq.s32.totalorder %s16, 0
    %p106 = por %p104, %p105
    %s108 = sadd.s32 %s107, 1
    %p111 = scmp.eq.s32.totalorder %s10, 3
    %p112 = scmp.ne.s32.totalorder %s107, %s109
    %p113 = scmp.eq.s32.totalorder %s10, 0
    %p114 = por %p112, %p113
    %p115 = scmp.ne.s32.totalorder %s107, %s109
    %p116 = scmp.eq.s32.totalorder %s15, 3
    %p117 = por %p115, %p116
    %p118 = scmp.ne.s32.totalorder %s109, %s110
    %p119 = scmp.eq.s32.totalorder %s15, 0
    %p120 = por %p118, %p119
    %p121 = scmp.ne.s32.totalorder %s109, %s110
    %p122 = scmp.eq.s32.totalorder %s16, 3
    %p123 = por %p121, %p122
    %p125 = scmp.ne.s32.totalorder %s110, %s124
    %p126 = scmp.eq.s32.totalorder %s16, 0
    %p127 = por %p125, %p126
    %s128 = ssub.s32 %s17, %s29
    %s129 = ssub.s32 %s18, %s25
    %s130 = sor.u32 %s128, %s129
    %p131 = scmp.eq.s32.totalorder %s130, 0
    %s133 = sadd.s32 %s132, 1
    %s134 = scalar_select %p131, %s132, %s133
    %p137 = pneg %p131
    %p138 = scmp.eq.s32.totalorder %s10, 3
    %p139 = por %p137, %p138
    %p140 = scmp.ne.s32.totalorder %s132, %s135
    %p141 = scmp.eq.s32.totalorder %s10, 0
    %p142 = por %p140, %p141
    %p143 = scmp.ne.s32.totalorder %s132, %s135
    %p144 = scmp.eq.s32.totalorder %s15, 3
    %p145 = por %p143, %p144
    %p146 = scmp.ne.s32.totalorder %s135, %s136
    %p147 = scmp.eq.s32.totalorder %s15, 0
    %p148 = por %p146, %p147
    %p149 = scmp.ne.s32.totalorder %s135, %s136
    %p150 = scmp.eq.s32.totalorder %s16, 3
    %p151 = por %p149, %p150
    %p153 = scmp.ne.s32.totalorder %s136, %s152
    %p154 = scmp.eq.s32.totalorder %s16, 0
    %p155 = por %p153, %p154
    %p156 = scmp.le.s32.totalorder 1, %s10
    %p157 = scmp.lt.s32.totalorder %s10, 5
    %p158 = pnand %p156, %p157
    %p159 = pneg %p158
    // Predicated region
    $region9: #{residual_block.5} parent=5 // pred_check
      _
    $region10: #{residual_block.5} parent=5 // pred_check_branch
      %161 = sbr.rel (%p158) target = $region12
    $region11: #{residual_block.5} parent=5 // pred_region
      %s162 = ssub.s32 %s10, 1
      // Predicated region
      $region13: #{residual_block.5} parent=11 // pred_check
        %p163 = pneg %p99
      $region14: #{residual_block.5} parent=11 // pred_check_branch
        %165 = sbr.rel (%p163) target = $region16
      $region15: #{residual_block.5} parent=11 // pred_region
        _
      $region16: #{residual_block.5} parent=11 // pred_fallthru
        _
      // Predicated region
      $region17: #{residual_block.5} parent=11 // pred_check
        %p166 = pneg %p120
      $region18: #{residual_block.5} parent=11 // pred_check_branch
        %168 = sbr.rel (%p166) target = $region20
      $region19: #{residual_block.5} parent=11 // pred_region
        _
      $region20: #{residual_block.5} parent=11 // pred_fallthru
        _
    $region12: #{residual_block.5} parent=5 // pred_fallthru
      _
    %p169 = scmp.lt.s32.totalorder %s10, 4
    // Predicated region
    $region21: #{residual_block.5} parent=5 // pred_check
      %p170 = pneg %p169
    $region22: #{residual_block.5} parent=5 // pred_check_branch
      %172 = sbr.rel (%p170) target = $region24
    $region23: #{residual_block.5} parent=5 // pred_region
      // Predicated region
      $region25: #{residual_block.5} parent=23 // pred_check
        %p173 = pneg %p44
      $region26: #{residual_block.5} parent=23 // pred_check_branch
        %175 = sbr.rel (%p173) target = $region28
      $region27: #{residual_block.5} parent=23 // pred_region
        %s176 = smul.u32 8, %s18
        %p177 = scmp.lt.s32.totalorder %s17, 1
        %s178 = scalar_select %p177, %s17, 1
        %p179 = scmp.lt.s32.totalorder %s176, 15
        %s180 = scalar_select %p179, %s176, 15
        %s181 = smul.addr %s180, 2
        %s182 = smul.addr %s178, 32
        %s183 = sadd.s32 %s181, %s182
        %s184 = smul.addr %s183, 8
        %s185 = scalar_lea.vmem %s0, %s184
        %s186 = smul.u32 8, %s18
      $region28: #{residual_block.5} parent=23 // pred_fallthru
        _
      // Predicated region
      $region29: #{residual_block.5} parent=23 // pred_check
        %p187 = pneg %p72
      $region30: #{residual_block.5} parent=23 // pred_check_branch
        %189 = sbr.rel (%p187) target = $region32
      $region31: #{residual_block.5} parent=23 // pred_region
        %s190 = smul.u32 8, %s18
        %p191 = scmp.lt.s32.totalorder %s17, 1
        %s192 = scalar_select %p191, %s17, 1
        %p193 = scmp.lt.s32.totalorder %s190, 15
        %s194 = scalar_select %p193, %s190, 15
        %s195 = smul.addr %s194, 2
        %s196 = smul.addr %s192, 32
        %s197 = sadd.s32 %s195, %s196
        %s198 = smul.addr %s197, 8
        %s199 = scalar_lea.vmem %s1, %s198
        %s200 = smul.u32 8, %s18
      $region32: #{residual_block.5} parent=23 // pred_fallthru
        _
    $region24: #{residual_block.5} parent=5 // pred_fallthru
      _
    %p201 = scmp.le.s32.totalorder 1, %s10
    %p202 = scmp.lt.s32.totalorder %s10, 5
    %p203 = pnand %p201, %p202
    %p204 = pneg %p203
    // Predicated region
    $region33: #{residual_block.5} parent=5 // pred_check
      _
    $region34: #{residual_block.5} parent=5 // pred_check_branch
      %206 = sbr.rel (%p203) target = $region36
    $region35: #{residual_block.5} parent=5 // pred_region
      %s207 = ssub.s32 %s10, 1
      %s208 = smul.u32 8, %s20
      %p209 = scmp.lt.s32.totalorder %s19, 1
      %s210 = scalar_select %p209, %s19, 1
      %p211 = scmp.lt.s32.totalorder %s208, 15
      %s212 = scalar_select %p211, %s208, 15
      %s213 = smul.addr %s212, 2
      %s214 = smul.addr %s210, 32
      %s215 = sadd.s32 %s213, %s214
      %s216 = smul.addr %s215, 8
      %s217 = scalar_lea.vmem %s0, %s216
      %p218 = pneg %p50
      %p219 = pneg %p47
      %s220 = smul.u32 8, %s20
      %p221 = scmp.lt.s32.totalorder %s19, 1
      %s222 = scalar_select %p221, %s19, 1
      %p223 = scmp.lt.s32.totalorder %s220, 15
      %s224 = scalar_select %p223, %s220, 15
      %s225 = smul.addr %s224, 2
      %s226 = smul.addr %s222, 32
      %s227 = sadd.s32 %s225, %s226
      %s228 = smul.addr %s227, 8
      %s229 = scalar_lea.vmem %s1, %s228
      %p230 = pneg %p78
      %p231 = pneg %p75
      %p232 = pneg %p99
      %p233 = pneg %p96
      %p234 = pneg %p120
      %p235 = pneg %p117
      %p236 = pneg %p148
      %p237 = pneg %p145
      %s238 = smul.u32 8, %s20
      %p239 = scmp.lt.s32.totalorder %s19, 1
      %s240 = scalar_select %p239, %s19, 1
      %p241 = scmp.lt.s32.totalorder %s238, 15
      %s242 = scalar_select %p241, %s238, 15
      %s243 = smul.addr %s242, 2
      %s244 = smul.addr %s240, 32
      %s245 = sadd.s32 %s243, %s244
      %s246 = smul.addr %s245, 8
      %s247 = scalar_lea.vmem %s4, %s246
      %s248 = smul.u32 8, %s20
      %p249 = scmp.lt.s32.totalorder %s19, 1
      %s250 = scalar_select %p249, %s19, 1
      %p251 = scmp.lt.s32.totalorder %s248, 15
      %s252 = scalar_select %p251, %s248, 15
      %s253 = smul.addr %s252, 2
      %s254 = smul.addr %s250, 32
      %s255 = sadd.s32 %s253, %s254
      %s256 = smul.addr %s255, 8
      %s257 = scalar_lea.vmem %s0, %s256
      %s258 = smul.u32 8, %s20
      %s259 = smul.u32 8, %s20
      %p260 = scmp.lt.s32.totalorder %s19, 1
      %s261 = scalar_select %p260, %s19, 1
      %p262 = scmp.lt.s32.totalorder %s259, 15
      %s263 = scalar_select %p262, %s259, 15
      %s264 = smul.addr %s263, 2
      %s265 = smul.addr %s261, 32
      %s266 = sadd.s32 %s264, %s265
      %s267 = smul.addr %s266, 8
      %s268 = scalar_lea.vmem %s1, %s267
      %s269 = smul.u32 8, %s20
      %s270 = smul.u32 8, %s20
      %p271 = scmp.lt.s32.totalorder %s19, 1
      %s272 = scalar_select %p271, %s19, 1
      %p273 = scmp.lt.s32.totalorder %s270, 15
      %s274 = scalar_select %p273, %s270, 15
      %s275 = smul.addr %s274, 2
      %s276 = smul.addr %s272, 32
      %s277 = sadd.s32 %s275, %s276
      %s278 = smul.addr %s277, 8
      %s279 = scalar_lea.vmem %s4, %s278
      %s280 = smul.u32 8, %s20
      %v281 = vld [vmem:[%s268] sm:$0xff]
      %v282 = vld [vmem:[%s268 + $0x8] sm:$0xff]
      %v283 = vld [vmem:[%s268 + $0x10] sm:$0xff]
      %v284 = vld [vmem:[%s268 + $0x18] sm:$0xff]
      %v285 = vld [vmem:[%s268 + $0x20] sm:$0xff]
      %v286 = vld [vmem:[%s268 + $0x28] sm:$0xff]
      %v287 = vld [vmem:[%s268 + $0x30] sm:$0xff]
      %v288 = vld [vmem:[%s268 + $0x38] sm:$0xff]
      %v289 = vld [vmem:[%s268 + $0x40] sm:$0xff]
      %v290 = vld [vmem:[%s268 + $0x48] sm:$0xff]
      %v291 = vld [vmem:[%s268 + $0x50] sm:$0xff]
      %v292 = vld [vmem:[%s268 + $0x58] sm:$0xff]
      %v293 = vld [vmem:[%s268 + $0x60] sm:$0xff]
      %v294 = vld [vmem:[%s268 + $0x68] sm:$0xff]
      %v295 = vld [vmem:[%s268 + $0x70] sm:$0xff]
      %v296 = vld [vmem:[%s268 + $0x78] sm:$0xff]
      %v297 = vld [vmem:[%s2] sm:$0x1]
      %v299 = vlaneseq
      %v300 = vshrl.u32 %v299, 7
      %v301 = vsub.s32 0, %v300
      %v302 = vrot.slane %v297, %v301
      %v304 = vmul.f32 %v281, %v302
      %v305 = vmul.f32 %v282, %v302
      %v306 = vmul.f32 %v283, %v302
      %v307 = vmul.f32 %v284, %v302
      %v308 = vmul.f32 %v285, %v302
      %v309 = vmul.f32 %v286, %v302
      %v310 = vmul.f32 %v287, %v302
      %v311 = vmul.f32 %v288, %v302
      %v312 = vmul.f32 %v289, %v302
      %v313 = vmul.f32 %v290, %v302
      %v314 = vmul.f32 %v291, %v302
      %v315 = vmul.f32 %v292, %v302
      %v316 = vmul.f32 %v293, %v302
      %v317 = vmul.f32 %v294, %v302
      %v318 = vmul.f32 %v295, %v302
      %v319 = vmul.f32 %v296, %v302
      %v320 = vld [vmem:[%s3] sm:$0x1]
      %v322 = vlaneseq
      %v323 = vshrl.u32 %v322, 7
      %v324 = vsub.s32 0, %v323
      %v325 = vrot.slane %v320, %v324
      %v327 = vadd.f32 %v304, %v325
      %v328 = vadd.f32 %v305, %v325
      %v329 = vadd.f32 %v306, %v325
      %v330 = vadd.f32 %v307, %v325
      %v331 = vadd.f32 %v308, %v325
      %v332 = vadd.f32 %v309, %v325
      %v333 = vadd.f32 %v310, %v325
      %v334 = vadd.f32 %v311, %v325
      %v335 = vadd.f32 %v312, %v325
      %v336 = vadd.f32 %v313, %v325
      %v337 = vadd.f32 %v314, %v325
      %v338 = vadd.f32 %v315, %v325
      %v339 = vadd.f32 %v316, %v325
      %v340 = vadd.f32 %v317, %v325
      %v341 = vadd.f32 %v318, %v325
      %v342 = vadd.f32 %v319, %v325
      %v343 = vld [vmem:[%s257] sm:$0xff]
      %v344 = vld [vmem:[%s257 + $0x8] sm:$0xff]
      %v345 = vld [vmem:[%s257 + $0x10] sm:$0xff]
      %v346 = vld [vmem:[%s257 + $0x18] sm:$0xff]
      %v347 = vld [vmem:[%s257 + $0x20] sm:$0xff]
      %v348 = vld [vmem:[%s257 + $0x28] sm:$0xff]
      %v349 = vld [vmem:[%s257 + $0x30] sm:$0xff]
      %v350 = vld [vmem:[%s257 + $0x38] sm:$0xff]
      %v351 = vld [vmem:[%s257 + $0x40] sm:$0xff]
      %v352 = vld [vmem:[%s257 + $0x48] sm:$0xff]
      %v353 = vld [vmem:[%s257 + $0x50] sm:$0xff]
      %v354 = vld [vmem:[%s257 + $0x58] sm:$0xff]
      %v355 = vld [vmem:[%s257 + $0x60] sm:$0xff]
      %v356 = vld [vmem:[%s257 + $0x68] sm:$0xff]
      %v357 = vld [vmem:[%s257 + $0x70] sm:$0xff]
      %v358 = vld [vmem:[%s257 + $0x78] sm:$0xff]
      %v359 = vmul.f32 %v327, 0.2
      %v360 = vmul.f32 %v328, 0.2
      %v361 = vmul.f32 %v329, 0.2
      %v362 = vmul.f32 %v330, 0.2
      %v363 = vmul.f32 %v331, 0.2
      %v364 = vmul.f32 %v332, 0.2
      %v365 = vmul.f32 %v333, 0.2
      %v366 = vmul.f32 %v334, 0.2
      %v367 = vmul.f32 %v335, 0.2
      %v368 = vmul.f32 %v336, 0.2
      %v369 = vmul.f32 %v337, 0.2
      %v370 = vmul.f32 %v338, 0.2
      %v371 = vmul.f32 %v339, 0.2
      %v372 = vmul.f32 %v340, 0.2
      %v373 = vmul.f32 %v341, 0.2
      %v374 = vmul.f32 %v342, 0.2
      %v375 = vmax.f32 %v327, %v359
      %v376 = vmax.f32 %v328, %v360
      %v377 = vmax.f32 %v329, %v361
      %v378 = vmax.f32 %v330, %v362
      %v379 = vmax.f32 %v331, %v363
      %v380 = vmax.f32 %v332, %v364
      %v381 = vmax.f32 %v333, %v365
      %v382 = vmax.f32 %v334, %v366
      %v383 = vmax.f32 %v335, %v367
      %v384 = vmax.f32 %v336, %v368
      %v385 = vmax.f32 %v337, %v369
      %v386 = vmax.f32 %v338, %v370
      %v387 = vmax.f32 %v339, %v371
      %v388 = vmax.f32 %v340, %v372
      %v389 = vmax.f32 %v341, %v373
      %v390 = vmax.f32 %v342, %v374
      %v391 = vadd.f32 %v343, %v375
      %v392 = vadd.f32 %v344, %v376
      %v393 = vadd.f32 %v345, %v377
      %v394 = vadd.f32 %v346, %v378
      %v395 = vadd.f32 %v347, %v379
      %v396 = vadd.f32 %v348, %v380
      %v397 = vadd.f32 %v349, %v381
      %v398 = vadd.f32 %v350, %v382
      %v399 = vadd.f32 %v351, %v383
      %v400 = vadd.f32 %v352, %v384
      %v401 = vadd.f32 %v353, %v385
      %v402 = vadd.f32 %v354, %v386
      %v403 = vadd.f32 %v355, %v387
      %v404 = vadd.f32 %v356, %v388
      %v405 = vadd.f32 %v357, %v389
      %v406 = vadd.f32 %v358, %v390
      %407 = vst [vmem:[%s279] sm:$0xff] %v391
      %408 = vst [vmem:[%s279 + $0x8] sm:$0xff] %v392
      %409 = vst [vmem:[%s279 + $0x10] sm:$0xff] %v393
      %410 = vst [vmem:[%s279 + $0x18] sm:$0xff] %v394
      %411 = vst [vmem:[%s279 + $0x20] sm:$0xff] %v395
      %412 = vst [vmem:[%s279 + $0x28] sm:$0xff] %v396
      %413 = vst [vmem:[%s279 + $0x30] sm:$0xff] %v397
      %414 = vst [vmem:[%s279 + $0x38] sm:$0xff] %v398
      %415 = vst [vmem:[%s279 + $0x40] sm:$0xff] %v399
      %416 = vst [vmem:[%s279 + $0x48] sm:$0xff] %v400
      %417 = vst [vmem:[%s279 + $0x50] sm:$0xff] %v401
      %418 = vst [vmem:[%s279 + $0x58] sm:$0xff] %v402
      %419 = vst [vmem:[%s279 + $0x60] sm:$0xff] %v403
      %420 = vst [vmem:[%s279 + $0x68] sm:$0xff] %v404
      %421 = vst [vmem:[%s279 + $0x70] sm:$0xff] %v405
      %422 = vst [vmem:[%s279 + $0x78] sm:$0xff] %v406
      %s423 = smul.u32 8, %s20
      %p424 = scmp.lt.s32.totalorder %s19, 1
      %s425 = scalar_select %p424, %s19, 1
      %p426 = scmp.lt.s32.totalorder %s423, 15
      %s427 = scalar_select %p426, %s423, 15
      %s428 = smul.addr %s427, 2
      %s429 = smul.addr %s425, 32
      %s430 = sadd.s32 %s428, %s429
      %s431 = smul.addr %s430, 8
      %s432 = scalar_lea.vmem %s4, %s431
      // Predicated region
      $region37: #{residual_block.5} parent=35 // pred_check
        %p433 = pneg %p145
      $region38: #{residual_block.5} parent=35 // pred_check_branch
        %435 = sbr.rel (%p433) target = $region40
      $region39: #{residual_block.5} parent=35 // pred_region
        %s436 = smul.u32 8, %s20
      $region40: #{residual_block.5} parent=35 // pred_fallthru
        _
    $region36: #{residual_block.5} parent=5 // pred_fallthru
      _
    %p437 = scmp.le.s32.totalorder 2, %s10
    // Predicated region
    $region41: #{residual_block.5} parent=5 // pred_check
      %p438 = pneg %p437
    $region42: #{residual_block.5} parent=5 // pred_check_branch
      %440 = sbr.rel (%p438) target = $region44
    $region43: #{residual_block.5} parent=5 // pred_region
      %s441 = ssub.s32 %s10, 2
      // Predicated region
      $region45: #{residual_block.5} parent=43 // pred_check
        %p442 = pneg %p151
      $region46: #{residual_block.5} parent=43 // pred_check_branch
        %444 = sbr.rel (%p442) target = $region48
      $region47: #{residual_block.5} parent=43 // pred_region
        %s445 = smul.u32 8, %s22
        %p446 = scmp.lt.s32.totalorder %s21, 1
        %s447 = scalar_select %p446, %s21, 1
        %p448 = scmp.lt.s32.totalorder %s445, 15
        %s449 = scalar_select %p448, %s445, 15
        %s450 = smul.addr %s449, 2
        %s451 = smul.addr %s447, 32
        %s452 = sadd.s32 %s450, %s451
        %s453 = smul.addr %s452, 8
        %s454 = scalar_lea.vmem %s4, %s453
      $region48: #{residual_block.5} parent=43 // pred_fallthru
        _
    $region44: #{residual_block.5} parent=5 // pred_fallthru
      _
  $region6: #{residual_block.5} parent=0 // loop_footer
    %s14 = sadd.s32 1, %s10
  $region7: #{residual_block.5} parent=0 // loop_footer_branch
    %9 = sbr.rel target = $region3
  $region8: #{residual_block.5} parent=0 // loop_exit
    _

// kernel: residual_block.3
$region0: #{residual_block.3}
  #allocation0 [shape = 'u32[]', space=smem, size = 0x4, offset = 0x4, fixed_abs, tag = 'smem constant byte address 0x4 - core index']
  #allocation1 [shape = 'u32[144,128]{1,0:T(1,128)}', space=vmem, size = 0x12000, scoped, tag = 'internal scratch']
  #allocation2 [shape = 'f32[12,32,128]{2,1,0:T(8,128)}', space=vmem, size = 0x30000, scoped, tag = 'scratch operand']
  #allocation3 [shape = 's32[1]{0}', space=sflag, size = 0x4, scoped, tag = 'scratch operand']
  #allocation4 [shape = 's32[]', space=sflag, size = 0x4, offset = 0, fixed_abs, tag = 'sflag constant byte address 0x0 - dummy sync flag']
  %s0 = inlined_call_operand.vmem [shape: f32[2,20,32,128], index: 0, kind: input, shape index: {}]
  %s1 = inlined_call_operand.vmem [shape: bf16[3,384,128], index: 1, kind: input, shape index: {}]
  %s2 = inlined_call_operand.vmem [shape: f32[2,2,10,32,128], index: 2, kind: output, shape index: {0}]
  %s3 = inlined_call_operand.vmem [shape: f32[2,2,2,128], index: 3, kind: output, shape index: {1}]
  %4 = xla_tuple %s2, %s3
  %s5 = sld [smem:[#allocation0]]
  $region79: #{residual_block.3} parent=0
    _
  %s7 = ssub.s32 1, %s5
  %s8 = scalar_select 0, %s7, %s5
  loop: start=0, step=1, limit=6
  $region2: #{residual_block.3} parent=0 // loop_pre_header
    _
  $region3: #{residual_block.3} parent=0 // loop_header
    %s10 = sphi 0, %s14
    %p11 = scmp.ge.s32.totalorder %s10, 6
    %s17 = sphi 0, %s29
    %s18 = sphi 0, %s25
    %s19 = sphi 0, %s17
    %s20 = sphi 0, %s18
    %s21 = sphi 0, %s19
    %s22 = sphi 0, %s20
    %s30 = sphi 0, %s30
    %s32 = sphi 0, %s30
    %s33 = sphi 0, %s32
    %s47 = sphi 0, %s33
    %s55 = sphi 0, %s57
    %s58 = sphi 0, %s55
    %s59 = sphi 0, %s58
    %s75 = sphi 0, %s59
    %s83 = sphi 0, %s85
    %s86 = sphi 0, %s83
    %s87 = sphi 0, %s86
    %s103 = sphi 0, %s87
  $region4: #{residual_block.3} parent=0 // loop_header_branch
    %13 = sbr.rel (%p11) target = $region8
  $region5: #{residual_block.3} parent=0 // loop_body
    %s15 = ssub.s32 %s10, 1
    %s16 = ssub.s32 %s10, 2
    %s23 = sadd.s32 1, %s18
    %p24 = scmp.ge.s32.totalorder %s23, 2
    %s25 = scalar_select %p24, 0, %s23
    %s26 = sadd.s32 1, %s17
    %s27 = scalar_select %p24, %s26, %s17
    %p28 = scmp.ge.s32.totalorder %s27, 2
    %s29 = scalar_select %p28, 0, %s27
    %s31 = sadd.s32 %s30, 1
    %p34 = scmp.eq.s32.totalorder %s10, 3
    %p35 = scmp.ne.s32.totalorder %s30, %s32
    %p36 = scmp.eq.s32.totalorder %s10, 0
    %p37 = por %p35, %p36
    %p38 = scmp.ne.s32.totalorder %s30, %s32
    %p39 = scmp.eq.s32.totalorder %s15, 3
    %p40 = por %p38, %p39
    %p41 = scmp.ne.s32.totalorder %s32, %s33
    %p42 = scmp.eq.s32.totalorder %s15, 0
    %p43 = por %p41, %p42
    %p44 = scmp.ne.s32.totalorder %s32, %s33
    %p45 = scmp.eq.s32.totalorder %s16, 3
    %p46 = por %p44, %p45
    %p48 = scmp.ne.s32.totalorder %s33, %s47
    %p49 = scmp.eq.s32.totalorder %s16, 0
    %p50 = por %p48, %p49
    %s51 = ssub.s32 %s17, %s29
    %s52 = ssub.s32 %s18, %s25
    %s53 = sor.u32 %s51, %s52
    %p54 = scmp.eq.s32.totalorder %s53, 0
    %s56 = sadd.s32 %s55, 1
    %s57 = scalar_select %p54, %s55, %s56
    %p60 = pneg %p54
    %p61 = scmp.eq.s32.totalorder %s10, 3
    %p62 = por %p60, %p61
    %p63 = scmp.ne.s32.totalorder %s55, %s58
    %p64 = scmp.eq.s32.totalorder %s10, 0
    %p65 = por %p63, %p64
    %p66 = scmp.ne.s32.totalorder %s55, %s58
    %p67 = scmp.eq.s32.totalorder %s15, 3
    %p68 = por %p66, %p67
    %p69 = scmp.ne.s32.totalorder %s58, %s59
    %p70 = scmp.eq.s32.totalorder %s15, 0
    %p71 = por %p69, %p70
    %p72 = scmp.ne.s32.totalorder %s58, %s59
    %p73 = scmp.eq.s32.totalorder %s16, 3
    %p74 = por %p72, %p73
    %p76 = scmp.ne.s32.totalorder %s59, %s75
    %p77 = scmp.eq.s32.totalorder %s16, 0
    %p78 = por %p76, %p77
    %s79 = ssub.s32 %s17, %s29
    %s80 = ssub.s32 %s18, %s25
    %s81 = sor.u32 %s79, %s80
    %p82 = scmp.eq.s32.totalorder %s81, 0
    %s84 = sadd.s32 %s83, 1
    %s85 = scalar_select %p82, %s83, %s84
    %p88 = pneg %p82
    %p89 = scmp.eq.s32.totalorder %s10, 3
    %p90 = por %p88, %p89
    %p91 = scmp.ne.s32.totalorder %s83, %s86
    %p92 = scmp.eq.s32.totalorder %s10, 0
    %p93 = por %p91, %p92
    %p94 = scmp.ne.s32.totalorder %s83, %s86
    %p95 = scmp.eq.s32.totalorder %s15, 3
    %p96 = por %p94, %p95
    %p97 = scmp.ne.s32.totalorder %s86, %s87
    %p98 = scmp.eq.s32.totalorder %s15, 0
    %p99 = por %p97, %p98
    %p100 = scmp.ne.s32.totalorder %s86, %s87
    %p101 = scmp.eq.s32.totalorder %s16, 3
    %p102 = por %p100, %p101
    %p104 = scmp.ne.s32.totalorder %s87, %s103
    %p105 = scmp.eq.s32.totalorder %s16, 0
    %p106 = por %p104, %p105
    %p107 = scmp.le.s32.totalorder 1, %s10
    %p108 = scmp.lt.s32.totalorder %s10, 5
    %p109 = pnand %p107, %p108
    %p110 = pneg %p109
    // Predicated region
    $region9: #{residual_block.3} parent=5 // pred_check
      _
    $region10: #{residual_block.3} parent=5 // pred_check_branch
      %112 = sbr.rel (%p109) target = $region12
    $region11: #{residual_block.3} parent=5 // pred_region
      %s113 = ssub.s32 %s10, 1
      // Predicated region
      $region13: #{residual_block.3} parent=11 // pred_check
        %p114 = pneg %p43
      $region14: #{residual_block.3} parent=11 // pred_check_branch
        %116 = sbr.rel (%p114) target = $region16
      $region15: #{residual_block.3} parent=11 // pred_region
        _
      $region16: #{residual_block.3} parent=11 // pred_fallthru
        _
    $region12: #{residual_block.3} parent=5 // pred_fallthru
      _
    %p117 = scmp.lt.s32.totalorder %s10, 4
    // Predicated region
    $region17: #{residual_block.3} parent=5 // pred_check
      %p118 = pneg %p117
    $region18: #{residual_block.3} parent=5 // pred_check_branch
      %120 = sbr.rel (%p118) target = $region20
    $region19: #{residual_block.3} parent=5 // pred_region
      _
    $region20: #{residual_block.3} parent=5 // pred_fallthru
      _
    %p121 = scmp.le.s32.totalorder 1, %s10
    %p122 = scmp.lt.s32.totalorder %s10, 5
    %p123 = pnand %p121, %p122
    %p124 = pneg %p123
    // Predicated region
    $region21: #{residual_block.3} parent=5 // pred_check
      _
    $region22: #{residual_block.3} parent=5 // pred_check_branch
      %126 = sbr.rel (%p123) target = $region24
    $region23: #{residual_block.3} parent=5 // pred_region
      %s127 = ssub.s32 %s10, 1
      %p128 = pneg %p43
      %p129 = pneg %p40
      %p130 = pneg %p71
      %p131 = pneg %p68
      %p132 = scmp.lt.s32.totalorder %s19, 1
      %s133 = scalar_select %p132, %s19, 1
      %p134 = scmp.lt.s32.totalorder %s20, 1
      %s135 = scalar_select %p134, %s20, 1
      %s136 = smul.addr %s135, 40
      %s137 = smul.addr %s133, 80
      %s138 = sadd.s32 %s136, %s137
      %s139 = smul.addr %s138, 8
      %s140 = scalar_lea.vmem %s2, %s139
      %p141 = pneg %p99
      %p142 = pneg %p96
      %p143 = scmp.lt.s32.totalorder %s19, 1
      %s144 = scalar_select %p143, %s19, 1
      %p145 = scmp.lt.s32.totalorder %s20, 1
      %s146 = scalar_select %p145, %s20, 1
      %s147 = smul.addr %s144, 2
      %s148 = sadd.s32 %s146, %s147
      %s149 = smul.addr %s148, 2
      %s150 = scalar_lea.vmem %s3, %s149
      %p151 = scmp.lt.s32.totalorder %s19, 1
      %s152 = scalar_select %p151, %s19, 1
      %p153 = scmp.lt.s32.totalorder %s20, 1
      %s154 = scalar_select %p153, %s20, 1
      %s155 = smul.addr %s154, 40
      %s156 = smul.addr %s152, 80
      %s157 = sadd.s32 %s155, %s156
      %s158 = smul.addr %s157, 8
      %s159 = scalar_lea.vmem %s2, %s158
      %p160 = scmp.lt.s32.totalorder %s19, 1
      %s161 = scalar_select %p160, %s19, 1
      %p162 = scmp.lt.s32.totalorder %s20, 1
      %s163 = scalar_select %p162, %s20, 1
      %s164 = smul.addr %s161, 2
      %s165 = sadd.s32 %s163, %s164
      %s166 = smul.addr %s165, 2
      %s167 = scalar_lea.vmem %s3, %s166
      %s169 = smul.u32 %s20, 8
      %s170 = smul.u32 %s169, 32
      %s171 = smul.u32 %s19, 640
      %s172 = sadd.s32 %s170, %s171
      %s173 = scalar_lea.vmem %s0, %s172
      %p175 = scmp.lt.u32.totalorder 384, 8
      %p176 = pneg %p175
      // Predicated region
      $region25: #{residual_block.3} parent=23 // pred_check
        _
      $region26: #{residual_block.3} parent=23 // pred_check_branch
        %178 = sbr.rel (%p175) target = $region28
      $region27: #{residual_block.3} parent=23 // pred_region
        %s193 = sand.u32 384, 7
        %p194 = scmp.eq.s32.totalorder %s193, 0
        // Predicated region
        $region40: #{residual_block.3} parent=27 // pred_check
          %p195 = pneg %p194
        $region41: #{residual_block.3} parent=27 // pred_check_branch
          %197 = sbr.rel (%p195) target = $region43
        $region42: #{residual_block.3} parent=27 // pred_region
          loop: start=0, step=1, limit=1
          $region44: #{residual_block.3} parent=42 // loop_pre_header
            _
          $region45: #{residual_block.3} parent=42 // loop_header
            %s199 = sphi 0, %s203
            %p200 = scmp.ge.s32.totalorder %s199, 1
            %s204 = sphi %s173, %s173
            %s205 = sphi [#allocation2], [#allocation2]
          $region46: #{residual_block.3} parent=42 // loop_header_branch
            %202 = sbr.rel (%p200) target = $region50
          $region47: #{residual_block.3} parent=42 // loop_body
            %v206 = vld [vmem:[%s204] sm:$0xff]
            %207 = vst [vmem:[%s205] sm:$0xff] %v206
            %v208 = vld [vmem:[%s204 + $0x8] sm:$0xff]
            %209 = vst [vmem:[%s205 + $0x8] sm:$0xff] %v208
            %v210 = vld [vmem:[%s204 + $0x10] sm:$0xff]
            %211 = vst [vmem:[%s205 + $0x10] sm:$0xff] %v210
            %v212 = vld [vmem:[%s204 + $0x18] sm:$0xff]
            %213 = vst [vmem:[%s205 + $0x18] sm:$0xff] %v212
            %v214 = vld [vmem:[%s204 + $0x20] sm:$0xff]
            %215 = vst [vmem:[%s205 + $0x20] sm:$0xff] %v214
            %v216 = vld [vmem:[%s204 + $0x28] sm:$0xff]
            %217 = vst [vmem:[%s205 + $0x28] sm:$0xff] %v216
            %v218 = vld [vmem:[%s204 + $0x30] sm:$0xff]
            %219 = vst [vmem:[%s205 + $0x30] sm:$0xff] %v218
            %v220 = vld [vmem:[%s204 + $0x38] sm:$0xff]
            %221 = vst [vmem:[%s205 + $0x38] sm:$0xff] %v220
            %v222 = vld [vmem:[%s204 + $0x40] sm:$0xff]
            %223 = vst [vmem:[%s205 + $0x40] sm:$0xff] %v222
            %v224 = vld [vmem:[%s204 + $0x48] sm:$0xff]
            %225 = vst [vmem:[%s205 + $0x48] sm:$0xff] %v224
            %v226 = vld [vmem:[%s204 + $0x50] sm:$0xff]
            %227 = vst [vmem:[%s205 + $0x50] sm:$0xff] %v226
            %v228 = vld [vmem:[%s204 + $0x58] sm:$0xff]
            %229 = vst [vmem:[%s205 + $0x58] sm:$0xff] %v228
            %v230 = vld [vmem:[%s204 + $0x60] sm:$0xff]
            %231 = vst [vmem:[%s205 + $0x60] sm:$0xff] %v230
            %v232 = vld [vmem:[%s204 + $0x68] sm:$0xff]
            %233 = vst [vmem:[%s205 + $0x68] sm:$0xff] %v232
            %v234 = vld [vmem:[%s204 + $0x70] sm:$0xff]
            %235 = vst [vmem:[%s205 + $0x70] sm:$0xff] %v234
            %v236 = vld [vmem:[%s204 + $0x78] sm:$0xff]
            %237 = vst [vmem:[%s205 + $0x78] sm:$0xff] %v236
            %v238 = vld [vmem:[%s204 + $0x80] sm:$0xff]
            %239 = vst [vmem:[%s205 + $0x80] sm:$0xff] %v238
            %v240 = vld [vmem:[%s204 + $0x88] sm:$0xff]
            %241 = vst [vmem:[%s205 + $0x88] sm:$0xff] %v240
            %v242 = vld [vmem:[%s204 + $0x90] sm:$0xff]
            %243 = vst [vmem:[%s205 + $0x90] sm:$0xff] %v242
            %v244 = vld [vmem:[%s204 + $0x98] sm:$0xff]
            %245 = vst [vmem:[%s205 + $0x98] sm:$0xff] %v244
            %v246 = vld [vmem:[%s204 + $0xa0] sm:$0xff]
            %247 = vst [vmem:[%s205 + $0xa0] sm:$0xff] %v246
            %v248 = vld [vmem:[%s204 + $0xa8] sm:$0xff]
            %249 = vst [vmem:[%s205 + $0xa8] sm:$0xff] %v248
            %v250 = vld [vmem:[%s204 + $0xb0] sm:$0xff]
            %251 = vst [vmem:[%s205 + $0xb0] sm:$0xff] %v250
            %v252 = vld [vmem:[%s204 + $0xb8] sm:$0xff]
            %253 = vst [vmem:[%s205 + $0xb8] sm:$0xff] %v252
            %v254 = vld [vmem:[%s204 + $0xc0] sm:$0xff]
            %255 = vst [vmem:[%s205 + $0xc0] sm:$0xff] %v254
            %v256 = vld [vmem:[%s204 + $0xc8] sm:$0xff]
            %257 = vst [vmem:[%s205 + $0xc8] sm:$0xff] %v256
            %v258 = vld [vmem:[%s204 + $0xd0] sm:$0xff]
            %259 = vst [vmem:[%s205 + $0xd0] sm:$0xff] %v258
            %v260 = vld [vmem:[%s204 + $0xd8] sm:$0xff]
            %261 = vst [vmem:[%s205 + $0xd8] sm:$0xff] %v260
            %v262 = vld [vmem:[%s204 + $0xe0] sm:$0xff]
            %263 = vst [vmem:[%s205 + $0xe0] sm:$0xff] %v262
            %v264 = vld [vmem:[%s204 + $0xe8] sm:$0xff]
            %265 = vst [vmem:[%s205 + $0xe8] sm:$0xff] %v264
            %v266 = vld [vmem:[%s204 + $0xf0] sm:$0xff]
            %267 = vst [vmem:[%s205 + $0xf0] sm:$0xff] %v266
            %v268 = vld [vmem:[%s204 + $0xf8] sm:$0xff]
            %269 = vst [vmem:[%s205 + $0xf8] sm:$0xff] %v268
            %v270 = vld [vmem:[%s204 + $0x100] sm:$0xff]
            %271 = vst [vmem:[%s205 + $0x100] sm:$0xff] %v270
            %v272 = vld [vmem:[%s204 + $0x108] sm:$0xff]
            %273 = vst [vmem:[%s205 + $0x108] sm:$0xff] %v272
            %v274 = vld [vmem:[%s204 + $0x110] sm:$0xff]
            %275 = vst [vmem:[%s205 + $0x110] sm:$0xff] %v274
            %v276 = vld [vmem:[%s204 + $0x118] sm:$0xff]
            %277 = vst [vmem:[%s205 + $0x118] sm:$0xff] %v276
            %v278 = vld [vmem:[%s204 + $0x120] sm:$0xff]
            %279 = vst [vmem:[%s205 + $0x120] sm:$0xff] %v278
            %v280 = vld [vmem:[%s204 + $0x128] sm:$0xff]
            %281 = vst [vmem:[%s205 + $0x128] sm:$0xff] %v280
            %v282 = vld [vmem:[%s204 + $0x130] sm:$0xff]
            %283 = vst [vmem:[%s205 + $0x130] sm:$0xff] %v282
            %v284 = vld [vmem:[%s204 + $0x138] sm:$0xff]
            %285 = vst [vmem:[%s205 + $0x138] sm:$0xff] %v284
            %v286 = vld [vmem:[%s204 + $0x140] sm:$0xff]
            %287 = vst [vmem:[%s205 + $0x140] sm:$0xff] %v286
            %v288 = vld [vmem:[%s204 + $0x148] sm:$0xff]
            %289 = vst [vmem:[%s205 + $0x148] sm:$0xff] %v288
            %v290 = vld [vmem:[%s204 + $0x150] sm:$0xff]
            %291 = vst [vmem:[%s205 + $0x150] sm:$0xff] %v290
            %v292 = vld [vmem:[%s204 + $0x158] sm:$0xff]
            %293 = vst [vmem:[%s205 + $0x158] sm:$0xff] %v292
            %v294 = vld [vmem:[%s204 + $0x160] sm:$0xff]
            %295 = vst [vmem:[%s205 + $0x160] sm:$0xff] %v294
            %v296 = vld [vmem:[%s204 + $0x168] sm:$0xff]
            %297 = vst [vmem:[%s205 + $0x168] sm:$0xff] %v296
            %v298 = vld [vmem:[%s204 + $0x170] sm:$0xff]
            %299 = vst [vmem:[%s205 + $0x170] sm:$0xff] %v298
            %v300 = vld [vmem:[%s204 + $0x178] sm:$0xff]
            %301 = vst [vmem:[%s205 + $0x178] sm:$0xff] %v300
          $region48: #{residual_block.3} parent=42 // loop_footer
            %s203 = sadd.s32 1, %s199
          $region49: #{residual_block.3} parent=42 // loop_footer_branch
            %198 = sbr.rel target = $region45
          $region50: #{residual_block.3} parent=42 // loop_exit
            _
        $region43: #{residual_block.3} parent=27 // pred_fallthru
          _
        %p302 = pneg %p194
        // Predicated region
        $region51: #{residual_block.3} parent=27 // pred_check
          _
        $region52: #{residual_block.3} parent=27 // pred_check_branch
          %304 = sbr.rel (%p194) target = $region54
        $region53: #{residual_block.3} parent=27 // pred_region
          %s305 = sand.u32 384, 7
        $region54: #{residual_block.3} parent=27 // pred_fallthru
          _
      $region28: #{residual_block.3} parent=23 // pred_fallthru
        _
      // Predicated region
      $region29: #{residual_block.3} parent=23 // pred_check
        %p179 = pneg %p175
      $region30: #{residual_block.3} parent=23 // pred_check_branch
        %181 = sbr.rel (%p179) target = $region32
      $region31: #{residual_block.3} parent=23 // pred_region
        %s182 = sshllo.u32 0, 384
        loop: start=0, step=1, limit=1
        $region33: #{residual_block.3} parent=31 // loop_pre_header
          _
        $region34: #{residual_block.3} parent=31 // loop_header
          %s184 = sphi 0, %s188
          %p185 = scmp.ge.s32.totalorder %s184, 1
          %s189 = sphi %s173, %s173
          %s190 = sphi [#allocation2], [#allocation2]
        $region35: #{residual_block.3} parent=31 // loop_header_branch
          %187 = sbr.rel (%p185) target = $region39
        $region36: #{residual_block.3} parent=31 // loop_body
          %v191 = vld [vmem:[%s189] sm:%s182]
          %192 = vst [vmem:[%s190] sm:%s182] %v191
        $region37: #{residual_block.3} parent=31 // loop_footer
          %s188 = sadd.s32 1, %s184
        $region38: #{residual_block.3} parent=31 // loop_footer_branch
          %183 = sbr.rel target = $region34
        $region39: #{residual_block.3} parent=31 // loop_exit
          _
      $region32: #{residual_block.3} parent=23 // pred_fallthru
        _
      // Predicated region
      $region55: #{residual_block.3} parent=23 // pred_check
        _
      $region56: #{residual_block.3} parent=23 // pred_check_branch
        %308 = sbr.rel (0) target = $region58
      $region57: #{residual_block.3} parent=23 // pred_region
        %309 = vsyncadd [#allocation3], 6144
      $region58: #{residual_block.3} parent=23 // pred_fallthru
        _
      %s310 = smul.u32 12, 32
      %s311 = smul.u32 %s310, 1
      %s312 = sshll.u32 %s311, 4
      %313 = dma.done [#allocation3], %s312
      %v314 = vld [vmem:[#allocation2] sm:$0xff]
      %v315 = vld [vmem:[#allocation2 + $0x8] sm:$0xff]
      %v316 = vld [vmem:[#allocation2 + $0x10] sm:$0xff]
      %v317 = vld [vmem:[#allocation2 + $0x18] sm:$0xff]
      %v318 = vld [vmem:[#allocation2 + $0x20] sm:$0xff]
      %v319 = vld [vmem:[#allocation2 + $0x28] sm:$0xff]
      %v320 = vld [vmem:[#allocation2 + $0x30] sm:$0xff]
      %v321 = vld [vmem:[#allocation2 + $0x38] sm:$0xff]
      %v322 = vld [vmem:[#allocation2 + $0x40] sm:$0xff]
      %v323 = vld [vmem:[#allocation2 + $0x48] sm:$0xff]
      %v324 = vld [vmem:[#allocation2 + $0x50] sm:$0xff]
      %v325 = vld [vmem:[#allocation2 + $0x58] sm:$0xff]
      %v326 = vld [vmem:[#allocation2 + $0x60] sm:$0xff]
      %v327 = vld [vmem:[#allocation2 + $0x68] sm:$0xff]
      %v328 = vld [vmem:[#allocation2 + $0x70] sm:$0xff]
      %v329 = vld [vmem:[#allocation2 + $0x78] sm:$0xff]
      %v330 = vld [vmem:[#allocation2 + $0x80] sm:$0xff]
      %v331 = vld [vmem:[#allocation2 + $0x88] sm:$0xff]
      %v332 = vld [vmem:[#allocation2 + $0x90] sm:$0xff]
      %v333 = vld [vmem:[#allocation2 + $0x98] sm:$0xff]
      %v334 = vld [vmem:[#allocation2 + $0xa0] sm:$0xff]
      %v335 = vld [vmem:[#allocation2 + $0xa8] sm:$0xff]
      %v336 = vld [vmem:[#allocation2 + $0xb0] sm:$0xff]
      %v337 = vld [vmem:[#allocation2 + $0xb8] sm:$0xff]
      %v338 = vld [vmem:[#allocation2 + $0xc0] sm:$0xff]
      %v339 = vld [vmem:[#allocation2 + $0xc8] sm:$0xff]
      %v340 = vld [vmem:[#allocation2 + $0xd0] sm:$0xff]
      %v341 = vld [vmem:[#allocation2 + $0xd8] sm:$0xff]
      %v342 = vld [vmem:[#allocation2 + $0xe0] sm:$0xff]
      %v343 = vld [vmem:[#allocation2 + $0xe8] sm:$0xff]
      %v344 = vld [vmem:[#allocation2 + $0xf0] sm:$0xff]
      %v345 = vld [vmem:[#allocation2 + $0xf8] sm:$0xff]
      %v346 = vld [vmem:[#allocation2 + $0x100] sm:$0xff]
      %v347 = vld [vmem:[#allocation2 + $0x108] sm:$0xff]
      %v348 = vld [vmem:[#allocation2 + $0x110] sm:$0xff]
      %v349 = vld [vmem:[#allocation2 + $0x118] sm:$0xff]
      %v350 = vld [vmem:[#allocation2 + $0x120] sm:$0xff]
      %v351 = vld [vmem:[#allocation2 + $0x128] sm:$0xff]
      %v352 = vld [vmem:[#allocation2 + $0x130] sm:$0xff]
      %v353 = vld [vmem:[#allocation2 + $0x138] sm:$0xff]
      %v354 = vld [vmem:[#allocation2 + $0x140] sm:$0xff]
      %v355 = vld [vmem:[#allocation2 + $0x148] sm:$0xff]
      %v356 = vld [vmem:[#allocation2 + $0x150] sm:$0xff]
      %v357 = vld [vmem:[#allocation2 + $0x158] sm:$0xff]
      %v358 = vld [vmem:[#allocation2 + $0x160] sm:$0xff]
      %v359 = vld [vmem:[#allocation2 + $0x168] sm:$0xff]
      %v360 = vld [vmem:[#allocation2 + $0x170] sm:$0xff]
      %v361 = vld [vmem:[#allocation2 + $0x178] sm:$0xff]
      %v374 = vrot.slane %v317, 7
      %v375 = vrot.slane %v321, 7
      %v376 = vrot.slane %v325, 7
      %v377 = vrot.slane %v329, 7
      %v378 = vrot.slane %v333, 7
      %v379 = vrot.slane %v337, 7
      %v380 = vrot.slane %v341, 7
      %v381 = vrot.slane %v345, 7
      %v382 = vrot.slane %v349, 7
      %v383 = vrot.slane %v353, 7
      %v384 = vrot.slane %v357, 7
      %v385 = vrot.slane %v361, 7
      %vm434 = vcmask 1040384
      %v435 = vrot.slane %v314, 7
      %v436 = vrot.slane %v315, 7
      %v437 = vsel %vm434, %v435, %v436
      %v438 = vrot.slane %v316, 7
      %v439 = vsel %vm434, %v436, %v438
      %v440 = vsel %vm434, %v438, %v374
      %v441 = vrot.slane %v318, 7
      %v442 = vrot.slane %v319, 7
      %v443 = vsel %vm434, %v441, %v442
      %v444 = vrot.slane %v320, 7
      %v445 = vsel %vm434, %v442, %v444
      %v446 = vsel %vm434, %v444, %v375
      %v447 = vrot.slane %v322, 7
      %v448 = vrot.slane %v323, 7
      %v449 = vsel %vm434, %v447, %v448
      %v450 = vrot.slane %v324, 7
      %v451 = vsel %vm434, %v448, %v450
      %v452 = vsel %vm434, %v450, %v376
      %v453 = vrot.slane %v326, 7
      %v454 = vrot.slane %v327, 7
      %v455 = vsel %vm434, %v453, %v454
      %v456 = vrot.slane %v328, 7
      %v457 = vsel %vm434, %v454, %v456
      %v458 = vsel %vm434, %v456, %v377
      %v459 = vrot.slane %v330, 7
      %v460 = vrot.slane %v331, 7
      %v461 = vsel %vm434, %v459, %v460
      %v462 = vrot.slane %v332, 7
      %v463 = vsel %vm434, %v460, %v462
      %v464 = vsel %vm434, %v462, %v378
      %v465 = vrot.slane %v334, 7
      %v466 = vrot.slane %v335, 7
      %v467 = vsel %vm434, %v465, %v466
      %v468 = vrot.slane %v336, 7
      %v469 = vsel %vm434, %v466, %v468
      %v470 = vsel %vm434, %v468, %v379
      %v471 = vrot.slane %v338, 7
      %v472 = vrot.slane %v339, 7
      %v473 = vsel %vm434, %v471, %v472
      %v474 = vrot.slane %v340, 7
      %v475 = vsel %vm434, %v472, %v474
      %v476 = vsel %vm434, %v474, %v380
      %v477 = vrot.slane %v342, 7
      %v478 = vrot.slane %v343, 7
      %v479 = vsel %vm434, %v477, %v478
      %v480 = vrot.slane %v344, 7
      %v481 = vsel %vm434, %v478, %v480
      %v482 = vsel %vm434, %v480, %v381
      %v483 = vrot.slane %v346, 7
      %v484 = vrot.slane %v347, 7
      %v485 = vsel %vm434, %v483, %v484
      %v486 = vrot.slane %v348, 7
      %v487 = vsel %vm434, %v484, %v486
      %v488 = vsel %vm434, %v486, %v382
      %v489 = vrot.slane %v350, 7
      %v490 = vrot.slane %v351, 7
      %v491 = vsel %vm434, %v489, %v490
      %v492 = vrot.slane %v352, 7
      %v493 = vsel %vm434, %v490, %v492
      %v494 = vsel %vm434, %v492, %v383
      %v495 = vrot.slane %v354, 7
      %v496 = vrot.slane %v355, 7
      %v497 = vsel %vm434, %v495, %v496
      %v498 = vrot.slane %v356, 7
      %v499 = vsel %vm434, %v496, %v498
      %v500 = vsel %vm434, %v498, %v384
      %v501 = vrot.slane %v358, 7
      %v502 = vrot.slane %v359, 7
      %v503 = vsel %vm434, %v501, %v502
      %v504 = vrot.slane %v360, 7
      %v505 = vsel %vm434, %v502, %v504
      %v506 = vsel %vm434, %v504, %v385
      %v555 = vsel %vm434, %v374, %v435
      %v556 = vsel %vm434, %v375, %v441
      %v557 = vsel %vm434, %v376, %v447
      %v558 = vsel %vm434, %v377, %v453
      %v559 = vsel %vm434, %v378, %v459
      %v560 = vsel %vm434, %v379, %v465
      %v561 = vsel %vm434, %v380, %v471
      %v562 = vsel %vm434, %v381, %v477
      %v563 = vsel %vm434, %v382, %v483
      %v564 = vsel %vm434, %v383, %v489
      %v565 = vsel %vm434, %v384, %v495
      %v566 = vsel %vm434, %v385, %v501
      %vm567 = vcmask 1046528
      %v568 = vrot.slane %v314, 1
      %v569 = vrot.slane %v315, 1
      %v570 = vsel %vm567, %v568, %v569
      %v571 = vrot.slane %v316, 1
      %v572 = vsel %vm567, %v569, %v571
      %v573 = vrot.slane %v317, 1
      %v574 = vsel %vm567, %v571, %v573
      %v575 = vrot.slane %v318, 1
      %v576 = vrot.slane %v319, 1
      %v577 = vsel %vm567, %v575, %v576
      %v578 = vrot.slane %v320, 1
      %v579 = vsel %vm567, %v576, %v578
      %v580 = vrot.slane %v321, 1
      %v581 = vsel %vm567, %v578, %v580
      %v582 = vrot.slane %v322, 1
      %v583 = vrot.slane %v323, 1
      %v584 = vsel %vm567, %v582, %v583
      %v585 = vrot.slane %v324, 1
      %v586 = vsel %vm567, %v583, %v585
      %v587 = vrot.slane %v325, 1
      %v588 = vsel %vm567, %v585, %v587
      %v589 = vrot.slane %v326, 1
      %v590 = vrot.slane %v327, 1
      %v591 = vsel %vm567, %v589, %v590
      %v592 = vrot.slane %v328, 1
      %v593 = vsel %vm567, %v590, %v592
      %v594 = vrot.slane %v329, 1
      %v595 = vsel %vm567, %v592, %v594
      %v596 = vrot.slane %v330, 1
      %v597 = vrot.slane %v331, 1
      %v598 = vsel %vm567, %v596, %v597
      %v599 = vrot.slane %v332, 1
      %v600 = vsel %vm567, %v597, %v599
      %v601 = vrot.slane %v333, 1
      %v602 = vsel %vm567, %v599, %v601
      %v603 = vrot.slane %v334, 1
      %v604 = vrot.slane %v335, 1
      %v605 = vsel %vm567, %v603, %v604
      %v606 = vrot.slane %v336, 1
      %v607 = vsel %vm567, %v604, %v606
      %v608 = vrot.slane %v337, 1
      %v609 = vsel %vm567, %v606, %v608
      %v610 = vrot.slane %v338, 1
      %v611 = vrot.slane %v339, 1
      %v612 = vsel %vm567, %v610, %v611
      %v613 = vrot.slane %v340, 1
      %v614 = vsel %vm567, %v611, %v613
      %v615 = vrot.slane %v341, 1
      %v616 = vsel %vm567, %v613, %v615
      %v617 = vrot.slane %v342, 1
      %v618 = vrot.slane %v343, 1
      %v619 = vsel %vm567, %v617, %v618
      %v620 = vrot.slane %v344, 1
      %v621 = vsel %vm567, %v618, %v620
      %v622 = vrot.slane %v345, 1
      %v623 = vsel %vm567, %v620, %v622
      %v624 = vrot.slane %v346, 1
      %v625 = vrot.slane %v347, 1
      %v626 = vsel %vm567, %v624, %v625
      %v627 = vrot.slane %v348, 1
      %v628 = vsel %vm567, %v625, %v627
      %v629 = vrot.slane %v349, 1
      %v630 = vsel %vm567, %v627, %v629
      %v631 = vrot.slane %v350, 1
      %v632 = vrot.slane %v351, 1
      %v633 = vsel %vm567, %v631, %v632
      %v634 = vrot.slane %v352, 1
      %v635 = vsel %vm567, %v632, %v634
      %v636 = vrot.slane %v353, 1
      %v637 = vsel %vm567, %v634, %v636
      %v638 = vrot.slane %v354, 1
      %v639 = vrot.slane %v355, 1
      %v640 = vsel %vm567, %v638, %v639
      %v641 = vrot.slane %v356, 1
      %v642 = vsel %vm567, %v639, %v641
      %v643 = vrot.slane %v357, 1
      %v644 = vsel %vm567, %v641, %v643
      %v645 = vrot.slane %v358, 1
      %v646 = vrot.slane %v359, 1
      %v647 = vsel %vm567, %v645, %v646
      %v648 = vrot.slane %v360, 1
      %v649 = vsel %vm567, %v646, %v648
      %v650 = vrot.slane %v361, 1
      %v651 = vsel %vm567, %v648, %v650
      %v712 = vsel %vm567, %v573, %v568
      %v713 = vsel %vm567, %v580, %v575
      %v714 = vsel %vm567, %v587, %v582
      %v715 = vsel %vm567, %v594, %v589
      %v716 = vsel %vm567, %v601, %v596
      %v717 = vsel %vm567, %v608, %v603
      %v718 = vsel %vm567, %v615, %v610
      %v719 = vsel %vm567, %v622, %v617
      %v720 = vsel %vm567, %v629, %v624
      %v721 = vsel %vm567, %v636, %v631
      %v722 = vsel %vm567, %v643, %v638
      %v723 = vsel %vm567, %v650, %v645
      %v724 = vpack.c.bf16 %v437, %v555
      %v725 = vpack.c.bf16 %v440, %v439
      %v726 = vpack.c.bf16 %v443, %v556
      %v727 = vpack.c.bf16 %v446, %v445
      %v728 = vpack.c.bf16 %v449, %v557
      %v729 = vpack.c.bf16 %v452, %v451
      %v730 = vpack.c.bf16 %v455, %v558
      %v731 = vpack.c.bf16 %v458, %v457
      %v732 = vpack.c.bf16 %v461, %v559
      %v733 = vpack.c.bf16 %v464, %v463
      %v734 = vpack.c.bf16 %v467, %v560
      %v735 = vpack.c.bf16 %v470, %v469
      %v736 = vpack.c.bf16 %v473, %v561
      %v737 = vpack.c.bf16 %v476, %v475
      %v738 = vpack.c.bf16 %v479, %v562
      %v739 = vpack.c.bf16 %v482, %v481
      %v740 = vpack.c.bf16 %v485, %v563
      %v741 = vpack.c.bf16 %v488, %v487
      %v742 = vpack.c.bf16 %v491, %v564
      %v743 = vpack.c.bf16 %v494, %v493
      %v744 = vpack.c.bf16 %v497, %v565
      %v745 = vpack.c.bf16 %v500, %v499
      %v746 = vpack.c.bf16 %v503, %v566
      %v747 = vpack.c.bf16 %v506, %v505
      %v748 = vpack.c.bf16 %v315, %v314
      %v749 = vpack.c.bf16 %v317, %v316
      %v750 = vpack.c.bf16 %v319, %v318
      %v751 = vpack.c.bf16 %v321, %v320
      %v752 = vpack.c.bf16 %v323, %v322
      %v753 = vpack.c.bf16 %v325, %v324
      %v754 = vpack.c.bf16 %v327, %v326
      %v755 = vpack.c.bf16 %v329, %v328
      %v756 = vpack.c.bf16 %v331, %v330
      %v757 = vpack.c.bf16 %v333, %v332
      %v758 = vpack.c.bf16 %v335, %v334
      %v759 = vpack.c.bf16 %v337, %v336
      %v760 = vpack.c.bf16 %v339, %v338
      %v761 = vpack.c.bf16 %v341, %v340
      %v762 = vpack.c.bf16 %v343, %v342
      %v763 = vpack.c.bf16 %v345, %v344
      %v764 = vpack.c.bf16 %v347, %v346
      %v765 = vpack.c.bf16 %v349, %v348
      %v766 = vpack.c.bf16 %v351, %v350
      %v767 = vpack.c.bf16 %v353, %v352
      %v768 = vpack.c.bf16 %v355, %v354
      %v769 = vpack.c.bf16 %v357, %v356
      %v770 = vpack.c.bf16 %v359, %v358
      %v771 = vpack.c.bf16 %v361, %v360
      %v772 = vpack.c.bf16 %v572, %v570
      %v773 = vpack.c.bf16 %v712, %v574
      %v774 = vpack.c.bf16 %v579, %v577
      %v775 = vpack.c.bf16 %v713, %v581
      %v776 = vpack.c.bf16 %v586, %v584
      %v777 = vpack.c.bf16 %v714, %v588
      %v778 = vpack.c.bf16 %v593, %v591
      %v779 = vpack.c.bf16 %v715, %v595
      %v780 = vpack.c.bf16 %v600, %v598
      %v781 = vpack.c.bf16 %v716, %v602
      %v782 = vpack.c.bf16 %v607, %v605
      %v783 = vpack.c.bf16 %v717, %v609
      %v784 = vpack.c.bf16 %v614, %v612
      %v785 = vpack.c.bf16 %v718, %v616
      %v786 = vpack.c.bf16 %v621, %v619
      %v787 = vpack.c.bf16 %v719, %v623
      %v788 = vpack.c.bf16 %v628, %v626
      %v789 = vpack.c.bf16 %v720, %v630
      %v790 = vpack.c.bf16 %v635, %v633
      %v791 = vpack.c.bf16 %v721, %v637
      %v792 = vpack.c.bf16 %v642, %v640
      %v793 = vpack.c.bf16 %v722, %v644
      %v794 = vpack.c.bf16 %v649, %v647
      %v795 = vpack.c.bf16 %v723, %v651
      %v796 = vld [vmem:[%s1] sm:$0xf]
      %v797 = vld [vmem:[%s1 + $0x4] sm:$0xf]
      %v798 = vld [vmem:[%s1 + $0x8] sm:$0xf]
      %v799 = vld [vmem:[%s1 + $0xc] sm:$0xf]
      %v800 = vld [vmem:[%s1 + $0x10] sm:$0xf]
      %v801 = vld [vmem:[%s1 + $0x14] sm:$0xf]
      %v802 = vld [vmem:[%s1 + $0x18] sm:$0xf]
      %v803 = vld [vmem:[%s1 + $0x1c] sm:$0xf]
      %v804 = vld [vmem:[%s1 + $0x20] sm:$0xf]
      %v805 = vld [vmem:[%s1 + $0x24] sm:$0xf]
      %v806 = vld [vmem:[%s1 + $0x28] sm:$0xf]
      %v807 = vld [vmem:[%s1 + $0x2c] sm:$0xf]
      %v808 = vld [vmem:[%s1 + $0x30] sm:$0xf]
      %v809 = vld [vmem:[%s1 + $0x34] sm:$0xf]
      %v810 = vld [vmem:[%s1 + $0x38] sm:$0xf]
      %v811 = vld [vmem:[%s1 + $0x3c] sm:$0xf]
      %v812 = vld [vmem:[%s1 + $0x40] sm:$0xf]
      %v813 = vld [vmem:[%s1 + $0x44] sm:$0xf]
      %v814 = vld [vmem:[%s1 + $0x48] sm:$0xf]
      %v815 = vld [vmem:[%s1 + $0x4c] sm:$0xf]
      %v816 = vld [vmem:[%s1 + $0x50] sm:$0xf]
      %v817 = vld [vmem:[%s1 + $0x54] sm:$0xf]
      %v818 = vld [vmem:[%s1 + $0x58] sm:$0xf]
      %v819 = vld [vmem:[%s1 + $0x5c] sm:$0xf]
      %v820 = vld [vmem:[%s1 + $0x60] sm:$0xf]
      %v821 = vld [vmem:[%s1 + $0x64] sm:$0xf]
      %v822 = vld [vmem:[%s1 + $0x68] sm:$0xf]
      %v823 = vld [vmem:[%s1 + $0x6c] sm:$0xf]
      %v824 = vld [vmem:[%s1 + $0x70] sm:$0xf]
      %v825 = vld [vmem:[%s1 + $0x74] sm:$0xf]
      %v826 = vld [vmem:[%s1 + $0x78] sm:$0xf]
      %v827 = vld [vmem:[%s1 + $0x7c] sm:$0xf]
      %v828 = vld [vmem:[%s1 + $0x80] sm:$0xf]
      %v829 = vld [vmem:[%s1 + $0x84] sm:$0xf]
      %v830 = vld [vmem:[%s1 + $0x88] sm:$0xf]
      %v831 = vld [vmem:[%s1 + $0x8c] sm:$0xf]
      %v832 = vld [vmem:[%s1 + $0x90] sm:$0xf]
      %v833 = vld [vmem:[%s1 + $0x94] sm:$0xf]
      %v834 = vld [vmem:[%s1 + $0x98] sm:$0xf]
      %v835 = vld [vmem:[%s1 + $0x9c] sm:$0xf]
      %v836 = vld [vmem:[%s1 + $0xa0] sm:$0xf]
      %v837 = vld [vmem:[%s1 + $0xa4] sm:$0xf]
      %v838 = vld [vmem:[%s1 + $0xa8] sm:$0xf]
      %v839 = vld [vmem:[%s1 + $0xac] sm:$0xf]
      %v840 = vld [vmem:[%s1 + $0xb0] sm:$0xf]
      %v841 = vld [vmem:[%s1 + $0xb4] sm:$0xf]
      %v842 = vld [vmem:[%s1 + $0xb8] sm:$0xf]
      %v843 = vld [vmem:[%s1 + $0xbc] sm:$0xf]
      %s844 = scalar_lea.vmem %s1, 192
      %v845 = vld [vmem:[%s844] sm:$0xf]
      %v846 = vld [vmem:[%s844 + $0x4] sm:$0xf]
      %v847 = vld [vmem:[%s844 + $0x8] sm:$0xf]
      %v848 = vld [vmem:[%s844 + $0xc] sm:$0xf]
      %v849 = vld [vmem:[%s844 + $0x10] sm:$0xf]
      %v850 = vld [vmem:[%s844 + $0x14] sm:$0xf]
      %v851 = vld [vmem:[%s844 + $0x18] sm:$0xf]
      %v852 = vld [vmem:[%s844 + $0x1c] sm:$0xf]
      %v853 = vld [vmem:[%s844 + $0x20] sm:$0xf]
      %v854 = vld [vmem:[%s844 + $0x24] sm:$0xf]
      %v855 = vld [vmem:[%s844 + $0x28] sm:$0xf]
      %v856 = vld [vmem:[%s844 + $0x2c] sm:$0xf]
      %v857 = vld [vmem:[%s844 + $0x30] sm:$0xf]
      %v858 = vld [vmem:[%s844 + $0x34] sm:$0xf]
      %v859 = vld [vmem:[%s844 + $0x38] sm:$0xf]
      %v860 = vld [vmem:[%s844 + $0x3c] sm:$0xf]
      %v861 = vld [vmem:[%s844 + $0x40] sm:$0xf]
      %v862 = vld [vmem:[%s844 + $0x44] sm:$0xf]
      %v863 = vld [vmem:[%s844 + $0x48] sm:$0xf]
      %v864 = vld [vmem:[%s844 + $0x4c] sm:$0xf]
      %v865 = vld [vmem:[%s844 + $0x50] sm:$0xf]
      %v866 = vld [vmem:[%s844 + $0x54] sm:$0xf]
      %v867 = vld [vmem:[%s844 + $0x58] sm:$0xf]
      %v868 = vld [vmem:[%s844 + $0x5c] sm:$0xf]
      %v869 = vld [vmem:[%s844 + $0x60] sm:$0xf]
      %v870 = vld [vmem:[%s844 + $0x64] sm:$0xf]
      %v871 = vld [vmem:[%s844 + $0x68] sm:$0xf]
      %v872 = vld [vmem:[%s844 + $0x6c] sm:$0xf]
      %v873 = vld [vmem:[%s844 + $0x70] sm:$0xf]
      %v874 = vld [vmem:[%s844 + $0x74] sm:$0xf]
      %v875 = vld [vmem:[%s844 + $0x78] sm:$0xf]
      %v876 = vld [vmem:[%s844 + $0x7c] sm:$0xf]
      %v877 = vld [vmem:[%s844 + $0x80] sm:$0xf]
      %v878 = vld [vmem:[%s844 + $0x84] sm:$0xf]
      %v879 = vld [vmem:[%s844 + $0x88] sm:$0xf]
      %v880 = vld [vmem:[%s844 + $0x8c] sm:$0xf]
      %v881 = vld [vmem:[%s844 + $0x90] sm:$0xf]
      %v882 = vld [vmem:[%s844 + $0x94] sm:$0xf]
      %v883 = vld [vmem:[%s844 + $0x98] sm:$0xf]
      %v884 = vld [vmem:[%s844 + $0x9c] sm:$0xf]
      %v885 = vld [vmem:[%s844 + $0xa0] sm:$0xf]
      %v886 = vld [vmem:[%s844 + $0xa4] sm:$0xf]
      %v887 = vld [vmem:[%s844 + $0xa8] sm:$0xf]
      %v888 = vld [vmem:[%s844 + $0xac] sm:$0xf]
      %v889 = vld [vmem:[%s844 + $0xb0] sm:$0xf]
      %v890 = vld [vmem:[%s844 + $0xb4] sm:$0xf]
      %v891 = vld [vmem:[%s844 + $0xb8] sm:$0xf]
      %v892 = vld [vmem:[%s844 + $0xbc] sm:$0xf]
      %v941 = vunpack.c.l.b16 %v845
      %v942 = vunpack.c.l.b16 %v846
      %v943 = vunpack.c.l.b16 %v847
      %v944 = vunpack.c.l.b16 %v848
      %v945 = vunpack.c.l.b16 %v849
      %v946 = vunpack.c.l.b16 %v850
      %v947 = vunpack.c.l.b16 %v851
      %v948 = vunpack.c.l.b16 %v852
      %v949 = vunpack.c.l.b16 %v853
      %v950 = vunpack.c.l.b16 %v854
      %v951 = vunpack.c.l.b16 %v855
      %v952 = vunpack.c.l.b16 %v856
      %v953 = vunpack.c.l.b16 %v857
      %v954 = vunpack.c.l.b16 %v858
      %v955 = vunpack.c.l.b16 %v859
      %v956 = vunpack.c.l.b16 %v860
      %v957 = vunpack.c.l.b16 %v861
      %v958 = vunpack.c.l.b16 %v862
      %v959 = vunpack.c.l.b16 %v863
      %v960 = vunpack.c.l.b16 %v864
      %v961 = vunpack.c.l.b16 %v865
      %v962 = vunpack.c.l.b16 %v866
      %v963 = vunpack.c.l.b16 %v867
      %v964 = vunpack.c.l.b16 %v868
      %v965 = vunpack.c.l.b16 %v869
      %v966 = vunpack.c.l.b16 %v870
      %v967 = vunpack.c.l.b16 %v871
      %v968 = vunpack.c.l.b16 %v872
      %v969 = vunpack.c.l.b16 %v873
      %v970 = vunpack.c.l.b16 %v874
      %v971 = vunpack.c.l.b16 %v875
      %v972 = vunpack.c.l.b16 %v876
      %v973 = vunpack.c.l.b16 %v877
      %v974 = vunpack.c.l.b16 %v878
      %v975 = vunpack.c.l.b16 %v879
      %v976 = vunpack.c.l.b16 %v880
      %v977 = vunpack.c.l.b16 %v881
      %v978 = vunpack.c.l.b16 %v882
      %v979 = vunpack.c.l.b16 %v883
      %v980 = vunpack.c.l.b16 %v884
      %v981 = vunpack.c.l.b16 %v885
      %v982 = vunpack.c.l.b16 %v886
      %v983 = vunpack.c.l.b16 %v887
      %v984 = vunpack.c.l.b16 %v888
      %v985 = vunpack.c.l.b16 %v889
      %v986 = vunpack.c.l.b16 %v890
      %v987 = vunpack.c.l.b16 %v891
      %v988 = vunpack.c.l.b16 %v892
      %v989 = vpack.c.b16 %v942, %v941
      %v990 = vpack.c.b16 %v944, %v943
      %v991 = vpack.c.b16 %v946, %v945
      %v992 = vpack.c.b16 %v948, %v947
      %v993 = vpack.c.b16 %v950, %v949
      %v994 = vpack.c.b16 %v952, %v951
      %v995 = vpack.c.b16 %v954, %v953
      %v996 = vpack.c.b16 %v956, %v955
      %v997 = vpack.c.b16 %v958, %v957
      %v998 = vpack.c.b16 %v960, %v959
      %v999 = vpack.c.b16 %v962, %v961
      %v1000 = vpack.c.b16 %v964, %v963
      %v1001 = vpack.c.b16 %v966, %v965
      %v1002 = vpack.c.b16 %v968, %v967
      %v1003 = vpack.c.b16 %v970, %v969
      %v1004 = vpack.c.b16 %v972, %v971
      %v1005 = vpack.c.b16 %v974, %v973
      %v1006 = vpack.c.b16 %v976, %v975
      %v1007 = vpack.c.b16 %v978, %v977
      %v1008 = vpack.c.b16 %v980, %v979
      %v1009 = vpack.c.b16 %v982, %v981
      %v1010 = vpack.c.b16 %v984, %v983
      %v1011 = vpack.c.b16 %v986, %v985
      %v1012 = vpack.c.b16 %v988, %v987
      %1037 = vmatprep.subr.bf16.mxu0 0
      %1038 = vmatpush1.bf16.msra.mxu0 %v989
      %1039 = vmatprep.subr.bf16.mxu0 0
      %1040 = vmatpush1.bf16.msra.mxu0 %v990
      %1041 = vmatprep.subr.bf16.mxu0 0
      %1042 = vmatpush1.bf16.msra.mxu0 %v991
      %1043 = vmatprep.subr.bf16.mxu0 0
      %1044 = vmatpush1.bf16.msra.mxu0 %v992
      %1045 = vmatprep.subr.bf16.mxu0 0
      %1046 = vmatpush1.bf16.msra.mxu0 %v993
      %1047 = vmatprep.subr.bf16.mxu0 0
      %1048 = vmatpush1.bf16.msra.mxu0 %v994
      %1049 = vmatprep.subr.bf16.mxu0 0
      %1050 = vmatpush1.bf16.msra.mxu0 %v995
      %1051 = vmatprep.subr.bf16.mxu0 0
      %1052 = vmatpush1.bf16.msra.mxu0 %v996
      %1053 = vmatprep.subr.bf16.mxu0 0
      %1054 = vmatpush1.bf16.msra.mxu0 %v997
      %1055 = vmatprep.subr.bf16.mxu0 0
      %1056 = vmatpush1.bf16.msra.mxu0 %v998
      %1057 = vmatprep.subr.bf16.mxu0 0
      %1058 = vmatpush1.bf16.msra.mxu0 %v999
      %1059 = vmatprep.subr.bf16.mxu0 0
      %1060 = vmatpush1.bf16.msra.mxu0 %v1000
      %1061 = vmatprep.subr.bf16.mxu0 0
      %1062 = vmatpush1.bf16.msra.mxu0 %v1001
      %1063 = vmatprep.subr.bf16.mxu0 0
      %1064 = vmatpush1.bf16.msra.mxu0 %v1002
      %1065 = vmatprep.subr.bf16.mxu0 0
      %1066 = vmatpush1.bf16.msra.mxu0 %v1003
      %1067 = vmatprep.subr.bf16.mxu0 0
      %1068 = vmatpush1.bf16.msra.mxu0 %v1004
      %1069 = vmatprep.mubr.bf16.mxu0 %v750
      %1070 = vmatmul.mubr.bf16.gmra.mrb[0].mxu0 %v726
      %v1071 = vpop.f32.mrb[0].mxu0
      %v1072 = vadd.f32 0.0, %v1071
      %v1073 = vpop.f32.mrb[0].mxu0
      %v1074 = vpop.f32.mrb[0].mxu0
      %v1075 = vadd.f32 0.0, %v1074
      %v1076 = vpop.f32.mrb[0].mxu0
      %1077 = vmatprep.mubr.bf16.mxu0 %v751
      %1078 = vmatmul.mubr.bf16.gmra.mrb[0].mxu0 %v727
      %v1079 = vpop.f32.mrb[0].mxu0
      %v1080 = vadd.f32 0.0, %v1079
      %v1081 = vpop.f32.mrb[0].mxu0
      %v1082 = vpop.f32.mrb[0].mxu0
      %v1083 = vadd.f32 0.0, %v1082
      %v1084 = vpop.f32.mrb[0].mxu0
      %1085 = vmatprep.mubr.bf16.mxu0 %v752
      %1086 = vmatmul.mubr.bf16.gmra.mrb[0].mxu0 %v728
      %v1087 = vpop.f32.mrb[0].mxu0
      %v1088 = vadd.f32 0.0, %v1087
      %v1089 = vpop.f32.mrb[0].mxu0
      %v1090 = vpop.f32.mrb[0].mxu0
      %v1091 = vadd.f32 0.0, %v1090
      %v1092 = vpop.f32.mrb[0].mxu0
      %1093 = vmatprep.mubr.bf16.mxu0 %v753
      %1094 = vmatmul.mubr.bf16.gmra.mrb[0].mxu0 %v729
      %v1095 = vpop.f32.mrb[0].mxu0
      %v1096 = vadd.f32 0.0, %v1095
      %v1097 = vpop.f32.mrb[0].mxu0
      %v1098 = vpop.f32.mrb[0].mxu0
      %v1099 = vadd.f32 0.0, %v1098
      %v1100 = vpop.f32.mrb[0].mxu0
      %1101 = vmatprep.mubr.bf16.mxu0 %v754
      %1102 = vmatmul.mubr.bf16.gmra.mrb[0].mxu0 %v730
      %v1103 = vpop.f32.mrb[0].mxu0
      %v1104 = vadd.f32 0.0, %v1103
      %v1105 = vpop.f32.mrb[0].mxu0
      %v1106 = vpop.f32.mrb[0].mxu0
      %v1107 = vadd.f32 0.0, %v1106
      %v1108 = vpop.f32.mrb[0].mxu0
      %1109 = vmatprep.mubr.bf16.mxu0 %v755
      %1110 = vmatmul.mubr.bf16.gmra.mrb[0].mxu0 %v731
      %v1111 = vpop.f32.mrb[0].mxu0
      %v1112 = vadd.f32 0.0, %v1111
      %v1113 = vpop.f32.mrb[0].mxu0
      %v1114 = vpop.f32.mrb[0].mxu0
      %v1115 = vadd.f32 0.0, %v1114
      %v1116 = vpop.f32.mrb[0].mxu0
      %1117 = vmatprep.mubr.bf16.mxu0 %v756
      %1118 = vmatmul.mubr.bf16.gmra.mrb[0].mxu0 %v732
      %v1119 = vpop.f32.mrb[0].mxu0
      %v1120 = vadd.f32 0.0, %v1119
      %v1121 = vpop.f32.mrb[0].mxu0
      %v1122 = vpop.f32.mrb[0].mxu0
      %v1123 = vadd.f32 0.0, %v1122
      %v1124 = vpop.f32.mrb[0].mxu0
      %1125 = vmatprep.mubr.bf16.mxu0 %v757
      %1126 = vmatmul.mubr.bf16.gmra.mrb[0].mxu0 %v733
      %v1127 = vpop.f32.mrb[0].mxu0
      %v1128 = vadd.f32 0.0, %v1127
      %v1129 = vpop.f32.mrb[0].mxu0
      %v1130 = vpop.f32.mrb[0].mxu0
      %v1131 = vadd.f32 0.0, %v1130
      %v1132 = vpop.f32.mrb[0].mxu0
      %1133 = vmatprep.mubr.bf16.mxu0 %v758
      %1134 = vmatmul.mubr.bf16.gmra.mrb[0].mxu0 %v734
      %v1135 = vpop.f32.mrb[0].mxu0
      %v1136 = vadd.f32 0.0, %v1135
      %v1137 = vpop.f32.mrb[0].mxu0
      %v1138 = vpop.f32.mrb[0].mxu0
      %v1139 = vadd.f32 0.0, %v1138
      %v1140 = vpop.f32.mrb[0].mxu0
      %1141 = vmatprep.mubr.bf16.mxu0 %v759
      %1142 = vmatmul.mubr.bf16.gmra.mrb[0].mxu0 %v735
      %v1143 = vpop.f32.mrb[0].mxu0
      %v1144 = vadd.f32 0.0, %v1143
      %v1145 = vpop.f32.mrb[0].mxu0
      %v1146 = vpop.f32.mrb[0].mxu0
      %v1147 = vadd.f32 0.0, %v1146
      %v1148 = vpop.f32.mrb[0].mxu0
      %1149 = vmatprep.mubr.bf16.mxu0 %v760
      %1150 = vmatmul.mubr.bf16.gmra.mrb[0].mxu0 %v736
      %v1151 = vpop.f32.mrb[0].mxu0
      %v1152 = vadd.f32 0.0, %v1151
      %v1153 = vpop.f32.mrb[0].mxu0
      %v1154 = vpop.f32.mrb[0].mxu0
      %v1155 = vadd.f32 0.0, %v1154
      %v1156 = vpop.f32.mrb[0].mxu0
      %1157 = vmatprep.mubr.bf16.mxu0 %v761
      %1158 = vmatmul.mubr.bf16.gmra.mrb[0].mxu0 %v737
      %v1159 = vpop.f32.mrb[0].mxu0
      %v1160 = vadd.f32 0.0, %v1159
      %v1161 = vpop.f32.mrb[0].mxu0
      %v1162 = vpop.f32.mrb[0].mxu0
      %v1163 = vadd.f32 0.0, %v1162
      %v1164 = vpop.f32.mrb[0].mxu0
      %1165 = vmatprep.mubr.bf16.mxu0 %v762
      %1166 = vmatmul.mubr.bf16.gmra.mrb[0].mxu0 %v738
      %v1167 = vpop.f32.mrb[0].mxu0
      %v1168 = vadd.f32 0.0, %v1167
      %v1169 = vpop.f32.mrb[0].mxu0
      %v1170 = vpop.f32.mrb[0].mxu0
      %v1171 = vadd.f32 0.0, %v1170
      %v1172 = vpop.f32.mrb[0].mxu0
      %1173 = vmatprep.mubr.bf16.mxu0 %v763
      %1174 = vmatmul.mubr.bf16.gmra.mrb[0].mxu0 %v739
      %v1175 = vpop.f32.mrb[0].mxu0
      %v1176 = vadd.f32 0.0, %v1175
      %v1177 = vpop.f32.mrb[0].mxu0
      %v1178 = vpop.f32.mrb[0].mxu0
      %v1179 = vadd.f32 0.0, %v1178
      %v1180 = vpop.f32.mrb[0].mxu0
      %1181 = vmatprep.mubr.bf16.mxu0 %v764
      %1182 = vmatmul.mubr.bf16.gmra.mrb[0].mxu0 %v740
      %v1183 = vpop.f32.mrb[0].mxu0
      %v1184 = vadd.f32 0.0, %v1183
      %v1185 = vpop.f32.mrb[0].mxu0
      %v1186 = vpop.f32.mrb[0].mxu0
      %v1187 = vadd.f32 0.0, %v1186
      %v1188 = vpop.f32.mrb[0].mxu0
      %1189 = vmatprep.mubr.bf16.mxu0 %v765
      %1190 = vmatmul.mubr.bf16.gmra.mrb[0].mxu0 %v741
      %v1191 = vpop.f32.mrb[0].mxu0
      %v1192 = vadd.f32 0.0, %v1191
      %v1193 = vpop.f32.mrb[0].mxu0
      %v1194 = vpop.f32.mrb[0].mxu0
      %v1195 = vadd.f32 0.0, %v1194
      %v1196 = vpop.f32.mrb[0].mxu0
      %1197 = vmatprep.mubr.bf16.mxu0 %v766
      %1198 = vmatmul.mubr.bf16.gmra.mrb[0].mxu0 %v742
      %v1199 = vpop.f32.mrb[0].mxu0
      %v1200 = vadd.f32 0.0, %v1199
      %v1201 = vpop.f32.mrb[0].mxu0
      %v1202 = vpop.f32.mrb[0].mxu0
      %v1203 = vadd.f32 0.0, %v1202
      %v1204 = vpop.f32.mrb[0].mxu0
      %1205 = vmatprep.mubr.bf16.mxu0 %v767
      %1206 = vmatmul.mubr.bf16.gmra.mrb[0].mxu0 %v743
      %v1207 = vpop.f32.mrb[0].mxu0
      %v1208 = vadd.f32 0.0, %v1207
      %v1209 = vpop.f32.mrb[0].mxu0
      %v1210 = vpop.f32.mrb[0].mxu0
      %v1211 = vadd.f32 0.0, %v1210
      %v1212 = vpop.f32.mrb[0].mxu0
      %1213 = vmatprep.mubr.bf16.mxu0 %v768
      %1214 = vmatmul.mubr.bf16.gmra.mrb[0].mxu0 %v744
      %v1215 = vpop.f32.mrb[0].mxu0
      %v1216 = vadd.f32 0.0, %v1215
      %v1217 = vpop.f32.mrb[0].mxu0
      %v1218 = vpop.f32.mrb[0].mxu0
      %v1219 = vadd.f32 0.0, %v1218
      %v1220 = vpop.f32.mrb[0].mxu0
      %1221 = vmatprep.mubr.bf16.mxu0 %v769
      %1222 = vmatmul.mubr.bf16.gmra.mrb[0].mxu0 %v745
      %v1223 = vpop.f32.mrb[0].mxu0
      %v1224 = vadd.f32 0.0, %v1223
      %v1225 = vpop.f32.mrb[0].mxu0
      %v1226 = vpop.f32.mrb[0].mxu0
      %v1227 = vadd.f32 0.0, %v1226
      %v1228 = vpop.f32.mrb[0].mxu0
      %1229 = vdwg.mxu0
      %1230 = vmatprep.subr.bf16.mxu0 0
      %1231 = vmatpush1.bf16.msra.mxu0 %v1005
      %1232 = vmatprep.subr.bf16.mxu0 0
      %1233 = vmatpush1.bf16.msra.mxu0 %v1006
      %1234 = vmatprep.subr.bf16.mxu0 0
      %1235 = vmatpush1.bf16.msra.mxu0 %v1007
      %1236 = vmatprep.subr.bf16.mxu0 0
      %1237 = vmatpush1.bf16.msra.mxu0 %v1008
      %1238 = vmatprep.subr.bf16.mxu0 0
      %1239 = vmatpush1.bf16.msra.mxu0 %v1009
      %1240 = vmatprep.subr.bf16.mxu0 0
      %1241 = vmatpush1.bf16.msra.mxu0 %v1010
      %1242 = vmatprep.subr.bf16.mxu0 0
      %1243 = vmatpush1.bf16.msra.mxu0 %v1011
      %1244 = vmatprep.subr.bf16.mxu0 0
      %1245 = vmatpush1.bf16.msra.mxu0 %v1012
      %1246 = vmatprep.subr.bf16.mxu0 0
      %1247 = vmatpush1.bf16.msra.mxu0 0
      %1248 = vmatprep.subr.bf16.mxu0 0
      %1249 = vmatpush1.bf16.msra.mxu0 0
      %1250 = vmatprep.subr.bf16.mxu0 0
      %1251 = vmatpush1.bf16.msra.mxu0 0
      %1252 = vmatprep.subr.bf16.mxu0 0
      %1253 = vmatpush1.bf16.msra.mxu0 0
      %1254 = vmatprep.subr.bf16.mxu0 0
      %1255 = vmatpush1.bf16.msra.mxu0 0
      %1256 = vmatprep.subr.bf16.mxu0 0
      %1257 = vmatpush1.bf16.msra.mxu0 0
      %1258 = vmatprep.subr.bf16.mxu0 0
      %1259 = vmatpush1.bf16.msra.mxu0 0
      %1260 = vmatprep.subr.bf16.mxu0 0
      %1261 = vmatpush1.bf16.msra.mxu0 0
      %1262 = vmatprep.mubr.bf16.mxu0 0
      %1263 = vmatmul.mubr.bf16.gmra.mrb[0].mxu0 %v774
      %v1264 = vpop.f32.mrb[0].mxu0
      %v1265 = vadd.f32 %v1072, %v1264
      %v1266 = vpop.f32.mrb[0].mxu0
      %v1267 = vpop.f32.mrb[0].mxu0
      %v1268 = vadd.f32 %v1075, %v1267
      %v1269 = vpop.f32.mrb[0].mxu0
      %1270 = vmatprep.mubr.bf16.mxu0 0
      %1271 = vmatmul.mubr.bf16.gmra.mrb[0].mxu0 %v775
      %v1272 = vpop.f32.mrb[0].mxu0
      %v1273 = vadd.f32 %v1080, %v1272
      %v1274 = vpop.f32.mrb[0].mxu0
      %v1275 = vpop.f32.mrb[0].mxu0
      %v1276 = vadd.f32 %v1083, %v1275
      %v1277 = vpop.f32.mrb[0].mxu0
      %1278 = vmatprep.mubr.bf16.mxu0 0
      %1279 = vmatmul.mubr.bf16.gmra.mrb[0].mxu0 %v776
      %v1280 = vpop.f32.mrb[0].mxu0
      %v1281 = vadd.f32 %v1088, %v1280
      %v1282 = vpop.f32.mrb[0].mxu0
      %v1283 = vpop.f32.mrb[0].mxu0
      %v1284 = vadd.f32 %v1091, %v1283
      %v1285 = vpop.f32.mrb[0].mxu0
      %1286 = vmatprep.mubr.bf16.mxu0 0
      %1287 = vmatmul.mubr.bf16.gmra.mrb[0].mxu0 %v777
      %v1288 = vpop.f32.mrb[0].mxu0
      %v1289 = vadd.f32 %v1096, %v1288
      %v1290 = vpop.f32.mrb[0].mxu0
      %v1291 = vpop.f32.mrb[0].mxu0
      %v1292 = vadd.f32 %v1099, %v1291
      %v1293 = vpop.f32.mrb[0].mxu0
      %1294 = vmatprep.mubr.bf16.mxu0 0
      %1295 = vmatmul.mubr.bf16.gmra.mrb[0].mxu0 %v778
      %v1296 = vpop.f32.mrb[0].mxu0
      %v1297 = vadd.f32 %v1104, %v1296
      %v1298 = vpop.f32.mrb[0].mxu0
      %v1299 = vpop.f32.mrb[0].mxu0
      %v1300 = vadd.f32 %v1107, %v1299
      %v1301 = vpop.f32.mrb[0].mxu0
      %1302 = vmatprep.mubr.bf16.mxu0 0
      %1303 = vmatmul.mubr.bf16.gmra.mrb[0].mxu0 %v779
      %v1304 = vpop.f32.mrb[0].mxu0
      %v1305 = vadd.f32 %v1112, %v1304
      %v1306 = vpop.f32.mrb[0].mxu0
      %v1307 = vpop.f32.mrb[0].mxu0
      %v1308 = vadd.f32 %v1115, %v1307
      %v1309 = vpop.f32.mrb[0].mxu0
      %1310 = vmatprep.mubr.bf16.mxu0 0
      %1311 = vmatmul.mubr.bf16.gmra.mrb[0].mxu0 %v780
      %v1312 = vpop.f32.mrb[0].mxu0
      %v1313 = vadd.f32 %v1120, %v1312
      %v1314 = vpop.f32.mrb[0].mxu0
      %v1315 = vpop.f32.mrb[0].mxu0
      %v1316 = vadd.f32 %v1123, %v1315
      %v1317 = vpop.f32.mrb[0].mxu0
      %1318 = vmatprep.mubr.bf16.mxu0 0
      %1319 = vmatmul.mubr.bf16.gmra.mrb[0].mxu0 %v781
      %v1320 = vpop.f32.mrb[0].mxu0
      %v1321 = vadd.f32 %v1128, %v1320
      %v1322 = vpop.f32.mrb[0].mxu0
      %v1323 = vpop.f32.mrb[0].mxu0
      %v1324 = vadd.f32 %v1131, %v1323
      %v1325 = vpop.f32.mrb[0].mxu0
      %1326 = vmatprep.mubr.bf16.mxu0 0
      %1327 = vmatmul.mubr.bf16.gmra.mrb[0].mxu0 %v782
      %v1328 = vpop.f32.mrb[0].mxu0
      %v1329 = vadd.f32 %v1136, %v1328
      %v1330 = vpop.f32.mrb[0].mxu0
      %v1331 = vpop.f32.mrb[0].mxu0
      %v1332 = vadd.f32 %v1139, %v1331
      %v1333 = vpop.f32.mrb[0].mxu0
      %1334 = vmatprep.mubr.bf16.mxu0 0
      %1335 = vmatmul.mubr.bf16.gmra.mrb[0].mxu0 %v783
      %v1336 = vpop.f32.mrb[0].mxu0
      %v1337 = vadd.f32 %v1144, %v1336
      %v1338 = vpop.f32.mrb[0].mxu0
      %v1339 = vpop.f32.mrb[0].mxu0
      %v1340 = vadd.f32 %v1147, %v1339
      %v1341 = vpop.f32.mrb[0].mxu0
      %1342 = vmatprep.mubr.bf16.mxu0 0
      %1343 = vmatmul.mubr.bf16.gmra.mrb[0].mxu0 %v784
      %v1344 = vpop.f32.mrb[0].mxu0
      %v1345 = vadd.f32 %v1152, %v1344
      %v1346 = vpop.f32.mrb[0].mxu0
      %v1347 = vpop.f32.mrb[0].mxu0
      %v1348 = vadd.f32 %v1155, %v1347
      %v1349 = vpop.f32.mrb[0].mxu0
      %1350 = vmatprep.mubr.bf16.mxu0 0
      %1351 = vmatmul.mubr.bf16.gmra.mrb[0].mxu0 %v785
      %v1352 = vpop.f32.mrb[0].mxu0
      %v1353 = vadd.f32 %v1160, %v1352
      %v1354 = vpop.f32.mrb[0].mxu0
      %v1355 = vpop.f32.mrb[0].mxu0
      %v1356 = vadd.f32 %v1163, %v1355
      %v1357 = vpop.f32.mrb[0].mxu0
      %1358 = vmatprep.mubr.bf16.mxu0 0
      %1359 = vmatmul.mubr.bf16.gmra.mrb[0].mxu0 %v786
      %v1360 = vpop.f32.mrb[0].mxu0
      %v1361 = vadd.f32 %v1168, %v1360
      %v1362 = vpop.f32.mrb[0].mxu0
      %v1363 = vpop.f32.mrb[0].mxu0
      %v1364 = vadd.f32 %v1171, %v1363
      %v1365 = vpop.f32.mrb[0].mxu0
      %1366 = vmatprep.mubr.bf16.mxu0 0
      %1367 = vmatmul.mubr.bf16.gmra.mrb[0].mxu0 %v787
      %v1368 = vpop.f32.mrb[0].mxu0
      %v1369 = vadd.f32 %v1176, %v1368
      %v1370 = vpop.f32.mrb[0].mxu0
      %v1371 = vpop.f32.mrb[0].mxu0
      %v1372 = vadd.f32 %v1179, %v1371
      %v1373 = vpop.f32.mrb[0].mxu0
      %1374 = vmatprep.mubr.bf16.mxu0 0
      %1375 = vmatmul.mubr.bf16.gmra.mrb[0].mxu0 %v788
      %v1376 = vpop.f32.mrb[0].mxu0
      %v1377 = vadd.f32 %v1184, %v1376
      %v1378 = vpop.f32.mrb[0].mxu0
      %v1379 = vpop.f32.mrb[0].mxu0
      %v1380 = vadd.f32 %v1187, %v1379
      %v1381 = vpop.f32.mrb[0].mxu0
      %1382 = vmatprep.mubr.bf16.mxu0 0
      %1383 = vmatmul.mubr.bf16.gmra.mrb[0].mxu0 %v789
      %v1384 = vpop.f32.mrb[0].mxu0
      %v1385 = vadd.f32 %v1192, %v1384
      %v1386 = vpop.f32.mrb[0].mxu0
      %v1387 = vpop.f32.mrb[0].mxu0
      %v1388 = vadd.f32 %v1195, %v1387
      %v1389 = vpop.f32.mrb[0].mxu0
      %1390 = vmatprep.mubr.bf16.mxu0 0
      %1391 = vmatmul.mubr.bf16.gmra.mrb[0].mxu0 %v790
      %v1392 = vpop.f32.mrb[0].mxu0
      %v1393 = vadd.f32 %v1200, %v1392
      %v1394 = vpop.f32.mrb[0].mxu0
      %v1395 = vpop.f32.mrb[0].mxu0
      %v1396 = vadd.f32 %v1203, %v1395
      %v1397 = vpop.f32.mrb[0].mxu0
      %1398 = vmatprep.mubr.bf16.mxu0 0
      %1399 = vmatmul.mubr.bf16.gmra.mrb[0].mxu0 %v791
      %v1400 = vpop.f32.mrb[0].mxu0
      %v1401 = vadd.f32 %v1208, %v1400
      %v1402 = vpop.f32.mrb[0].mxu0
      %v1403 = vpop.f32.mrb[0].mxu0
      %v1404 = vadd.f32 %v1211, %v1403
      %v1405 = vpop.f32.mrb[0].mxu0
      %1406 = vmatprep.mubr.bf16.mxu0 0
      %1407 = vmatmul.mubr.bf16.gmra.mrb[0].mxu0 %v792
      %v1408 = vpop.f32.mrb[0].mxu0
      %v1409 = vadd.f32 %v1216, %v1408
      %v1410 = vpop.f32.mrb[0].mxu0
      %v1411 = vpop.f32.mrb[0].mxu0
      %v1412 = vadd.f32 %v1219, %v1411
      %v1413 = vpop.f32.mrb[0].mxu0
      %1414 = vmatprep.mubr.bf16.mxu0 0
      %1415 = vmatmul.mubr.bf16.gmra.mrb[0].mxu0 %v793
      %v1416 = vpop.f32.mrb[0].mxu0
      %v1417 = vadd.f32 %v1224, %v1416
      %v1418 = vpop.f32.mrb[0].mxu0
      %v1419 = vpop.f32.mrb[0].mxu0
      %v1420 = vadd.f32 %v1227, %v1419
      %v1421 = vpop.f32.mrb[0].mxu0
      %1422 = vdwg.mxu0
      %v1471 = vunpack.c.l.b16 %v796
      %v1472 = vunpack.c.l.b16 %v797
      %v1473 = vunpack.c.l.b16 %v798
      %v1474 = vunpack.c.l.b16 %v799
      %v1475 = vunpack.c.l.b16 %v800
      %v1476 = vunpack.c.l.b16 %v801
      %v1477 = vunpack.c.l.b16 %v802
      %v1478 = vunpack.c.l.b16 %v803
      %v1479 = vunpack.c.l.b16 %v804
      %v1480 = vunpack.c.l.b16 %v805
      %v1481 = vunpack.c.l.b16 %v806
      %v1482 = vunpack.c.l.b16 %v807
      %v1483 = vunpack.c.l.b16 %v808
      %v1484 = vunpack.c.l.b16 %v809
      %v1485 = vunpack.c.l.b16 %v810
      %v1486 = vunpack.c.l.b16 %v811
      %v1487 = vunpack.c.l.b16 %v812
      %v1488 = vunpack.c.l.b16 %v813
      %v1489 = vunpack.c.l.b16 %v814
      %v1490 = vunpack.c.l.b16 %v815
      %v1491 = vunpack.c.l.b16 %v816
      %v1492 = vunpack.c.l.b16 %v817
      %v1493 = vunpack.c.l.b16 %v818
      %v1494 = vunpack.c.l.b16 %v819
      %v1495 = vunpack.c.l.b16 %v820
      %v1496 = vunpack.c.l.b16 %v821
      %v1497 = vunpack.c.l.b16 %v822
      %v1498 = vunpack.c.l.b16 %v823
      %v1499 = vunpack.c.l.b16 %v824
      %v1500 = vunpack.c.l.b16 %v825
      %v1501 = vunpack.c.l.b16 %v826
      %v1502 = vunpack.c.l.b16 %v827
      %v1503 = vunpack.c.l.b16 %v828
      %v1504 = vunpack.c.l.b16 %v829
      %v1505 = vunpack.c.l.b16 %v830
      %v1506 = vunpack.c.l.b16 %v831
      %v1507 = vunpack.c.l.b16 %v832
      %v1508 = vunpack.c.l.b16 %v833
      %v1509 = vunpack.c.l.b16 %v834
      %v1510 = vunpack.c.l.b16 %v835
      %v1511 = vunpack.c.l.b16 %v836
      %v1512 = vunpack.c.l.b16 %v837
      %v1513 = vunpack.c.l.b16 %v838
      %v1514 = vunpack.c.l.b16 %v839
      %v1515 = vunpack.c.l.b16 %v840
      %v1516 = vunpack.c.l.b16 %v841
      %v1517 = vunpack.c.l.b16 %v842
      %v1518 = vunpack.c.l.b16 %v843
      %v1519 = vpack.c.b16 %v1472, %v1471
      %v1520 = vpack.c.b16 %v1474, %v1473
      %v1521 = vpack.c.b16 %v1476, %v1475
      %v1522 = vpack.c.b16 %v1478, %v1477
      %v1523 = vpack.c.b16 %v1480, %v1479
      %v1524 = vpack.c.b16 %v1482, %v1481
      %v1525 = vpack.c.b16 %v1484, %v1483
      %v1526 = vpack.c.b16 %v1486, %v1485
      %v1527 = vpack.c.b16 %v1488, %v1487
      %v1528 = vpack.c.b16 %v1490, %v1489
      %v1529 = vpack.c.b16 %v1492, %v1491
      %v1530 = vpack.c.b16 %v1494, %v1493
      %v1531 = vpack.c.b16 %v1496, %v1495
      %v1532 = vpack.c.b16 %v1498, %v1497
      %v1533 = vpack.c.b16 %v1500, %v1499
      %v1534 = vpack.c.b16 %v1502, %v1501
      %v1535 = vpack.c.b16 %v1504, %v1503
      %v1536 = vpack.c.b16 %v1506, %v1505
      %v1537 = vpack.c.b16 %v1508, %v1507
      %v1538 = vpack.c.b16 %v1510, %v1509
      %v1539 = vpack.c.b16 %v1512, %v1511
      %v1540 = vpack.c.b16 %v1514, %v1513
      %v1541 = vpack.c.b16 %v1516, %v1515
      %v1542 = vpack.c.b16 %v1518, %v1517
      %1567 = vmatprep.subr.bf16.mxu0 0
      %1568 = vmatpush1.bf16.msra.mxu0 %v1519
      %1569 = vmatprep.subr.bf16.mxu0 0
      %1570 = vmatpush1.bf16.msra.mxu0 %v1520
      %1571 = vmatprep.subr.bf16.mxu0 0
      %1572 = vmatpush1.bf16.msra.mxu0 %v1521
      %1573 = vmatprep.subr.bf16.mxu0 0
      %1574 = vmatpush1.bf16.msra.mxu0 %v1522
      %1575 = vmatprep.subr.bf16.mxu0 0
      %1576 = vmatpush1.bf16.msra.mxu0 %v1523
      %1577 = vmatprep.subr.bf16.mxu0 0
      %1578 = vmatpush1.bf16.msra.mxu0 %v1524
      %1579 = vmatprep.subr.bf16.mxu0 0
      %1580 = vmatpush1.bf16.msra.mxu0 %v1525
      %1581 = vmatprep.subr.bf16.mxu0 0
      %1582 = vmatpush1.bf16.msra.mxu0 %v1526
      %1583 = vmatprep.subr.bf16.mxu0 0
      %1584 = vmatpush1.bf16.msra.mxu0 %v1527
      %1585 = vmatprep.subr.bf16.mxu0 0
      %1586 = vmatpush1.bf16.msra.mxu0 %v1528
      %1587 = vmatprep.subr.bf16.mxu0 0
      %1588 = vmatpush1.bf16.msra.mxu0 %v1529
      %1589 = vmatprep.subr.bf16.mxu0 0
      %1590 = vmatpush1.bf16.msra.mxu0 %v1530
      %1591 = vmatprep.subr.bf16.mxu0 0
      %1592 = vmatpush1.bf16.msra.mxu0 %v1531
      %1593 = vmatprep.subr.bf16.mxu0 0
      %1594 = vmatpush1.bf16.msra.mxu0 %v1532
      %1595 = vmatprep.subr.bf16.mxu0 0
      %1596 = vmatpush1.bf16.msra.mxu0 %v1533
      %1597 = vmatprep.subr.bf16.mxu0 0
      %1598 = vmatpush1.bf16.msra.mxu0 %v1534
      %1599 = vmatprep.mubr.bf16.mxu0 %v748
      %1600 = vmatmul.mubr.bf16.gmra.mrb[0].mxu0 %v724
      %v1601 = vpop.f32.mrb[0].mxu0
      %v1602 = vadd.f32 %v1265, %v1601
      %v1603 = vpop.f32.mrb[0].mxu0
      %v1604 = vpop.f32.mrb[0].mxu0
      %v1605 = vadd.f32 %v1268, %v1604
      %v1606 = vpop.f32.mrb[0].mxu0
      %1607 = vmatprep.mubr.bf16.mxu0 %v749
      %1608 = vmatmul.mubr.bf16.gmra.mrb[0].mxu0 %v725
      %v1609 = vpop.f32.mrb[0].mxu0
      %v1610 = vadd.f32 %v1273, %v1609
      %v1611 = vpop.f32.mrb[0].mxu0
      %v1612 = vpop.f32.mrb[0].mxu0
      %v1613 = vadd.f32 %v1276, %v1612
      %v1614 = vpop.f32.mrb[0].mxu0
      %1615 = vmatprep.mubr.bf16.mxu0 %v750
      %1616 = vmatmul.mubr.bf16.gmra.mrb[0].mxu0 %v726
      %v1617 = vpop.f32.mrb[0].mxu0
      %v1618 = vadd.f32 %v1281, %v1617
      %v1619 = vpop.f32.mrb[0].mxu0
      %v1620 = vpop.f32.mrb[0].mxu0
      %v1621 = vadd.f32 %v1284, %v1620
      %v1622 = vpop.f32.mrb[0].mxu0
      %1623 = vmatprep.mubr.bf16.mxu0 %v751
      %1624 = vmatmul.mubr.bf16.gmra.mrb[0].mxu0 %v727
      %v1625 = vpop.f32.mrb[0].mxu0
      %v1626 = vadd.f32 %v1289, %v1625
      %v1627 = vpop.f32.mrb[0].mxu0
      %v1628 = vpop.f32.mrb[0].mxu0
      %v1629 = vadd.f32 %v1292, %v1628
      %v1630 = vpop.f32.mrb[0].mxu0
      %1631 = vmatprep.mubr.bf16.mxu0 %v752
      %1632 = vmatmul.mubr.bf16.gmra.mrb[0].mxu0 %v728
      %v1633 = vpop.f32.mrb[0].mxu0
      %v1634 = vadd.f32 %v1297, %v1633
      %v1635 = vpop.f32.mrb[0].mxu0
      %v1636 = vpop.f32.mrb[0].mxu0
      %v1637 = vadd.f32 %v1300, %v1636
      %v1638 = vpop.f32.mrb[0].mxu0
      %1639 = vmatprep.mubr.bf16.mxu0 %v753
      %1640 = vmatmul.mubr.bf16.gmra.mrb[0].mxu0 %v729
      %v1641 = vpop.f32.mrb[0].mxu0
      %v1642 = vadd.f32 %v1305, %v1641
      %v1643 = vpop.f32.mrb[0].mxu0
      %v1644 = vpop.f32.mrb[0].mxu0
      %v1645 = vadd.f32 %v1308, %v1644
      %v1646 = vpop.f32.mrb[0].mxu0
      %1647 = vmatprep.mubr.bf16.mxu0 %v754
      %1648 = vmatmul.mubr.bf16.gmra.mrb[0].mxu0 %v730
      %v1649 = vpop.f32.mrb[0].mxu0
      %v1650 = vadd.f32 %v1313, %v1649
      %v1651 = vpop.f32.mrb[0].mxu0
      %v1652 = vpop.f32.mrb[0].mxu0
      %v1653 = vadd.f32 %v1316, %v1652
      %v1654 = vpop.f32.mrb[0].mxu0
      %1655 = vmatprep.mubr.bf16.mxu0 %v755
      %1656 = vmatmul.mubr.bf16.gmra.mrb[0].mxu0 %v731
      %v1657 = vpop.f32.mrb[0].mxu0
      %v1658 = vadd.f32 %v1321, %v1657
      %v1659 = vpop.f32.mrb[0].mxu0
      %v1660 = vpop.f32.mrb[0].mxu0
      %v1661 = vadd.f32 %v1324, %v1660
      %v1662 = vpop.f32.mrb[0].mxu0
      %1663 = vmatprep.mubr.bf16.mxu0 %v756
      %1664 = vmatmul.mubr.bf16.gmra.mrb[0].mxu0 %v732
      %v1665 = vpop.f32.mrb[0].mxu0
      %v1666 = vadd.f32 %v1329, %v1665
      %v1667 = vpop.f32.mrb[0].mxu0
      %v1668 = vpop.f32.mrb[0].mxu0
      %v1669 = vadd.f32 %v1332, %v1668
      %v1670 = vpop.f32.mrb[0].mxu0
      %1671 = vmatprep.mubr.bf16.mxu0 %v757
      %1672 = vmatmul.mubr.bf16.gmra.mrb[0].mxu0 %v733
      %v1673 = vpop.f32.mrb[0].mxu0
      %v1674 = vadd.f32 %v1337, %v1673
      %v1675 = vpop.f32.mrb[0].mxu0
      %v1676 = vpop.f32.mrb[0].mxu0
      %v1677 = vadd.f32 %v1340, %v1676
      %v1678 = vpop.f32.mrb[0].mxu0
      %1679 = vmatprep.mubr.bf16.mxu0 %v758
      %1680 = vmatmul.mubr.bf16.gmra.mrb[0].mxu0 %v734
      %v1681 = vpop.f32.mrb[0].mxu0
      %v1682 = vadd.f32 %v1345, %v1681
      %v1683 = vpop.f32.mrb[0].mxu0
      %v1684 = vpop.f32.mrb[0].mxu0
      %v1685 = vadd.f32 %v1348, %v1684
      %v1686 = vpop.f32.mrb[0].mxu0
      %1687 = vmatprep.mubr.bf16.mxu0 %v759
      %1688 = vmatmul.mubr.bf16.gmra.mrb[0].mxu0 %v735
      %v1689 = vpop.f32.mrb[0].mxu0
      %v1690 = vadd.f32 %v1353, %v1689
      %v1691 = vpop.f32.mrb[0].mxu0
      %v1692 = vpop.f32.mrb[0].mxu0
      %v1693 = vadd.f32 %v1356, %v1692
      %v1694 = vpop.f32.mrb[0].mxu0
      %1695 = vmatprep.mubr.bf16.mxu0 %v760
      %1696 = vmatmul.mubr.bf16.gmra.mrb[0].mxu0 %v736
      %v1697 = vpop.f32.mrb[0].mxu0
      %v1698 = vadd.f32 %v1361, %v1697
      %v1699 = vpop.f32.mrb[0].mxu0
      %v1700 = vpop.f32.mrb[0].mxu0
      %v1701 = vadd.f32 %v1364, %v1700
      %v1702 = vpop.f32.mrb[0].mxu0
      %1703 = vmatprep.mubr.bf16.mxu0 %v761
      %1704 = vmatmul.mubr.bf16.gmra.mrb[0].mxu0 %v737
      %v1705 = vpop.f32.mrb[0].mxu0
      %v1706 = vadd.f32 %v1369, %v1705
      %v1707 = vpop.f32.mrb[0].mxu0
      %v1708 = vpop.f32.mrb[0].mxu0
      %v1709 = vadd.f32 %v1372, %v1708
      %v1710 = vpop.f32.mrb[0].mxu0
      %1711 = vmatprep.mubr.bf16.mxu0 %v762
      %1712 = vmatmul.mubr.bf16.gmra.mrb[0].mxu0 %v738
      %v1713 = vpop.f32.mrb[0].mxu0
      %v1714 = vadd.f32 %v1377, %v1713
      %v1715 = vpop.f32.mrb[0].mxu0
      %v1716 = vpop.f32.mrb[0].mxu0
      %v1717 = vadd.f32 %v1380, %v1716
      %v1718 = vpop.f32.mrb[0].mxu0
      %1719 = vmatprep.mubr.bf16.mxu0 %v763
      %1720 = vmatmul.mubr.bf16.gmra.mrb[0].mxu0 %v739
      %v1721 = vpop.f32.mrb[0].mxu0
      %v1722 = vadd.f32 %v1385, %v1721
      %v1723 = vpop.f32.mrb[0].mxu0
      %v1724 = vpop.f32.mrb[0].mxu0
      %v1725 = vadd.f32 %v1388, %v1724
      %v1726 = vpop.f32.mrb[0].mxu0
      %1727 = vmatprep.mubr.bf16.mxu0 %v764
      %1728 = vmatmul.mubr.bf16.gmra.mrb[0].mxu0 %v740
      %v1729 = vpop.f32.mrb[0].mxu0
      %v1730 = vadd.f32 %v1393, %v1729
      %v1731 = vpop.f32.mrb[0].mxu0
      %v1732 = vpop.f32.mrb[0].mxu0
      %v1733 = vadd.f32 %v1396, %v1732
      %v1734 = vpop.f32.mrb[0].mxu0
      %1735 = vmatprep.mubr.bf16.mxu0 %v765
      %1736 = vmatmul.mubr.bf16.gmra.mrb[0].mxu0 %v741
      %v1737 = vpop.f32.mrb[0].mxu0
      %v1738 = vadd.f32 %v1401, %v1737
      %v1739 = vpop.f32.mrb[0].mxu0
      %v1740 = vpop.f32.mrb[0].mxu0
      %v1741 = vadd.f32 %v1404, %v1740
      %v1742 = vpop.f32.mrb[0].mxu0
      %1743 = vmatprep.mubr.bf16.mxu0 %v766
      %1744 = vmatmul.mubr.bf16.gmra.mrb[0].mxu0 %v742
      %v1745 = vpop.f32.mrb[0].mxu0
      %v1746 = vadd.f32 %v1409, %v1745
      %v1747 = vpop.f32.mrb[0].mxu0
      %v1748 = vpop.f32.mrb[0].mxu0
      %v1749 = vadd.f32 %v1412, %v1748
      %v1750 = vpop.f32.mrb[0].mxu0
      %1751 = vmatprep.mubr.bf16.mxu0 %v767
      %1752 = vmatmul.mubr.bf16.gmra.mrb[0].mxu0 %v743
      %v1753 = vpop.f32.mrb[0].mxu0
      %v1754 = vadd.f32 %v1417, %v1753
      %v1755 = vpop.f32.mrb[0].mxu0
      %v1756 = vpop.f32.mrb[0].mxu0
      %v1757 = vadd.f32 %v1420, %v1756
      %v1758 = vpop.f32.mrb[0].mxu0
      %1759 = vdwg.mxu0
      %1760 = vmatprep.subr.bf16.mxu0 0
      %1761 = vmatpush1.bf16.msra.mxu0 %v1535
      %1762 = vmatprep.subr.bf16.mxu0 0
      %1763 = vmatpush1.bf16.msra.mxu0 %v1536
      %1764 = vmatprep.subr.bf16.mxu0 0
      %1765 = vmatpush1.bf16.msra.mxu0 %v1537
      %1766 = vmatprep.subr.bf16.mxu0 0
      %1767 = vmatpush1.bf16.msra.mxu0 %v1538
      %1768 = vmatprep.subr.bf16.mxu0 0
      %1769 = vmatpush1.bf16.msra.mxu0 %v1539
      %1770 = vmatprep.subr.bf16.mxu0 0
      %1771 = vmatpush1.bf16.msra.mxu0 %v1540
      %1772 = vmatprep.subr.bf16.mxu0 0
      %1773 = vmatpush1.bf16.msra.mxu0 %v1541
      %1774 = vmatprep.subr.bf16.mxu0 0
      %1775 = vmatpush1.bf16.msra.mxu0 %v1542
      %1776 = vmatprep.subr.bf16.mxu0 0
      %1777 = vmatpush1.bf16.msra.mxu0 0
      %1778 = vmatprep.subr.bf16.mxu0 0
      %1779 = vmatpush1.bf16.msra.mxu0 0
      %1780 = vmatprep.subr.bf16.mxu0 0
      %1781 = vmatpush1.bf16.msra.mxu0 0
      %1782 = vmatprep.subr.bf16.mxu0 0
      %1783 = vmatpush1.bf16.msra.mxu0 0
      %1784 = vmatprep.subr.bf16.mxu0 0
      %1785 = vmatpush1.bf16.msra.mxu0 0
      %1786 = vmatprep.subr.bf16.mxu0 0
      %1787 = vmatpush1.bf16.msra.mxu0 0
      %1788 = vmatprep.subr.bf16.mxu0 0
      %1789 = vmatpush1.bf16.msra.mxu0 0
      %1790 = vmatprep.subr.bf16.mxu0 0
      %1791 = vmatpush1.bf16.msra.mxu0 0
      %1792 = vmatprep.mubr.bf16.mxu0 0
      %1793 = vmatmul.mubr.bf16.gmra.mrb[0].mxu0 %v772
      %v1794 = vpop.f32.mrb[0].mxu0
      %v1795 = vadd.f32 %v1602, %v1794
      %v1796 = vpop.f32.mrb[0].mxu0
      %v1797 = vpop.f32.mrb[0].mxu0
      %v1798 = vadd.f32 %v1605, %v1797
      %v1799 = vpop.f32.mrb[0].mxu0
      %1800 = vmatprep.mubr.bf16.mxu0 0
      %1801 = vmatmul.mubr.bf16.gmra.mrb[0].mxu0 %v773
      %v1802 = vpop.f32.mrb[0].mxu0
      %v1803 = vadd.f32 %v1610, %v1802
      %v1804 = vpop.f32.mrb[0].mxu0
      %v1805 = vpop.f32.mrb[0].mxu0
      %v1806 = vadd.f32 %v1613, %v1805
      %v1807 = vpop.f32.mrb[0].mxu0
      %1808 = vmatprep.mubr.bf16.mxu0 0
      %1809 = vmatmul.mubr.bf16.gmra.mrb[0].mxu0 %v774
      %v1810 = vpop.f32.mrb[0].mxu0
      %v1811 = vadd.f32 %v1618, %v1810
      %v1812 = vpop.f32.mrb[0].mxu0
      %v1813 = vpop.f32.mrb[0].mxu0
      %v1814 = vadd.f32 %v1621, %v1813
      %v1815 = vpop.f32.mrb[0].mxu0
      %1816 = vmatprep.mubr.bf16.mxu0 0
      %1817 = vmatmul.mubr.bf16.gmra.mrb[0].mxu0 %v775
      %v1818 = vpop.f32.mrb[0].mxu0
      %v1819 = vadd.f32 %v1626, %v1818
      %v1820 = vpop.f32.mrb[0].mxu0
      %v1821 = vpop.f32.mrb[0].mxu0
      %v1822 = vadd.f32 %v1629, %v1821
      %v1823 = vpop.f32.mrb[0].mxu0
      %1824 = vmatprep.mubr.bf16.mxu0 0
      %1825 = vmatmul.mubr.bf16.gmra.mrb[0].mxu0 %v776
      %v1826 = vpop.f32.mrb[0].mxu0
      %v1827 = vadd.f32 %v1634, %v1826
      %v1828 = vpop.f32.mrb[0].mxu0
      %v1829 = vpop.f32.mrb[0].mxu0
      %v1830 = vadd.f32 %v1637, %v1829
      %v1831 = vpop.f32.mrb[0].mxu0
      %1832 = vmatprep.mubr.bf16.mxu0 0
      %1833 = vmatmul.mubr.bf16.gmra.mrb[0].mxu0 %v777
      %v1834 = vpop.f32.mrb[0].mxu0
      %v1835 = vadd.f32 %v1642, %v1834
      %v1836 = vpop.f32.mrb[0].mxu0
      %v1837 = vpop.f32.mrb[0].mxu0
      %v1838 = vadd.f32 %v1645, %v1837
      %v1839 = vpop.f32.mrb[0].mxu0
      %1840 = vmatprep.mubr.bf16.mxu0 0
      %1841 = vmatmul.mubr.bf16.gmra.mrb[0].mxu0 %v778
      %v1842 = vpop.f32.mrb[0].mxu0
      %v1843 = vadd.f32 %v1650, %v1842
      %v1844 = vpop.f32.mrb[0].mxu0
      %v1845 = vpop.f32.mrb[0].mxu0
      %v1846 = vadd.f32 %v1653, %v1845
      %v1847 = vpop.f32.mrb[0].mxu0
      %1848 = vmatprep.mubr.bf16.mxu0 0
      %1849 = vmatmul.mubr.bf16.gmra.mrb[0].mxu0 %v779
      %v1850 = vpop.f32.mrb[0].mxu0
      %v1851 = vadd.f32 %v1658, %v1850
      %v1852 = vpop.f32.mrb[0].mxu0
      %v1853 = vpop.f32.mrb[0].mxu0
      %v1854 = vadd.f32 %v1661, %v1853
      %v1855 = vpop.f32.mrb[0].mxu0
      %1856 = vmatprep.mubr.bf16.mxu0 0
      %1857 = vmatmul.mubr.bf16.gmra.mrb[0].mxu0 %v780
      %v1858 = vpop.f32.mrb[0].mxu0
      %v1859 = vadd.f32 %v1666, %v1858
      %v1860 = vpop.f32.mrb[0].mxu0
      %v1861 = vpop.f32.mrb[0].mxu0
      %v1862 = vadd.f32 %v1669, %v1861
      %v1863 = vpop.f32.mrb[0].mxu0
      %1864 = vmatprep.mubr.bf16.mxu0 0
      %1865 = vmatmul.mubr.bf16.gmra.mrb[0].mxu0 %v781
      %v1866 = vpop.f32.mrb[0].mxu0
      %v1867 = vadd.f32 %v1674, %v1866
      %v1868 = vpop.f32.mrb[0].mxu0
      %v1869 = vpop.f32.mrb[0].mxu0
      %v1870 = vadd.f32 %v1677, %v1869
      %v1871 = vpop.f32.mrb[0].mxu0
      %1872 = vmatprep.mubr.bf16.mxu0 0
      %1873 = vmatmul.mubr.bf16.gmra.mrb[0].mxu0 %v782
      %v1874 = vpop.f32.mrb[0].mxu0
      %v1875 = vadd.f32 %v1682, %v1874
      %v1876 = vpop.f32.mrb[0].mxu0
      %v1877 = vpop.f32.mrb[0].mxu0
      %v1878 = vadd.f32 %v1685, %v1877
      %v1879 = vpop.f32.mrb[0].mxu0
      %1880 = vmatprep.mubr.bf16.mxu0 0
      %1881 = vmatmul.mubr.bf16.gmra.mrb[0].mxu0 %v783
      %v1882 = vpop.f32.mrb[0].mxu0
      %v1883 = vadd.f32 %v1690, %v1882
      %v1884 = vpop.f32.mrb[0].mxu0
      %v1885 = vpop.f32.mrb[0].mxu0
      %v1886 = vadd.f32 %v1693, %v1885
      %v1887 = vpop.f32.mrb[0].mxu0
      %1888 = vmatprep.mubr.bf16.mxu0 0
      %1889 = vmatmul.mubr.bf16.gmra.mrb[0].mxu0 %v784
      %v1890 = vpop.f32.mrb[0].mxu0
      %v1891 = vadd.f32 %v1698, %v1890
      %v1892 = vpop.f32.mrb[0].mxu0
      %v1893 = vpop.f32.mrb[0].mxu0
      %v1894 = vadd.f32 %v1701, %v1893
      %v1895 = vpop.f32.mrb[0].mxu0
      %1896 = vmatprep.mubr.bf16.mxu0 0
      %1897 = vmatmul.mubr.bf16.gmra.mrb[0].mxu0 %v785
      %v1898 = vpop.f32.mrb[0].mxu0
      %v1899 = vadd.f32 %v1706, %v1898
      %v1900 = vpop.f32.mrb[0].mxu0
      %v1901 = vpop.f32.mrb[0].mxu0
      %v1902 = vadd.f32 %v1709, %v1901
      %v1903 = vpop.f32.mrb[0].mxu0
      %1904 = vmatprep.mubr.bf16.mxu0 0
      %1905 = vmatmul.mubr.bf16.gmra.mrb[0].mxu0 %v786
      %v1906 = vpop.f32.mrb[0].mxu0
      %v1907 = vadd.f32 %v1714, %v1906
      %v1908 = vpop.f32.mrb[0].mxu0
      %v1909 = vpop.f32.mrb[0].mxu0
      %v1910 = vadd.f32 %v1717, %v1909
      %v1911 = vpop.f32.mrb[0].mxu0
      %1912 = vmatprep.mubr.bf16.mxu0 0
      %1913 = vmatmul.mubr.bf16.gmra.mrb[0].mxu0 %v787
      %v1914 = vpop.f32.mrb[0].mxu0
      %v1915 = vadd.f32 %v1722, %v1914
      %v1916 = vpop.f32.mrb[0].mxu0
      %v1917 = vpop.f32.mrb[0].mxu0
      %v1918 = vadd.f32 %v1725, %v1917
      %v1919 = vpop.f32.mrb[0].mxu0
      %1920 = vmatprep.mubr.bf16.mxu0 0
      %1921 = vmatmul.mubr.bf16.gmra.mrb[0].mxu0 %v788
      %v1922 = vpop.f32.mrb[0].mxu0
      %v1923 = vadd.f32 %v1730, %v1922
      %v1924 = vpop.f32.mrb[0].mxu0
      %v1925 = vpop.f32.mrb[0].mxu0
      %v1926 = vadd.f32 %v1733, %v1925
      %v1927 = vpop.f32.mrb[0].mxu0
      %1928 = vmatprep.mubr.bf16.mxu0 0
      %1929 = vmatmul.mubr.bf16.gmra.mrb[0].mxu0 %v789
      %v1930 = vpop.f32.mrb[0].mxu0
      %v1931 = vadd.f32 %v1738, %v1930
      %v1932 = vpop.f32.mrb[0].mxu0
      %v1933 = vpop.f32.mrb[0].mxu0
      %v1934 = vadd.f32 %v1741, %v1933
      %v1935 = vpop.f32.mrb[0].mxu0
      %1936 = vmatprep.mubr.bf16.mxu0 0
      %1937 = vmatmul.mubr.bf16.gmra.mrb[0].mxu0 %v790
      %v1938 = vpop.f32.mrb[0].mxu0
      %v1939 = vadd.f32 %v1746, %v1938
      %v1940 = vpop.f32.mrb[0].mxu0
      %v1941 = vpop.f32.mrb[0].mxu0
      %v1942 = vadd.f32 %v1749, %v1941
      %v1943 = vpop.f32.mrb[0].mxu0
      %1944 = vmatprep.mubr.bf16.mxu0 0
      %1945 = vmatmul.mubr.bf16.gmra.mrb[0].mxu0 %v791
      %v1946 = vpop.f32.mrb[0].mxu0
      %v1947 = vadd.f32 %v1754, %v1946
      %v1948 = vpop.f32.mrb[0].mxu0
      %v1949 = vpop.f32.mrb[0].mxu0
      %v1950 = vadd.f32 %v1757, %v1949
      %v1951 = vpop.f32.mrb[0].mxu0
      %1952 = vdwg.mxu0
      %s1953 = scalar_lea.vmem %s1, 384
      %v1954 = vld [vmem:[%s1953] sm:$0xf]
      %v1955 = vld [vmem:[%s1953 + $0x4] sm:$0xf]
      %v1956 = vld [vmem:[%s1953 + $0x8] sm:$0xf]
      %v1957 = vld [vmem:[%s1953 + $0xc] sm:$0xf]
      %v1958 = vld [vmem:[%s1953 + $0x10] sm:$0xf]
      %v1959 = vld [vmem:[%s1953 + $0x14] sm:$0xf]
      %v1960 = vld [vmem:[%s1953 + $0x18] sm:$0xf]
      %v1961 = vld [vmem:[%s1953 + $0x1c] sm:$0xf]
      %v1962 = vld [vmem:[%s1953 + $0x20] sm:$0xf]
      %v1963 = vld [vmem:[%s1953 + $0x24] sm:$0xf]
      %v1964 = vld [vmem:[%s1953 + $0x28] sm:$0xf]
      %v1965 = vld [vmem:[%s1953 + $0x2c] sm:$0xf]
      %v1966 = vld [vmem:[%s1953 + $0x30] sm:$0xf]
      %v1967 = vld [vmem:[%s1953 + $0x34] sm:$0xf]
      %v1968 = vld [vmem:[%s1953 + $0x38] sm:$0xf]
      %v1969 = vld [vmem:[%s1953 + $0x3c] sm:$0xf]
      %v1970 = vld [vmem:[%s1953 + $0x40] sm:$0xf]
      %v1971 = vld [vmem:[%s1953 + $0x44] sm:$0xf]
      %v1972 = vld [vmem:[%s1953 + $0x48] sm:$0xf]
      %v1973 = vld [vmem:[%s1953 + $0x4c] sm:$0xf]
      %v1974 = vld [vmem:[%s1953 + $0x50] sm:$0xf]
      %v1975 = vld [vmem:[%s1953 + $0x54] sm:$0xf]
      %v1976 = vld [vmem:[%s1953 + $0x58] sm:$0xf]
      %v1977 = vld [vmem:[%s1953 + $0x5c] sm:$0xf]
      %v1978 = vld [vmem:[%s1953 + $0x60] sm:$0xf]
      %v1979 = vld [vmem:[%s1953 + $0x64] sm:$0xf]
      %v1980 = vld [vmem:[%s1953 + $0x68] sm:$0xf]
      %v1981 = vld [vmem:[%s1953 + $0x6c] sm:$0xf]
      %v1982 = vld [vmem:[%s1953 + $0x70] sm:$0xf]
      %v1983 = vld [vmem:[%s1953 + $0x74] sm:$0xf]
      %v1984 = vld [vmem:[%s1953 + $0x78] sm:$0xf]
      %v1985 = vld [vmem:[%s1953 + $0x7c] sm:$0xf]
      %v1986 = vld [vmem:[%s1953 + $0x80] sm:$0xf]
      %v1987 = vld [vmem:[%s1953 + $0x84] sm:$0xf]
      %v1988 = vld [vmem:[%s1953 + $0x88] sm:$0xf]
      %v1989 = vld [vmem:[%s1953 + $0x8c] sm:$0xf]
      %v1990 = vld [vmem:[%s1953 + $0x90] sm:$0xf]
      %v1991 = vld [vmem:[%s1953 + $0x94] sm:$0xf]
      %v1992 = vld [vmem:[%s1953 + $0x98] sm:$0xf]
      %v1993 = vld [vmem:[%s1953 + $0x9c] sm:$0xf]
      %v1994 = vld [vmem:[%s1953 + $0xa0] sm:$0xf]
      %v1995 = vld [vmem:[%s1953 + $0xa4] sm:$0xf]
      %v1996 = vld [vmem:[%s1953 + $0xa8] sm:$0xf]
      %v1997 = vld [vmem:[%s1953 + $0xac] sm:$0xf]
      %v1998 = vld [vmem:[%s1953 + $0xb0] sm:$0xf]
      %v1999 = vld [vmem:[%s1953 + $0xb4] sm:$0xf]
      %v2000 = vld [vmem:[%s1953 + $0xb8] sm:$0xf]
      %v2001 = vld [vmem:[%s1953 + $0xbc] sm:$0xf]
      %v2050 = vunpack.c.l.b16 %v1954
      %v2051 = vunpack.c.l.b16 %v1955
      %v2052 = vunpack.c.l.b16 %v1956
      %v2053 = vunpack.c.l.b16 %v1957
      %v2054 = vunpack.c.l.b16 %v1958
      %v2055 = vunpack.c.l.b16 %v1959
      %v2056 = vunpack.c.l.b16 %v1960
      %v2057 = vunpack.c.l.b16 %v1961
      %v2058 = vunpack.c.l.b16 %v1962
      %v2059 = vunpack.c.l.b16 %v1963
      %v2060 = vunpack.c.l.b16 %v1964
      %v2061 = vunpack.c.l.b16 %v1965
      %v2062 = vunpack.c.l.b16 %v1966
      %v2063 = vunpack.c.l.b16 %v1967
      %v2064 = vunpack.c.l.b16 %v1968
      %v2065 = vunpack.c.l.b16 %v1969
      %v2066 = vunpack.c.l.b16 %v1970
      %v2067 = vunpack.c.l.b16 %v1971
      %v2068 = vunpack.c.l.b16 %v1972
      %v2069 = vunpack.c.l.b16 %v1973
      %v2070 = vunpack.c.l.b16 %v1974
      %v2071 = vunpack.c.l.b16 %v1975
      %v2072 = vunpack.c.l.b16 %v1976
      %v2073 = vunpack.c.l.b16 %v1977
      %v2074 = vunpack.c.l.b16 %v1978
      %v2075 = vunpack.c.l.b16 %v1979
      %v2076 = vunpack.c.l.b16 %v1980
      %v2077 = vunpack.c.l.b16 %v1981
      %v2078 = vunpack.c.l.b16 %v1982
      %v2079 = vunpack.c.l.b16 %v1983
      %v2080 = vunpack.c.l.b16 %v1984
      %v2081 = vunpack.c.l.b16 %v1985
      %v2082 = vunpack.c.l.b16 %v1986
      %v2083 = vunpack.c.l.b16 %v1987
      %v2084 = vunpack.c.l.b16 %v1988
      %v2085 = vunpack.c.l.b16 %v1989
      %v2086 = vunpack.c.l.b16 %v1990
      %v2087 = vunpack.c.l.b16 %v1991
      %v2088 = vunpack.c.l.b16 %v1992
      %v2089 = vunpack.c.l.b16 %v1993
      %v2090 = vunpack.c.l.b16 %v1994
      %v2091 = vunpack.c.l.b16 %v1995
      %v2092 = vunpack.c.l.b16 %v1996
      %v2093 = vunpack.c.l.b16 %v1997
      %v2094 = vunpack.c.l.b16 %v1998
      %v2095 = vunpack.c.l.b16 %v1999
      %v2096 = vunpack.c.l.b16 %v2000
      %v2097 = vunpack.c.l.b16 %v2001
      %v2098 = vpack.c.b16 %v2051, %v2050
      %v2099 = vpack.c.b16 %v2053, %v2052
      %v2100 = vpack.c.b16 %v2055, %v2054
      %v2101 = vpack.c.b16 %v2057, %v2056
      %v2102 = vpack.c.b16 %v2059, %v2058
      %v2103 = vpack.c.b16 %v2061, %v2060
      %v2104 = vpack.c.b16 %v2063, %v2062
      %v2105 = vpack.c.b16 %v2065, %v2064
      %v2106 = vpack.c.b16 %v2067, %v2066
      %v2107 = vpack.c.b16 %v2069, %v2068
      %v2108 = vpack.c.b16 %v2071, %v2070
      %v2109 = vpack.c.b16 %v2073, %v2072
      %v2110 = vpack.c.b16 %v2075, %v2074
      %v2111 = vpack.c.b16 %v2077, %v2076
      %v2112 = vpack.c.b16 %v2079, %v2078
      %v2113 = vpack.c.b16 %v2081, %v2080
      %v2114 = vpack.c.b16 %v2083, %v2082
      %v2115 = vpack.c.b16 %v2085, %v2084
      %v2116 = vpack.c.b16 %v2087, %v2086
      %v2117 = vpack.c.b16 %v2089, %v2088
      %v2118 = vpack.c.b16 %v2091, %v2090
      %v2119 = vpack.c.b16 %v2093, %v2092
      %v2120 = vpack.c.b16 %v2095, %v2094
      %v2121 = vpack.c.b16 %v2097, %v2096
      %2146 = vmatprep.subr.bf16.mxu0 0
      %2147 = vmatpush1.bf16.msra.mxu0 %v2098
      %2148 = vmatprep.subr.bf16.mxu0 0
      %2149 = vmatpush1.bf16.msra.mxu0 %v2099
      %2150 = vmatprep.subr.bf16.mxu0 0
      %2151 = vmatpush1.bf16.msra.mxu0 %v2100
      %2152 = vmatprep.subr.bf16.mxu0 0
      %2153 = vmatpush1.bf16.msra.mxu0 %v2101
      %2154 = vmatprep.subr.bf16.mxu0 0
      %2155 = vmatpush1.bf16.msra.mxu0 %v2102
      %2156 = vmatprep.subr.bf16.mxu0 0
      %2157 = vmatpush1.bf16.msra.mxu0 %v2103
      %2158 = vmatprep.subr.bf16.mxu0 0
      %2159 = vmatpush1.bf16.msra.mxu0 %v2104
      %2160 = vmatprep.subr.bf16.mxu0 0
      %2161 = vmatpush1.bf16.msra.mxu0 %v2105
      %2162 = vmatprep.subr.bf16.mxu0 0
      %2163 = vmatpush1.bf16.msra.mxu0 %v2106
      %2164 = vmatprep.subr.bf16.mxu0 0
      %2165 = vmatpush1.bf16.msra.mxu0 %v2107
      %2166 = vmatprep.subr.bf16.mxu0 0
      %2167 = vmatpush1.bf16.msra.mxu0 %v2108
      %2168 = vmatprep.subr.bf16.mxu0 0
      %2169 = vmatpush1.bf16.msra.mxu0 %v2109
      %2170 = vmatprep.subr.bf16.mxu0 0
      %2171 = vmatpush1.bf16.msra.mxu0 %v2110
      %2172 = vmatprep.subr.bf16.mxu0 0
      %2173 = vmatpush1.bf16.msra.mxu0 %v2111
      %2174 = vmatprep.subr.bf16.mxu0 0
      %2175 = vmatpush1.bf16.msra.mxu0 %v2112
      %2176 = vmatprep.subr.bf16.mxu0 0
      %2177 = vmatpush1.bf16.msra.mxu0 %v2113
      %2178 = vmatprep.mubr.bf16.mxu0 %v752
      %2179 = vmatmul.mubr.bf16.gmra.mrb[0].mxu0 %v728
      %v2180 = vpop.f32.mrb[0].mxu0
      %v2181 = vadd.f32 0.0, %v2180
      %v2182 = vpop.f32.mrb[0].mxu0
      %v2183 = vpop.f32.mrb[0].mxu0
      %v2184 = vadd.f32 0.0, %v2183
      %v2185 = vpop.f32.mrb[0].mxu0
      %2186 = vmatprep.mubr.bf16.mxu0 %v753
      %2187 = vmatmul.mubr.bf16.gmra.mrb[0].mxu0 %v729
      %v2188 = vpop.f32.mrb[0].mxu0
      %v2189 = vadd.f32 0.0, %v2188
      %v2190 = vpop.f32.mrb[0].mxu0
      %v2191 = vpop.f32.mrb[0].mxu0
      %v2192 = vadd.f32 0.0, %v2191
      %v2193 = vpop.f32.mrb[0].mxu0
      %2194 = vmatprep.mubr.bf16.mxu0 %v754
      %2195 = vmatmul.mubr.bf16.gmra.mrb[0].mxu0 %v730
      %v2196 = vpop.f32.mrb[0].mxu0
      %v2197 = vadd.f32 0.0, %v2196
      %v2198 = vpop.f32.mrb[0].mxu0
      %v2199 = vpop.f32.mrb[0].mxu0
      %v2200 = vadd.f32 0.0, %v2199
      %v2201 = vpop.f32.mrb[0].mxu0
      %2202 = vmatprep.mubr.bf16.mxu0 %v755
      %2203 = vmatmul.mubr.bf16.gmra.mrb[0].mxu0 %v731
      %v2204 = vpop.f32.mrb[0].mxu0
      %v2205 = vadd.f32 0.0, %v2204
      %v2206 = vpop.f32.mrb[0].mxu0
      %v2207 = vpop.f32.mrb[0].mxu0
      %v2208 = vadd.f32 0.0, %v2207
      %v2209 = vpop.f32.mrb[0].mxu0
      %2210 = vmatprep.mubr.bf16.mxu0 %v756
      %2211 = vmatmul.mubr.bf16.gmra.mrb[0].mxu0 %v732
      %v2212 = vpop.f32.mrb[0].mxu0
      %v2213 = vadd.f32 0.0, %v2212
      %v2214 = vpop.f32.mrb[0].mxu0
      %v2215 = vpop.f32.mrb[0].mxu0
      %v2216 = vadd.f32 0.0, %v2215
      %v2217 = vpop.f32.mrb[0].mxu0
      %2218 = vmatprep.mubr.bf16.mxu0 %v757
      %2219 = vmatmul.mubr.bf16.gmra.mrb[0].mxu0 %v733
      %v2220 = vpop.f32.mrb[0].mxu0
      %v2221 = vadd.f32 0.0, %v2220
      %v2222 = vpop.f32.mrb[0].mxu0
      %v2223 = vpop.f32.mrb[0].mxu0
      %v2224 = vadd.f32 0.0, %v2223
      %v2225 = vpop.f32.mrb[0].mxu0
      %2226 = vmatprep.mubr.bf16.mxu0 %v758
      %2227 = vmatmul.mubr.bf16.gmra.mrb[0].mxu0 %v734
      %v2228 = vpop.f32.mrb[0].mxu0
      %v2229 = vadd.f32 0.0, %v2228
      %v2230 = vpop.f32.mrb[0].mxu0
      %v2231 = vpop.f32.mrb[0].mxu0
      %v2232 = vadd.f32 0.0, %v2231
      %v2233 = vpop.f32.mrb[0].mxu0
      %2234 = vmatprep.mubr.bf16.mxu0 %v759
      %2235 = vmatmul.mubr.bf16.gmra.mrb[0].mxu0 %v735
      %v2236 = vpop.f32.mrb[0].mxu0
      %v2237 = vadd.f32 0.0, %v2236
      %v2238 = vpop.f32.mrb[0].mxu0
      %v2239 = vpop.f32.mrb[0].mxu0
      %v2240 = vadd.f32 0.0, %v2239
      %v2241 = vpop.f32.mrb[0].mxu0
      %2242 = vmatprep.mubr.bf16.mxu0 %v760
      %2243 = vmatmul.mubr.bf16.gmra.mrb[0].mxu0 %v736
      %v2244 = vpop.f32.mrb[0].mxu0
      %v2245 = vadd.f32 0.0, %v2244
      %v2246 = vpop.f32.mrb[0].mxu0
      %v2247 = vpop.f32.mrb[0].mxu0
      %v2248 = vadd.f32 0.0, %v2247
      %v2249 = vpop.f32.mrb[0].mxu0
      %2250 = vmatprep.mubr.bf16.mxu0 %v761
      %2251 = vmatmul.mubr.bf16.gmra.mrb[0].mxu0 %v737
      %v2252 = vpop.f32.mrb[0].mxu0
      %v2253 = vadd.f32 0.0, %v2252
      %v2254 = vpop.f32.mrb[0].mxu0
      %v2255 = vpop.f32.mrb[0].mxu0
      %v2256 = vadd.f32 0.0, %v2255
      %v2257 = vpop.f32.mrb[0].mxu0
      %2258 = vmatprep.mubr.bf16.mxu0 %v762
      %2259 = vmatmul.mubr.bf16.gmra.mrb[0].mxu0 %v738
      %v2260 = vpop.f32.mrb[0].mxu0
      %v2261 = vadd.f32 0.0, %v2260
      %v2262 = vpop.f32.mrb[0].mxu0
      %v2263 = vpop.f32.mrb[0].mxu0
      %v2264 = vadd.f32 0.0, %v2263
      %v2265 = vpop.f32.mrb[0].mxu0
      %2266 = vmatprep.mubr.bf16.mxu0 %v763
      %2267 = vmatmul.mubr.bf16.gmra.mrb[0].mxu0 %v739
      %v2268 = vpop.f32.mrb[0].mxu0
      %v2269 = vadd.f32 0.0, %v2268
      %v2270 = vpop.f32.mrb[0].mxu0
      %v2271 = vpop.f32.mrb[0].mxu0
      %v2272 = vadd.f32 0.0, %v2271
      %v2273 = vpop.f32.mrb[0].mxu0
      %2274 = vmatprep.mubr.bf16.mxu0 %v764
      %2275 = vmatmul.mubr.bf16.gmra.mrb[0].mxu0 %v740
      %v2276 = vpop.f32.mrb[0].mxu0
      %v2277 = vadd.f32 0.0, %v2276
      %v2278 = vpop.f32.mrb[0].mxu0
      %v2279 = vpop.f32.mrb[0].mxu0
      %v2280 = vadd.f32 0.0, %v2279
      %v2281 = vpop.f32.mrb[0].mxu0
      %2282 = vmatprep.mubr.bf16.mxu0 %v765
      %2283 = vmatmul.mubr.bf16.gmra.mrb[0].mxu0 %v741
      %v2284 = vpop.f32.mrb[0].mxu0
      %v2285 = vadd.f32 0.0, %v2284
      %v2286 = vpop.f32.mrb[0].mxu0
      %v2287 = vpop.f32.mrb[0].mxu0
      %v2288 = vadd.f32 0.0, %v2287
      %v2289 = vpop.f32.mrb[0].mxu0
      %2290 = vmatprep.mubr.bf16.mxu0 %v766
      %2291 = vmatmul.mubr.bf16.gmra.mrb[0].mxu0 %v742
      %v2292 = vpop.f32.mrb[0].mxu0
      %v2293 = vadd.f32 0.0, %v2292
      %v2294 = vpop.f32.mrb[0].mxu0
      %v2295 = vpop.f32.mrb[0].mxu0
      %v2296 = vadd.f32 0.0, %v2295
      %v2297 = vpop.f32.mrb[0].mxu0
      %2298 = vmatprep.mubr.bf16.mxu0 %v767
      %2299 = vmatmul.mubr.bf16.gmra.mrb[0].mxu0 %v743
      %v2300 = vpop.f32.mrb[0].mxu0
      %v2301 = vadd.f32 0.0, %v2300
      %v2302 = vpop.f32.mrb[0].mxu0
      %v2303 = vpop.f32.mrb[0].mxu0
      %v2304 = vadd.f32 0.0, %v2303
      %v2305 = vpop.f32.mrb[0].mxu0
      %2306 = vmatprep.mubr.bf16.mxu0 %v768
      %2307 = vmatmul.mubr.bf16.gmra.mrb[0].mxu0 %v744
      %v2308 = vpop.f32.mrb[0].mxu0
      %v2309 = vadd.f32 0.0, %v2308
      %v2310 = vpop.f32.mrb[0].mxu0
      %v2311 = vpop.f32.mrb[0].mxu0
      %v2312 = vadd.f32 0.0, %v2311
      %v2313 = vpop.f32.mrb[0].mxu0
      %2314 = vmatprep.mubr.bf16.mxu0 %v769
      %2315 = vmatmul.mubr.bf16.gmra.mrb[0].mxu0 %v745
      %v2316 = vpop.f32.mrb[0].mxu0
      %v2317 = vadd.f32 0.0, %v2316
      %v2318 = vpop.f32.mrb[0].mxu0
      %v2319 = vpop.f32.mrb[0].mxu0
      %v2320 = vadd.f32 0.0, %v2319
      %v2321 = vpop.f32.mrb[0].mxu0
      %2322 = vmatprep.mubr.bf16.mxu0 %v770
      %2323 = vmatmul.mubr.bf16.gmra.mrb[0].mxu0 %v746
      %v2324 = vpop.f32.mrb[0].mxu0
      %v2325 = vadd.f32 0.0, %v2324
      %v2326 = vpop.f32.mrb[0].mxu0
      %v2327 = vpop.f32.mrb[0].mxu0
      %v2328 = vadd.f32 0.0, %v2327
      %v2329 = vpop.f32.mrb[0].mxu0
      %2330 = vmatprep.mubr.bf16.mxu0 %v771
      %2331 = vmatmul.mubr.bf16.gmra.mrb[0].mxu0 %v747
      %v2332 = vpop.f32.mrb[0].mxu0
      %v2333 = vadd.f32 0.0, %v2332
      %v2334 = vpop.f32.mrb[0].mxu0
      %v2335 = vpop.f32.mrb[0].mxu0
      %v2336 = vadd.f32 0.0, %v2335
      %v2337 = vpop.f32.mrb[0].mxu0
      %2338 = vdwg.mxu0
      %2339 = vmatprep.subr.bf16.mxu0 0
      %2340 = vmatpush1.bf16.msra.mxu0 %v2114
      %2341 = vmatprep.subr.bf16.mxu0 0
      %2342 = vmatpush1.bf16.msra.mxu0 %v2115
      %2343 = vmatprep.subr.bf16.mxu0 0
      %2344 = vmatpush1.bf16.msra.mxu0 %v2116
      %2345 = vmatprep.subr.bf16.mxu0 0
      %2346 = vmatpush1.bf16.msra.mxu0 %v2117
      %2347 = vmatprep.subr.bf16.mxu0 0
      %2348 = vmatpush1.bf16.msra.mxu0 %v2118
      %2349 = vmatprep.subr.bf16.mxu0 0
      %2350 = vmatpush1.bf16.msra.mxu0 %v2119
      %2351 = vmatprep.subr.bf16.mxu0 0
      %2352 = vmatpush1.bf16.msra.mxu0 %v2120
      %2353 = vmatprep.subr.bf16.mxu0 0
      %2354 = vmatpush1.bf16.msra.mxu0 %v2121
      %2355 = vmatprep.subr.bf16.mxu0 0
      %2356 = vmatpush1.bf16.msra.mxu0 0
      %2357 = vmatprep.subr.bf16.mxu0 0
      %2358 = vmatpush1.bf16.msra.mxu0 0
      %2359 = vmatprep.subr.bf16.mxu0 0
      %2360 = vmatpush1.bf16.msra.mxu0 0
      %2361 = vmatprep.subr.bf16.mxu0 0
      %2362 = vmatpush1.bf16.msra.mxu0 0
      %2363 = vmatprep.subr.bf16.mxu0 0
      %2364 = vmatpush1.bf16.msra.mxu0 0
      %2365 = vmatprep.subr.bf16.mxu0 0
      %2366 = vmatpush1.bf16.msra.mxu0 0
      %2367 = vmatprep.subr.bf16.mxu0 0
      %2368 = vmatpush1.bf16.msra.mxu0 0
      %2369 = vmatprep.subr.bf16.mxu0 0
      %2370 = vmatpush1.bf16.msra.mxu0 0
      %2371 = vmatprep.mubr.bf16.mxu0 0
      %2372 = vmatmul.mubr.bf16.gmra.mrb[0].mxu0 %v776
      %v2373 = vpop.f32.mrb[0].mxu0
      %v2374 = vadd.f32 %v2181, %v2373
      %v2375 = vpop.f32.mrb[0].mxu0
      %v2376 = vpop.f32.mrb[0].mxu0
      %v2377 = vadd.f32 %v2184, %v2376
      %v2378 = vpop.f32.mrb[0].mxu0
      %2379 = vmatprep.mubr.bf16.mxu0 0
      %2380 = vmatmul.mubr.bf16.gmra.mrb[0].mxu0 %v777
      %v2381 = vpop.f32.mrb[0].mxu0
      %v2382 = vadd.f32 %v2189, %v2381
      %v2383 = vpop.f32.mrb[0].mxu0
      %v2384 = vpop.f32.mrb[0].mxu0
      %v2385 = vadd.f32 %v2192, %v2384
      %v2386 = vpop.f32.mrb[0].mxu0
      %2387 = vmatprep.mubr.bf16.mxu0 0
      %2388 = vmatmul.mubr.bf16.gmra.mrb[0].mxu0 %v778
      %v2389 = vpop.f32.mrb[0].mxu0
      %v2390 = vadd.f32 %v2197, %v2389
      %v2391 = vpop.f32.mrb[0].mxu0
      %v2392 = vpop.f32.mrb[0].mxu0
      %v2393 = vadd.f32 %v2200, %v2392
      %v2394 = vpop.f32.mrb[0].mxu0
      %2395 = vmatprep.mubr.bf16.mxu0 0
      %2396 = vmatmul.mubr.bf16.gmra.mrb[0].mxu0 %v779
      %v2397 = vpop.f32.mrb[0].mxu0
      %v2398 = vadd.f32 %v2205, %v2397
      %v2399 = vpop.f32.mrb[0].mxu0
      %v2400 = vpop.f32.mrb[0].mxu0
      %v2401 = vadd.f32 %v2208, %v2400
      %v2402 = vpop.f32.mrb[0].mxu0
      %2403 = vmatprep.mubr.bf16.mxu0 0
      %2404 = vmatmul.mubr.bf16.gmra.mrb[0].mxu0 %v780
      %v2405 = vpop.f32.mrb[0].mxu0
      %v2406 = vadd.f32 %v2213, %v2405
      %v2407 = vpop.f32.mrb[0].mxu0
      %v2408 = vpop.f32.mrb[0].mxu0
      %v2409 = vadd.f32 %v2216, %v2408
      %v2410 = vpop.f32.mrb[0].mxu0
      %2411 = vmatprep.mubr.bf16.mxu0 0
      %2412 = vmatmul.mubr.bf16.gmra.mrb[0].mxu0 %v781
      %v2413 = vpop.f32.mrb[0].mxu0
      %v2414 = vadd.f32 %v2221, %v2413
      %v2415 = vpop.f32.mrb[0].mxu0
      %v2416 = vpop.f32.mrb[0].mxu0
      %v2417 = vadd.f32 %v2224, %v2416
      %v2418 = vpop.f32.mrb[0].mxu0
      %2419 = vmatprep.mubr.bf16.mxu0 0
      %2420 = vmatmul.mubr.bf16.gmra.mrb[0].mxu0 %v782
      %v2421 = vpop.f32.mrb[0].mxu0
      %v2422 = vadd.f32 %v2229, %v2421
      %v2423 = vpop.f32.mrb[0].mxu0
      %v2424 = vpop.f32.mrb[0].mxu0
      %v2425 = vadd.f32 %v2232, %v2424
      %v2426 = vpop.f32.mrb[0].mxu0
      %2427 = vmatprep.mubr.bf16.mxu0 0
      %2428 = vmatmul.mubr.bf16.gmra.mrb[0].mxu0 %v783
      %v2429 = vpop.f32.mrb[0].mxu0
      %v2430 = vadd.f32 %v2237, %v2429
      %v2431 = vpop.f32.mrb[0].mxu0
      %v2432 = vpop.f32.mrb[0].mxu0
      %v2433 = vadd.f32 %v2240, %v2432
      %v2434 = vpop.f32.mrb[0].mxu0
      %2435 = vmatprep.mubr.bf16.mxu0 0
      %2436 = vmatmul.mubr.bf16.gmra.mrb[0].mxu0 %v784
      %v2437 = vpop.f32.mrb[0].mxu0
      %v2438 = vadd.f32 %v2245, %v2437
      %v2439 = vpop.f32.mrb[0].mxu0
      %v2440 = vpop.f32.mrb[0].mxu0
      %v2441 = vadd.f32 %v2248, %v2440
      %v2442 = vpop.f32.mrb[0].mxu0
      %2443 = vmatprep.mubr.bf16.mxu0 0
      %2444 = vmatmul.mubr.bf16.gmra.mrb[0].mxu0 %v785
      %v2445 = vpop.f32.mrb[0].mxu0
      %v2446 = vadd.f32 %v2253, %v2445
      %v2447 = vpop.f32.mrb[0].mxu0
      %v2448 = vpop.f32.mrb[0].mxu0
      %v2449 = vadd.f32 %v2256, %v2448
      %v2450 = vpop.f32.mrb[0].mxu0
      %2451 = vmatprep.mubr.bf16.mxu0 0
      %2452 = vmatmul.mubr.bf16.gmra.mrb[0].mxu0 %v786
      %v2453 = vpop.f32.mrb[0].mxu0
      %v2454 = vadd.f32 %v2261, %v2453
      %v2455 = vpop.f32.mrb[0].mxu0
      %v2456 = vpop.f32.mrb[0].mxu0
      %v2457 = vadd.f32 %v2264, %v2456
      %v2458 = vpop.f32.mrb[0].mxu0
      %2459 = vmatprep.mubr.bf16.mxu0 0
      %2460 = vmatmul.mubr.bf16.gmra.mrb[0].mxu0 %v787
      %v2461 = vpop.f32.mrb[0].mxu0
      %v2462 = vadd.f32 %v2269, %v2461
      %v2463 = vpop.f32.mrb[0].mxu0
      %v2464 = vpop.f32.mrb[0].mxu0
      %v2465 = vadd.f32 %v2272, %v2464
      %v2466 = vpop.f32.mrb[0].mxu0
      %2467 = vmatprep.mubr.bf16.mxu0 0
      %2468 = vmatmul.mubr.bf16.gmra.mrb[0].mxu0 %v788
      %v2469 = vpop.f32.mrb[0].mxu0
      %v2470 = vadd.f32 %v2277, %v2469
      %v2471 = vpop.f32.mrb[0].mxu0
      %v2472 = vpop.f32.mrb[0].mxu0
      %v2473 = vadd.f32 %v2280, %v2472
      %v2474 = vpop.f32.mrb[0].mxu0
      %2475 = vmatprep.mubr.bf16.mxu0 0
      %2476 = vmatmul.mubr.bf16.gmra.mrb[0].mxu0 %v789
      %v2477 = vpop.f32.mrb[0].mxu0
      %v2478 = vadd.f32 %v2285, %v2477
      %v2479 = vpop.f32.mrb[0].mxu0
      %v2480 = vpop.f32.mrb[0].mxu0
      %v2481 = vadd.f32 %v2288, %v2480
      %v2482 = vpop.f32.mrb[0].mxu0
      %2483 = vmatprep.mubr.bf16.mxu0 0
      %2484 = vmatmul.mubr.bf16.gmra.mrb[0].mxu0 %v790
      %v2485 = vpop.f32.mrb[0].mxu0
      %v2486 = vadd.f32 %v2293, %v2485
      %v2487 = vpop.f32.mrb[0].mxu0
      %v2488 = vpop.f32.mrb[0].mxu0
      %v2489 = vadd.f32 %v2296, %v2488
      %v2490 = vpop.f32.mrb[0].mxu0
      %2491 = vmatprep.mubr.bf16.mxu0 0
      %2492 = vmatmul.mubr.bf16.gmra.mrb[0].mxu0 %v791
      %v2493 = vpop.f32.mrb[0].mxu0
      %v2494 = vadd.f32 %v2301, %v2493
      %v2495 = vpop.f32.mrb[0].mxu0
      %v2496 = vpop.f32.mrb[0].mxu0
      %v2497 = vadd.f32 %v2304, %v2496
      %v2498 = vpop.f32.mrb[0].mxu0
      %2499 = vmatprep.mubr.bf16.mxu0 0
      %2500 = vmatmul.mubr.bf16.gmra.mrb[0].mxu0 %v792
      %v2501 = vpop.f32.mrb[0].mxu0
      %v2502 = vadd.f32 %v2309, %v2501
      %v2503 = vpop.f32.mrb[0].mxu0
      %v2504 = vpop.f32.mrb[0].mxu0
      %v2505 = vadd.f32 %v2312, %v2504
      %v2506 = vpop.f32.mrb[0].mxu0
      %2507 = vmatprep.mubr.bf16.mxu0 0
      %2508 = vmatmul.mubr.bf16.gmra.mrb[0].mxu0 %v793
      %v2509 = vpop.f32.mrb[0].mxu0
      %v2510 = vadd.f32 %v2317, %v2509
      %v2511 = vpop.f32.mrb[0].mxu0
      %v2512 = vpop.f32.mrb[0].mxu0
      %v2513 = vadd.f32 %v2320, %v2512
      %v2514 = vpop.f32.mrb[0].mxu0
      %2515 = vmatprep.mubr.bf16.mxu0 0
      %2516 = vmatmul.mubr.bf16.gmra.mrb[0].mxu0 %v794
      %v2517 = vpop.f32.mrb[0].mxu0
      %v2518 = vadd.f32 %v2325, %v2517
      %v2519 = vpop.f32.mrb[0].mxu0
      %v2520 = vpop.f32.mrb[0].mxu0
      %v2521 = vadd.f32 %v2328, %v2520
      %v2522 = vpop.f32.mrb[0].mxu0
      %2523 = vmatprep.mubr.bf16.mxu0 0
      %2524 = vmatmul.mubr.bf16.gmra.mrb[0].mxu0 %v795
      %v2525 = vpop.f32.mrb[0].mxu0
      %v2526 = vadd.f32 %v2333, %v2525
      %v2527 = vpop.f32.mrb[0].mxu0
      %v2528 = vpop.f32.mrb[0].mxu0
      %v2529 = vadd.f32 %v2336, %v2528
      %v2530 = vpop.f32.mrb[0].mxu0
      %2531 = vdwg.mxu0
      %v2532 = vadd.f32 %v1795, %v2374
      %v2533 = vadd.f32 %v1798, %v2377
      %v2534 = vadd.f32 %v1803, %v2382
      %v2535 = vadd.f32 %v1806, %v2385
      %v2536 = vadd.f32 %v1811, %v2390
      %v2537 = vadd.f32 %v1814, %v2393
      %v2538 = vadd.f32 %v1819, %v2398
      %v2539 = vadd.f32 %v1822, %v2401
      %v2540 = vadd.f32 %v1827, %v2406
      %v2541 = vadd.f32 %v1830, %v2409
      %v2542 = vadd.f32 %v1835, %v2414
      %v2543 = vadd.f32 %v1838, %v2417
      %v2544 = vadd.f32 %v1843, %v2422
      %v2545 = vadd.f32 %v1846, %v2425
      %v2546 = vadd.f32 %v1851, %v2430
      %v2547 = vadd.f32 %v1854, %v2433
      %v2548 = vadd.f32 %v1859, %v2438
      %v2549 = vadd.f32 %v1862, %v2441
      %v2550 = vadd.f32 %v1867, %v2446
      %v2551 = vadd.f32 %v1870, %v2449
      %v2552 = vadd.f32 %v1875, %v2454
      %v2553 = vadd.f32 %v1878, %v2457
      %v2554 = vadd.f32 %v1883, %v2462
      %v2555 = vadd.f32 %v1886, %v2465
      %v2556 = vadd.f32 %v1891, %v2470
      %v2557 = vadd.f32 %v1894, %v2473
      %v2558 = vadd.f32 %v1899, %v2478
      %v2559 = vadd.f32 %v1902, %v2481
      %v2560 = vadd.f32 %v1907, %v2486
      %v2561 = vadd.f32 %v1910, %v2489
      %v2562 = vadd.f32 %v1915, %v2494
      %v2563 = vadd.f32 %v1918, %v2497
      %v2564 = vadd.f32 %v1923, %v2502
      %v2565 = vadd.f32 %v1926, %v2505
      %v2566 = vadd.f32 %v1931, %v2510
      %v2567 = vadd.f32 %v1934, %v2513
      %v2568 = vadd.f32 %v1939, %v2518
      %v2569 = vadd.f32 %v1942, %v2521
      %v2570 = vadd.f32 %v1947, %v2526
      %v2571 = vadd.f32 %v1950, %v2529
      %2572 = vst [vmem:[%s159] sm:$0xff] %v2532
      %2573 = vst [vmem:[%s159 + $0x8] sm:$0xff] %v2533
      %2574 = vst [vmem:[%s159 + $0x10] sm:$0xff] %v2534
      %2575 = vst [vmem:[%s159 + $0x18] sm:$0xff] %v2535
      %2576 = vst [vmem:[%s159 + $0x20] sm:$0xff] %v2536
      %2577 = vst [vmem:[%s159 + $0x28] sm:$0xff] %v2537
      %2578 = vst [vmem:[%s159 + $0x30] sm:$0xff] %v2538
      %2579 = vst [vmem:[%s159 + $0x38] sm:$0xff] %v2539
      %2580 = vst [vmem:[%s159 + $0x40] sm:$0xff] %v2540
      %2581 = vst [vmem:[%s159 + $0x48] sm:$0xff] %v2541
      %2582 = vst [vmem:[%s159 + $0x50] sm:$0xff] %v2542
      %2583 = vst [vmem:[%s159 + $0x58] sm:$0xff] %v2543
      %2584 = vst [vmem:[%s159 + $0x60] sm:$0xff] %v2544
      %2585 = vst [vmem:[%s159 + $0x68] sm:$0xff] %v2545
      %2586 = vst [vmem:[%s159 + $0x70] sm:$0xff] %v2546
      %2587 = vst [vmem:[%s159 + $0x78] sm:$0xff] %v2547
      %2588 = vst [vmem:[%s159 + $0x80] sm:$0xff] %v2548
      %2589 = vst [vmem:[%s159 + $0x88] sm:$0xff] %v2549
      %2590 = vst [vmem:[%s159 + $0x90] sm:$0xff] %v2550
      %2591 = vst [vmem:[%s159 + $0x98] sm:$0xff] %v2551
      %2592 = vst [vmem:[%s159 + $0xa0] sm:$0xff] %v2552
      %2593 = vst [vmem:[%s159 + $0xa8] sm:$0xff] %v2553
      %2594 = vst [vmem:[%s159 + $0xb0] sm:$0xff] %v2554
      %2595 = vst [vmem:[%s159 + $0xb8] sm:$0xff] %v2555
      %2596 = vst [vmem:[%s159 + $0xc0] sm:$0xff] %v2556
      %2597 = vst [vmem:[%s159 + $0xc8] sm:$0xff] %v2557
      %2598 = vst [vmem:[%s159 + $0xd0] sm:$0xff] %v2558
      %2599 = vst [vmem:[%s159 + $0xd8] sm:$0xff] %v2559
      %2600 = vst [vmem:[%s159 + $0xe0] sm:$0xff] %v2560
      %2601 = vst [vmem:[%s159 + $0xe8] sm:$0xff] %v2561
      %2602 = vst [vmem:[%s159 + $0xf0] sm:$0xff] %v2562
      %2603 = vst [vmem:[%s159 + $0xf8] sm:$0xff] %v2563
      %2604 = vst [vmem:[%s159 + $0x100] sm:$0xff] %v2564
      %2605 = vst [vmem:[%s159 + $0x108] sm:$0xff] %v2565
      %2606 = vst [vmem:[%s159 + $0x110] sm:$0xff] %v2566
      %2607 = vst [vmem:[%s159 + $0x118] sm:$0xff] %v2567
      %2608 = vst [vmem:[%s159 + $0x120] sm:$0xff] %v2568
      %2609 = vst [vmem:[%s159 + $0x128] sm:$0xff] %v2569
      %2610 = vst [vmem:[%s159 + $0x130] sm:$0xff] %v2570
      %2611 = vst [vmem:[%s159 + $0x138] sm:$0xff] %v2571
      %v2612 = vadd.f32 %v2537, %v2538
      %v2613 = vadd.f32 %v2612, %v2541
      %v2614 = vadd.f32 %v2613, %v2542
      %v2615 = vadd.f32 %v2614, %v2545
      %v2616 = vadd.f32 %v2615, %v2546
      %v2617 = vadd.f32 %v2616, %v2549
      %v2618 = vadd.f32 %v2617, %v2550
      %v2619 = vadd.f32 %v2618, %v2553
      %v2620 = vadd.f32 %v2619, %v2554
      %v2621 = vadd.f32 %v2620, %v2557
      %v2622 = vadd.f32 %v2621, %v2558
      %v2623 = vadd.f32 %v2622, %v2561
      %v2624 = vadd.f32 %v2623, %v2562
      %v2625 = vadd.f32 %v2624, %v2565
      %v2626 = vadd.f32 %v2625, %v2566
      %v2627 = vrot.slane %v2626, 4
      %v2628 = vadd.f32 %v2626, %v2627
      %v2629 = vrot.slane %v2628, 2
      %v2630 = vadd.f32 %v2628, %v2629
      %v2631 = vrot.slane %v2630, 1
      %v2632 = vadd.f32 %v2630, %v2631
      %v2633 = vmul.f32 %v2537, %v2537
      %v2634 = vmul.f32 %v2538, %v2538
      %v2635 = vmul.f32 %v2541, %v2541
      %v2636 = vmul.f32 %v2542, %v2542
      %v2637 = vmul.f32 %v2545, %v2545
      %v2638 = vmul.f32 %v2546, %v2546
      %v2639 = vmul.f32 %v2549, %v2549
      %v2640 = vmul.f32 %v2550, %v2550
      %v2641 = vmul.f32 %v2553, %v2553
      %v2642 = vmul.f32 %v2554, %v2554
      %v2643 = vmul.f32 %v2557, %v2557
      %v2644 = vmul.f32 %v2558, %v2558
      %v2645 = vmul.f32 %v2561, %v2561
      %v2646 = vmul.f32 %v2562, %v2562
      %v2647 = vmul.f32 %v2565, %v2565
      %v2648 = vmul.f32 %v2566, %v2566
      %v2649 = vadd.f32 %v2633, %v2634
      %v2650 = vadd.f32 %v2649, %v2635
      %v2651 = vadd.f32 %v2650, %v2636
      %v2652 = vadd.f32 %v2651, %v2637
      %v2653 = vadd.f32 %v2652, %v2638
      %v2654 = vadd.f32 %v2653, %v2639
      %v2655 = vadd.f32 %v2654, %v2640
      %v2656 = vadd.f32 %v2655, %v2641
      %v2657 = vadd.f32 %v2656, %v2642
      %v2658 = vadd.f32 %v2657, %v2643
      %v2659 = vadd.f32 %v2658, %v2644
      %v2660 = vadd.f32 %v2659, %v2645
      %v2661 = vadd.f32 %v2660, %v2646
      %v2662 = vadd.f32 %v2661, %v2647
      %v2663 = vadd.f32 %v2662, %v2648
      %v2664 = vrot.slane %v2663, 4
      %v2665 = vadd.f32 %v2663, %v2664
      %v2666 = vrot.slane %v2665, 2
      %v2667 = vadd.f32 %v2665, %v2666
      %v2668 = vrot.slane %v2667, 1
      %v2669 = vadd.f32 %v2667, %v2668
      %v2670 = vsel %vm434, %v2632, %v2669
      %2671 = vst [vmem:[%s167] sm:$0x3] %v2670
      %p2672 = scmp.lt.s32.totalorder %s19, 1
      %s2673 = scalar_select %p2672, %s19, 1
      %p2674 = scmp.lt.s32.totalorder %s20, 1
      %s2675 = scalar_select %p2674, %s20, 1
      %s2676 = smul.addr %s2675, 40
      %s2677 = smul.addr %s2673, 80
      %s2678 = sadd.s32 %s2676, %s2677
      %s2679 = smul.addr %s2678, 8
      %s2680 = scalar_lea.vmem %s2, %s2679
      %p2681 = scmp.lt.s32.totalorder %s19, 1
      %s2682 = scalar_select %p2681, %s19, 1
      %p2683 = scmp.lt.s32.totalorder %s20, 1
      %s2684 = scalar_select %p2683, %s20, 1
      %s2685 = smul.addr %s2682, 2
      %s2686 = sadd.s32 %s2684, %s2685
      %s2687 = smul.addr %s2686, 2
      %s2688 = scalar_lea.vmem %s3, %s2687
      // Predicated region
      $region59: #{residual_block.3} parent=23 // pred_check
        %p2689 = pneg %p68
      $region60: #{residual_block.3} parent=23 // pred_check_branch
        %2691 = sbr.rel (%p2689) target = $region62
      $region61: #{residual_block.3} parent=23 // pred_region
        _
      $region62: #{residual_block.3} parent=23 // pred_fallthru
        _
      // Predicated region
      $region63: #{residual_block.3} parent=23 // pred_check
        %p2692 = pneg %p96
      $region64: #{residual_block.3} parent=23 // pred_check_branch
        %2694 = sbr.rel (%p2692) target = $region66
      $region65: #{residual_block.3} parent=23 // pred_region
        _
      $region66: #{residual_block.3} parent=23 // pred_fallthru
        _
    $region24: #{residual_block.3} parent=5 // pred_fallthru
      _
    %p2695 = scmp.le.s32.totalorder 2, %s10
    // Predicated region
    $region67: #{residual_block.3} parent=5 // pred_check
      %p2696 = pneg %p2695
    $region68: #{residual_block.3} parent=5 // pred_check_branch
      %2698 = sbr.rel (%p2696) target = $region70
    $region69: #{residual_block.3} parent=5 // pred_region
      %s2699 = ssub.s32 %s10, 2
      // Predicated region
      $region71: #{residual_block.3} parent=69 // pred_check
        %p2700 = pneg %p74
      $region72: #{residual_block.3} parent=69 // pred_check_branch
        %2702 = sbr.rel (%p2700) target = $region74
      $region73: #{residual_block.3} parent=69 // pred_region
        %p2703 = scmp.lt.s32.totalorder %s21, 1
        %s2704 = scalar_select %p2703, %s21, 1
        %p2705 = scmp.lt.s32.totalorder %s22, 1
        %s2706 = scalar_select %p2705, %s22, 1
        %s2707 = smul.addr %s2706, 40
        %s2708 = smul.addr %s2704, 80
        %s2709 = sadd.s32 %s2707, %s2708
        %s2710 = smul.addr %s2709, 8
        %s2711 = scalar_lea.vmem %s2, %s2710
      $region74: #{residual_block.3} parent=69 // pred_fallthru
        _
      // Predicated region
      $region75: #{residual_block.3} parent=69 // pred_check
        %p2712 = pneg %p102
      $region76: #{residual_block.3} parent=69 // pred_check_branch
        %2714 = sbr.rel (%p2712) target = $region78
      $region77: #{residual_block.3} parent=69 // pred_region
        %p2715 = scmp.lt.s32.totalorder %s21, 1
        %s2716 = scalar_select %p2715, %s21, 1
        %p2717 = scmp.lt.s32.totalorder %s22, 1
        %s2718 = scalar_select %p2717, %s22, 1
        %s2719 = smul.addr %s2716, 2
        %s2720 = sadd.s32 %s2718, %s2719
        %s2721 = smul.addr %s2720, 2
        %s2722 = scalar_lea.vmem %s3, %s2721
      $region78: #{residual_block.3} parent=69 // pred_fallthru
        _
    $region70: #{residual_block.3} parent=5 // pred_fallthru
      _
  $region6: #{residual_block.3} parent=0 // loop_footer
    %s14 = sadd.s32 1, %s10
  $region7: #{residual_block.3} parent=0 // loop_footer_branch
    %9 = sbr.rel target = $region3
  $region8: #{residual_block.3} parent=0 // loop_exit
    _
  %2723 = vsyncmov [#allocation3]
  %s2724 = vpop.sfrf %2723
  %p2725 = scmp.eq.s32.totalorder %s2724, 0
  %p2726 = pneg %p2725
  %2728 = shalt.err (%p2726)

// kernel: residual_block.4
$region0: #{residual_block.4}
  #allocation0 [shape = 'u32[]', space=smem, size = 0x4, offset = 0x4, fixed_abs, tag = 'smem constant byte address 0x4 - core index']
  #allocation1 [shape = 'u32[144,128]{1,0:T(1,128)}', space=vmem, size = 0x12000, scoped, tag = 'internal scratch']
  #allocation2 [shape = 'f32[10,32,128]{2,1,0:T(8,128)}', space=vmem, size = 0x28000, scoped, tag = 'scratch operand']
  %s0 = inlined_call_operand.vmem [shape: f32[2,2,10,32,128], index: 0, kind: input, shape index: {}]
  %s1 = inlined_call_operand.vmem [shape: bf16[3,384,128], index: 1, kind: input, shape index: {}]
  %s2 = inlined_call_operand.vmem [shape: f32[1,128], index: 2, kind: input, shape index: {}]
  %s3 = inlined_call_operand.vmem [shape: f32[1,128], index: 3, kind: input, shape index: {}]
  %s4 = inlined_call_operand.vmem [shape: f32[2,16,16,128], index: 4, kind: output, shape index: {0}]
  %s5 = inlined_call_operand.vmem [shape: f32[2,2,2,128], index: 5, kind: output, shape index: {1}]
  %6 = xla_tuple %s4, %s5
  %s7 = sld [smem:[#allocation0]]
  $region65: #{residual_block.4} parent=0
    _
  %s9 = ssub.s32 1, %s7
  %s10 = scalar_select 0, %s9, %s7
  loop: start=0, step=1, limit=6
  $region2: #{residual_block.4} parent=0 // loop_pre_header
    _
  $region3: #{residual_block.4} parent=0 // loop_header
    %s12 = sphi 0, %s16
    %p13 = scmp.ge.s32.totalorder %s12, 6
    %s19 = sphi 0, %s31
    %s20 = sphi 0, %s27
    %s21 = sphi 0, %s19
    %s22 = sphi 0, %s20
    %s23 = sphi 0, %s21
    %s24 = sphi 0, %s22
    %s36 = sphi 0, %s38
    %s39 = sphi 0, %s36
    %s40 = sphi 0, %s39
    %s56 = sphi 0, %s40
    %s60 = sphi 0, %s60
    %s62 = sphi 0, %s60
    %s63 = sphi 0, %s62
    %s77 = sphi 0, %s63
    %s81 = sphi 0, %s81
    %s83 = sphi 0, %s81
    %s84 = sphi 0, %s83
    %s98 = sphi 0, %s84
    %s102 = sphi 0, %s102
    %s104 = sphi 0, %s102
    %s105 = sphi 0, %s104
    %s119 = sphi 0, %s105
    %s127 = sphi 0, %s129
    %s130 = sphi 0, %s127
    %s131 = sphi 0, %s130
    %s147 = sphi 0, %s131
    %s155 = sphi 0, %s157
    %s158 = sphi 0, %s155
    %s159 = sphi 0, %s158
    %s175 = sphi 0, %s159
  $region4: #{residual_block.4} parent=0 // loop_header_branch
    %15 = sbr.rel (%p13) target = $region8
  $region5: #{residual_block.4} parent=0 // loop_body
    %s17 = ssub.s32 %s12, 1
    %s18 = ssub.s32 %s12, 2
    %s25 = sadd.s32 1, %s20
    %p26 = scmp.ge.s32.totalorder %s25, 2
    %s27 = scalar_select %p26, 0, %s25
    %s28 = sadd.s32 1, %s19
    %s29 = scalar_select %p26, %s28, %s19
    %p30 = scmp.ge.s32.totalorder %s29, 2
    %s31 = scalar_select %p30, 0, %s29
    %s32 = ssub.s32 %s19, %s31
    %s33 = ssub.s32 %s20, %s27
    %s34 = sor.u32 %s32, %s33
    %p35 = scmp.eq.s32.totalorder %s34, 0
    %s37 = sadd.s32 %s36, 1
    %s38 = scalar_select %p35, %s36, %s37
    %p41 = pneg %p35
    %p42 = scmp.eq.s32.totalorder %s12, 3
    %p43 = por %p41, %p42
    %p44 = scmp.ne.s32.totalorder %s36, %s39
    %p45 = scmp.eq.s32.totalorder %s12, 0
    %p46 = por %p44, %p45
    %p47 = scmp.ne.s32.totalorder %s36, %s39
    %p48 = scmp.eq.s32.totalorder %s17, 3
    %p49 = por %p47, %p48
    %p50 = scmp.ne.s32.totalorder %s39, %s40
    %p51 = scmp.eq.s32.totalorder %s17, 0
    %p52 = por %p50, %p51
    %p53 = scmp.ne.s32.totalorder %s39, %s40
    %p54 = scmp.eq.s32.totalorder %s18, 3
    %p55 = por %p53, %p54
    %p57 = scmp.ne.s32.totalorder %s40, %s56
    %p58 = scmp.eq.s32.totalorder %s18, 0
    %p59 = por %p57, %p58
    %s61 = sadd.s32 %s60, 1
    %p64 = scmp.eq.s32.totalorder %s12, 3
    %p65 = scmp.ne.s32.totalorder %s60, %s62
    %p66 = scmp.eq.s32.totalorder %s12, 0
    %p67 = por %p65, %p66
    %p68 = scmp.ne.s32.totalorder %s60, %s62
    %p69 = scmp.eq.s32.totalorder %s17, 3
    %p70 = por %p68, %p69
    %p71 = scmp.ne.s32.totalorder %s62, %s63
    %p72 = scmp.eq.s32.totalorder %s17, 0
    %p73 = por %p71, %p72
    %p74 = scmp.ne.s32.totalorder %s62, %s63
    %p75 = scmp.eq.s32.totalorder %s18, 3
    %p76 = por %p74, %p75
    %p78 = scmp.ne.s32.totalorder %s63, %s77
    %p79 = scmp.eq.s32.totalorder %s18, 0
    %p80 = por %p78, %p79
    %s82 = sadd.s32 %s81, 1
    %p85 = scmp.eq.s32.totalorder %s12, 3
    %p86 = scmp.ne.s32.totalorder %s81, %s83
    %p87 = scmp.eq.s32.totalorder %s12, 0
    %p88 = por %p86, %p87
    %p89 = scmp.ne.s32.totalorder %s81, %s83
    %p90 = scmp.eq.s32.totalorder %s17, 3
    %p91 = por %p89, %p90
    %p92 = scmp.ne.s32.totalorder %s83, %s84
    %p93 = scmp.eq.s32.totalorder %s17, 0
    %p94 = por %p92, %p93
    %p95 = scmp.ne.s32.totalorder %s83, %s84
    %p96 = scmp.eq.s32.totalorder %s18, 3
    %p97 = por %p95, %p96
    %p99 = scmp.ne.s32.totalorder %s84, %s98
    %p100 = scmp.eq.s32.totalorder %s18, 0
    %p101 = por %p99, %p100
    %s103 = sadd.s32 %s102, 1
    %p106 = scmp.eq.s32.totalorder %s12, 3
    %p107 = scmp.ne.s32.totalorder %s102, %s104
    %p108 = scmp.eq.s32.totalorder %s12, 0
    %p109 = por %p107, %p108
    %p110 = scmp.ne.s32.totalorder %s102, %s104
    %p111 = scmp.eq.s32.totalorder %s17, 3
    %p112 = por %p110, %p111
    %p113 = scmp.ne.s32.totalorder %s104, %s105
    %p114 = scmp.eq.s32.totalorder %s17, 0
    %p115 = por %p113, %p114
    %p116 = scmp.ne.s32.totalorder %s104, %s105
    %p117 = scmp.eq.s32.totalorder %s18, 3
    %p118 = por %p116, %p117
    %p120 = scmp.ne.s32.totalorder %s105, %s119
    %p121 = scmp.eq.s32.totalorder %s18, 0
    %p122 = por %p120, %p121
    %s123 = ssub.s32 %s19, %s31
    %s124 = ssub.s32 %s20, %s27
    %s125 = sor.u32 %s123, %s124
    %p126 = scmp.eq.s32.totalorder %s125, 0
    %s128 = sadd.s32 %s127, 1
    %s129 = scalar_select %p126, %s127, %s128
    %p132 = pneg %p126
    %p133 = scmp.eq.s32.totalorder %s12, 3
    %p134 = por %p132, %p133
    %p135 = scmp.ne.s32.totalorder %s127, %s130
    %p136 = scmp.eq.s32.totalorder %s12, 0
    %p137 = por %p135, %p136
    %p138 = scmp.ne.s32.totalorder %s127, %s130
    %p139 = scmp.eq.s32.totalorder %s17, 3
    %p140 = por %p138, %p139
    %p141 = scmp.ne.s32.totalorder %s130, %s131
    %p142 = scmp.eq.s32.totalorder %s17, 0
    %p143 = por %p141, %p142
    %p144 = scmp.ne.s32.totalorder %s130, %s131
    %p145 = scmp.eq.s32.totalorder %s18, 3
    %p146 = por %p144, %p145
    %p148 = scmp.ne.s32.totalorder %s131, %s147
    %p149 = scmp.eq.s32.totalorder %s18, 0
    %p150 = por %p148, %p149
    %s151 = ssub.s32 %s19, %s31
    %s152 = ssub.s32 %s20, %s27
    %s153 = sor.u32 %s151, %s152
    %p154 = scmp.eq.s32.totalorder %s153, 0
    %s156 = sadd.s32 %s155, 1
    %s157 = scalar_select %p154, %s155, %s156
    %p160 = pneg %p154
    %p161 = scmp.eq.s32.totalorder %s12, 3
    %p162 = por %p160, %p161
    %p163 = scmp.ne.s32.totalorder %s155, %s158
    %p164 = scmp.eq.s32.totalorder %s12, 0
    %p165 = por %p163, %p164
    %p166 = scmp.ne.s32.totalorder %s155, %s158
    %p167 = scmp.eq.s32.totalorder %s17, 3
    %p168 = por %p166, %p167
    %p169 = scmp.ne.s32.totalorder %s158, %s159
    %p170 = scmp.eq.s32.totalorder %s17, 0
    %p171 = por %p169, %p170
    %p172 = scmp.ne.s32.totalorder %s158, %s159
    %p173 = scmp.eq.s32.totalorder %s18, 3
    %p174 = por %p172, %p173
    %p176 = scmp.ne.s32.totalorder %s159, %s175
    %p177 = scmp.eq.s32.totalorder %s18, 0
    %p178 = por %p176, %p177
    %p179 = scmp.le.s32.totalorder 1, %s12
    %p180 = scmp.lt.s32.totalorder %s12, 5
    %p181 = pnand %p179, %p180
    %p182 = pneg %p181
    // Predicated region
    $region9: #{residual_block.4} parent=5 // pred_check
      _
    $region10: #{residual_block.4} parent=5 // pred_check_branch
      %184 = sbr.rel (%p181) target = $region12
    $region11: #{residual_block.4} parent=5 // pred_region
      %s185 = ssub.s32 %s12, 1
      // Predicated region
      $region13: #{residual_block.4} parent=11 // pred_check
        %p186 = pneg %p73
      $region14: #{residual_block.4} parent=11 // pred_check_branch
        %188 = sbr.rel (%p186) target = $region16
      $region15: #{residual_block.4} parent=11 // pred_region
        _
      $region16: #{residual_block.4} parent=11 // pred_fallthru
        _
      // Predicated region
      $region17: #{residual_block.4} parent=11 // pred_check
        %p189 = pneg %p94
      $region18: #{residual_block.4} parent=11 // pred_check_branch
        %191 = sbr.rel (%p189) target = $region20
      $region19: #{residual_block.4} parent=11 // pred_region
        _
      $region20: #{residual_block.4} parent=11 // pred_fallthru
        _
      // Predicated region
      $region21: #{residual_block.4} parent=11 // pred_check
        %p192 = pneg %p115
      $region22: #{residual_block.4} parent=11 // pred_check_branch
        %194 = sbr.rel (%p192) target = $region24
      $region23: #{residual_block.4} parent=11 // pred_region
        _
      $region24: #{residual_block.4} parent=11 // pred_fallthru
        _
    $region12: #{residual_block.4} parent=5 // pred_fallthru
      _
    %p195 = scmp.lt.s32.totalorder %s12, 4
    // Predicated region
    $region25: #{residual_block.4} parent=5 // pred_check
      %p196 = pneg %p195
    $region26: #{residual_block.4} parent=5 // pred_check_branch
      %198 = sbr.rel (%p196) target = $region28
    $region27: #{residual_block.4} parent=5 // pred_region
      // Predicated region
      $region29: #{residual_block.4} parent=27 // pred_check
        %p199 = pneg %p46
      $region30: #{residual_block.4} parent=27 // pred_check_branch
        %201 = sbr.rel (%p199) target = $region32
      $region31: #{residual_block.4} parent=27 // pred_region
        %p202 = scmp.lt.s32.totalorder %s19, 1
        %s203 = scalar_select %p202, %s19, 1
        %p204 = scmp.lt.s32.totalorder %s20, 1
        %s205 = scalar_select %p204, %s20, 1
        %s206 = smul.addr %s205, 40
        %s207 = smul.addr %s203, 80
        %s208 = sadd.s32 %s206, %s207
        %s209 = smul.addr %s208, 8
        %s210 = scalar_lea.vmem %s0, %s209
      $region32: #{residual_block.4} parent=27 // pred_fallthru
        _
    $region28: #{residual_block.4} parent=5 // pred_fallthru
      _
    %p211 = scmp.le.s32.totalorder 1, %s12
    %p212 = scmp.lt.s32.totalorder %s12, 5
    %p213 = pnand %p211, %p212
    %p214 = pneg %p213
    // Predicated region
    $region33: #{residual_block.4} parent=5 // pred_check
      _
    $region34: #{residual_block.4} parent=5 // pred_check_branch
      %216 = sbr.rel (%p213) target = $region36
    $region35: #{residual_block.4} parent=5 // pred_region
      %s217 = ssub.s32 %s12, 1
      %p218 = scmp.lt.s32.totalorder %s21, 1
      %s219 = scalar_select %p218, %s21, 1
      %p220 = scmp.lt.s32.totalorder %s22, 1
      %s221 = scalar_select %p220, %s22, 1
      %s222 = smul.addr %s221, 40
      %s223 = smul.addr %s219, 80
      %s224 = sadd.s32 %s222, %s223
      %s225 = smul.addr %s224, 8
      %s226 = scalar_lea.vmem %s0, %s225
      %p227 = pneg %p52
      %p228 = pneg %p49
      %p229 = pneg %p73
      %p230 = pneg %p70
      %p231 = pneg %p94
      %p232 = pneg %p91
      %p233 = pneg %p115
      %p234 = pneg %p112
      %p235 = pneg %p143
      %p236 = pneg %p140
      %s237 = smul.u32 8, %s22
      %p238 = scmp.lt.s32.totalorder %s21, 1
      %s239 = scalar_select %p238, %s21, 1
      %p240 = scmp.lt.s32.totalorder %s237, 15
      %s241 = scalar_select %p240, %s237, 15
      %s242 = smul.addr %s241, 2
      %s243 = smul.addr %s239, 32
      %s244 = sadd.s32 %s242, %s243
      %s245 = smul.addr %s244, 8
      %s246 = scalar_lea.vmem %s4, %s245
      %p247 = pneg %p171
      %p248 = pneg %p168
      %p249 = scmp.lt.s32.totalorder %s21, 1
      %s250 = scalar_select %p249, %s21, 1
      %p251 = scmp.lt.s32.totalorder %s22, 1
      %s252 = scalar_select %p251, %s22, 1
      %s253 = smul.addr %s250, 2
      %s254 = sadd.s32 %s252, %s253
      %s255 = smul.addr %s254, 2
      %s256 = scalar_lea.vmem %s5, %s255
      %p257 = scmp.lt.s32.totalorder %s21, 1
      %s258 = scalar_select %p257, %s21, 1
      %p259 = scmp.lt.s32.totalorder %s22, 1
      %s260 = scalar_select %p259, %s22, 1
      %s261 = smul.addr %s260, 40
      %s262 = smul.addr %s258, 80
      %s263 = sadd.s32 %s261, %s262
      %s264 = smul.addr %s263, 8
      %s265 = scalar_lea.vmem %s0, %s264
      %s266 = smul.u32 8, %s22
      %p267 = scmp.lt.s32.totalorder %s21, 1
      %s268 = scalar_select %p267, %s21, 1
      %p269 = scmp.lt.s32.totalorder %s266, 15
      %s270 = scalar_select %p269, %s266, 15
      %s271 = smul.addr %s270, 2
      %s272 = smul.addr %s268, 32
      %s273 = sadd.s32 %s271, %s272
      %s274 = smul.addr %s273, 8
      %s275 = scalar_lea.vmem %s4, %s274
      %s276 = smul.u32 8, %s22
      %p277 = scmp.lt.s32.totalorder %s21, 1
      %s278 = scalar_select %p277, %s21, 1
      %p279 = scmp.lt.s32.totalorder %s22, 1
      %s280 = scalar_select %p279, %s22, 1
      %s281 = smul.addr %s278, 2
      %s282 = sadd.s32 %s280, %s281
      %s283 = smul.addr %s282, 2
      %s284 = scalar_lea.vmem %s5, %s283
      %v286 = vld [vmem:[%s265] sm:$0xff]
      %v287 = vld [vmem:[%s265 + $0x8] sm:$0xff]
      %v288 = vld [vmem:[%s265 + $0x10] sm:$0xff]
      %v289 = vld [vmem:[%s265 + $0x18] sm:$0xff]
      %v290 = vld [vmem:[%s265 + $0x20] sm:$0xff]
      %v291 = vld [vmem:[%s265 + $0x28] sm:$0xff]
      %v292 = vld [vmem:[%s265 + $0x30] sm:$0xff]
      %v293 = vld [vmem:[%s265 + $0x38] sm:$0xff]
      %v294 = vld [vmem:[%s265 + $0x40] sm:$0xff]
      %v295 = vld [vmem:[%s265 + $0x48] sm:$0xff]
      %v296 = vld [vmem:[%s265 + $0x50] sm:$0xff]
      %v297 = vld [vmem:[%s265 + $0x58] sm:$0xff]
      %v298 = vld [vmem:[%s265 + $0x60] sm:$0xff]
      %v299 = vld [vmem:[%s265 + $0x68] sm:$0xff]
      %v300 = vld [vmem:[%s265 + $0x70] sm:$0xff]
      %v301 = vld [vmem:[%s265 + $0x78] sm:$0xff]
      %v302 = vld [vmem:[%s265 + $0x80] sm:$0xff]
      %v303 = vld [vmem:[%s265 + $0x88] sm:$0xff]
      %v304 = vld [vmem:[%s265 + $0x90] sm:$0xff]
      %v305 = vld [vmem:[%s265 + $0x98] sm:$0xff]
      %v306 = vld [vmem:[%s265 + $0xa0] sm:$0xff]
      %v307 = vld [vmem:[%s265 + $0xa8] sm:$0xff]
      %v308 = vld [vmem:[%s265 + $0xb0] sm:$0xff]
      %v309 = vld [vmem:[%s265 + $0xb8] sm:$0xff]
      %v310 = vld [vmem:[%s265 + $0xc0] sm:$0xff]
      %v311 = vld [vmem:[%s265 + $0xc8] sm:$0xff]
      %v312 = vld [vmem:[%s265 + $0xd0] sm:$0xff]
      %v313 = vld [vmem:[%s265 + $0xd8] sm:$0xff]
      %v314 = vld [vmem:[%s265 + $0xe0] sm:$0xff]
      %v315 = vld [vmem:[%s265 + $0xe8] sm:$0xff]
      %v316 = vld [vmem:[%s265 + $0xf0] sm:$0xff]
      %v317 = vld [vmem:[%s265 + $0xf8] sm:$0xff]
      %v318 = vld [vmem:[%s265 + $0x100] sm:$0xff]
      %v319 = vld [vmem:[%s265 + $0x108] sm:$0xff]
      %v320 = vld [vmem:[%s265 + $0x110] sm:$0xff]
      %v321 = vld [vmem:[%s265 + $0x118] sm:$0xff]
      %v322 = vld [vmem:[%s265 + $0x120] sm:$0xff]
      %v323 = vld [vmem:[%s265 + $0x128] sm:$0xff]
      %v324 = vld [vmem:[%s265 + $0x130] sm:$0xff]
      %v325 = vld [vmem:[%s265 + $0x138] sm:$0xff]
      %v326 = vld [vmem:[%s2] sm:$0x1]
      %v328 = vlaneseq
      %v329 = vshrl.u32 %v328, 7
      %v330 = vsub.s32 0, %v329
      %v331 = vrot.slane %v326, %v330
      %v333 = vmul.f32 %v286, %v331
      %v334 = vmul.f32 %v287, %v331
      %v335 = vmul.f32 %v288, %v331
      %v336 = vmul.f32 %v289, %v331
      %v337 = vmul.f32 %v290, %v331
      %v338 = vmul.f32 %v291, %v331
      %v339 = vmul.f32 %v292, %v331
      %v340 = vmul.f32 %v293, %v331
      %v341 = vmul.f32 %v294, %v331
      %v342 = vmul.f32 %v295, %v331
      %v343 = vmul.f32 %v296, %v331
      %v344 = vmul.f32 %v297, %v331
      %v345 = vmul.f32 %v298, %v331
      %v346 = vmul.f32 %v299, %v331
      %v347 = vmul.f32 %v300, %v331
      %v348 = vmul.f32 %v301, %v331
      %v349 = vmul.f32 %v302, %v331
      %v350 = vmul.f32 %v303, %v331
      %v351 = vmul.f32 %v304, %v331
      %v352 = vmul.f32 %v305, %v331
      %v353 = vmul.f32 %v306, %v331
      %v354 = vmul.f32 %v307, %v331
      %v355 = vmul.f32 %v308, %v331
      %v356 = vmul.f32 %v309, %v331
      %v357 = vmul.f32 %v310, %v331
      %v358 = vmul.f32 %v311, %v331
      %v359 = vmul.f32 %v312, %v331
      %v360 = vmul.f32 %v313, %v331
      %v361 = vmul.f32 %v314, %v331
      %v362 = vmul.f32 %v315, %v331
      %v363 = vmul.f32 %v316, %v331
      %v364 = vmul.f32 %v317, %v331
      %v365 = vmul.f32 %v318, %v331
      %v366 = vmul.f32 %v319, %v331
      %v367 = vmul.f32 %v320, %v331
      %v368 = vmul.f32 %v321, %v331
      %v369 = vmul.f32 %v322, %v331
      %v370 = vmul.f32 %v323, %v331
      %v371 = vmul.f32 %v324, %v331
      %v372 = vmul.f32 %v325, %v331
      %v373 = vld [vmem:[%s3] sm:$0x1]
      %v375 = vlaneseq
      %v376 = vshrl.u32 %v375, 7
      %v377 = vsub.s32 0, %v376
      %v378 = vrot.slane %v373, %v377
      %v380 = vadd.f32 %v333, %v378
      %v381 = vadd.f32 %v334, %v378
      %v382 = vadd.f32 %v335, %v378
      %v383 = vadd.f32 %v336, %v378
      %v384 = vadd.f32 %v337, %v378
      %v385 = vadd.f32 %v338, %v378
      %v386 = vadd.f32 %v339, %v378
      %v387 = vadd.f32 %v340, %v378
      %v388 = vadd.f32 %v341, %v378
      %v389 = vadd.f32 %v342, %v378
      %v390 = vadd.f32 %v343, %v378
      %v391 = vadd.f32 %v344, %v378
      %v392 = vadd.f32 %v345, %v378
      %v393 = vadd.f32 %v346, %v378
      %v394 = vadd.f32 %v347, %v378
      %v395 = vadd.f32 %v348, %v378
      %v396 = vadd.f32 %v349, %v378
      %v397 = vadd.f32 %v350, %v378
      %v398 = vadd.f32 %v351, %v378
      %v399 = vadd.f32 %v352, %v378
      %v400 = vadd.f32 %v353, %v378
      %v401 = vadd.f32 %v354, %v378
      %v402 = vadd.f32 %v355, %v378
      %v403 = vadd.f32 %v356, %v378
      %v404 = vadd.f32 %v357, %v378
      %v405 = vadd.f32 %v358, %v378
      %v406 = vadd.f32 %v359, %v378
      %v407 = vadd.f32 %v360, %v378
      %v408 = vadd.f32 %v361, %v378
      %v409 = vadd.f32 %v362, %v378
      %v410 = vadd.f32 %v363, %v378
      %v411 = vadd.f32 %v364, %v378
      %v412 = vadd.f32 %v365, %v378
      %v413 = vadd.f32 %v366, %v378
      %v414 = vadd.f32 %v367, %v378
      %v415 = vadd.f32 %v368, %v378
      %v416 = vadd.f32 %v369, %v378
      %v417 = vadd.f32 %v370, %v378
      %v418 = vadd.f32 %v371, %v378
      %v419 = vadd.f32 %v372, %v378
      %v420 = vmul.f32 %v380, 0.2
      %v421 = vmul.f32 %v381, 0.2
      %v422 = vmul.f32 %v382, 0.2
      %v423 = vmul.f32 %v383, 0.2
      %v424 = vmul.f32 %v384, 0.2
      %v425 = vmul.f32 %v385, 0.2
      %v426 = vmul.f32 %v386, 0.2
      %v427 = vmul.f32 %v387, 0.2
      %v428 = vmul.f32 %v388, 0.2
      %v429 = vmul.f32 %v389, 0.2
      %v430 = vmul.f32 %v390, 0.2
      %v431 = vmul.f32 %v391, 0.2
      %v432 = vmul.f32 %v392, 0.2
      %v433 = vmul.f32 %v393, 0.2
      %v434 = vmul.f32 %v394, 0.2
      %v435 = vmul.f32 %v395, 0.2
      %v436 = vmul.f32 %v396, 0.2
      %v437 = vmul.f32 %v397, 0.2
      %v438 = vmul.f32 %v398, 0.2
      %v439 = vmul.f32 %v399, 0.2
      %v440 = vmul.f32 %v400, 0.2
      %v441 = vmul.f32 %v401, 0.2
      %v442 = vmul.f32 %v402, 0.2
      %v443 = vmul.f32 %v403, 0.2
      %v444 = vmul.f32 %v404, 0.2
      %v445 = vmul.f32 %v405, 0.2
      %v446 = vmul.f32 %v406, 0.2
      %v447 = vmul.f32 %v407, 0.2
      %v448 = vmul.f32 %v408, 0.2
      %v449 = vmul.f32 %v409, 0.2
      %v450 = vmul.f32 %v410, 0.2
      %v451 = vmul.f32 %v411, 0.2
      %v452 = vmul.f32 %v412, 0.2
      %v453 = vmul.f32 %v413, 0.2
      %v454 = vmul.f32 %v414, 0.2
      %v455 = vmul.f32 %v415, 0.2
      %v456 = vmul.f32 %v416, 0.2
      %v457 = vmul.f32 %v417, 0.2
      %v458 = vmul.f32 %v418, 0.2
      %v459 = vmul.f32 %v419, 0.2
      %v460 = vmax.f32 %v380, %v420
      %v461 = vmax.f32 %v381, %v421
      %v462 = vmax.f32 %v382, %v422
      %v463 = vmax.f32 %v383, %v423
      %v464 = vmax.f32 %v384, %v424
      %v465 = vmax.f32 %v385, %v425
      %v466 = vmax.f32 %v386, %v426
      %v467 = vmax.f32 %v387, %v427
      %v468 = vmax.f32 %v388, %v428
      %v469 = vmax.f32 %v389, %v429
      %v470 = vmax.f32 %v390, %v430
      %v471 = vmax.f32 %v391, %v431
      %v472 = vmax.f32 %v392, %v432
      %v473 = vmax.f32 %v393, %v433
      %v474 = vmax.f32 %v394, %v434
      %v475 = vmax.f32 %v395, %v435
      %v476 = vmax.f32 %v396, %v436
      %v477 = vmax.f32 %v397, %v437
      %v478 = vmax.f32 %v398, %v438
      %v479 = vmax.f32 %v399, %v439
      %v480 = vmax.f32 %v400, %v440
      %v481 = vmax.f32 %v401, %v441
      %v482 = vmax.f32 %v402, %v442
      %v483 = vmax.f32 %v403, %v443
      %v484 = vmax.f32 %v404, %v444
      %v485 = vmax.f32 %v405, %v445
      %v486 = vmax.f32 %v406, %v446
      %v487 = vmax.f32 %v407, %v447
      %v488 = vmax.f32 %v408, %v448
      %v489 = vmax.f32 %v409, %v449
      %v490 = vmax.f32 %v410, %v450
      %v491 = vmax.f32 %v411, %v451
      %v492 = vmax.f32 %v412, %v452
      %v493 = vmax.f32 %v413, %v453
      %v494 = vmax.f32 %v414, %v454
      %v495 = vmax.f32 %v415, %v455
      %v496 = vmax.f32 %v416, %v456
      %v497 = vmax.f32 %v417, %v457
      %v498 = vmax.f32 %v418, %v458
      %v499 = vmax.f32 %v419, %v459
      %500 = vst [vmem:[#allocation2] sm:$0xff] %v460
      %501 = vst [vmem:[#allocation2 + $0x8] sm:$0xff] %v461
      %502 = vst [vmem:[#allocation2 + $0x10] sm:$0xff] %v462
      %503 = vst [vmem:[#allocation2 + $0x18] sm:$0xff] %v463
      %504 = vst [vmem:[#allocation2 + $0x20] sm:$0xff] %v464
      %505 = vst [vmem:[#allocation2 + $0x28] sm:$0xff] %v465
      %506 = vst [vmem:[#allocation2 + $0x30] sm:$0xff] %v466
      %507 = vst [vmem:[#allocation2 + $0x38] sm:$0xff] %v467
      %508 = vst [vmem:[#allocation2 + $0x40] sm:$0xff] %v468
      %509 = vst [vmem:[#allocation2 + $0x48] sm:$0xff] %v469
      %510 = vst [vmem:[#allocation2 + $0x50] sm:$0xff] %v470
      %511 = vst [vmem:[#allocation2 + $0x58] sm:$0xff] %v471
      %512 = vst [vmem:[#allocation2 + $0x60] sm:$0xff] %v472
      %513 = vst [vmem:[#allocation2 + $0x68] sm:$0xff] %v473
      %514 = vst [vmem:[#allocation2 + $0x70] sm:$0xff] %v474
      %515 = vst [vmem:[#allocation2 + $0x78] sm:$0xff] %v475
      %516 = vst [vmem:[#allocation2 + $0x80] sm:$0xff] %v476
      %517 = vst [vmem:[#allocation2 + $0x88] sm:$0xff] %v477
      %518 = vst [vmem:[#allocation2 + $0x90] sm:$0xff] %v478
      %519 = vst [vmem:[#allocation2 + $0x98] sm:$0xff] %v479
      %520 = vst [vmem:[#allocation2 + $0xa0] sm:$0xff] %v480
      %521 = vst [vmem:[#allocation2 + $0xa8] sm:$0xff] %v481
      %522 = vst [vmem:[#allocation2 + $0xb0] sm:$0xff] %v482
      %523 = vst [vmem:[#allocation2 + $0xb8] sm:$0xff] %v483
      %524 = vst [vmem:[#allocation2 + $0xc0] sm:$0xff] %v484
      %525 = vst [vmem:[#allocation2 + $0xc8] sm:$0xff] %v485
      %526 = vst [vmem:[#allocation2 + $0xd0] sm:$0xff] %v486
      %527 = vst [vmem:[#allocation2 + $0xd8] sm:$0xff] %v487
      %528 = vst [vmem:[#allocation2 + $0xe0] sm:$0xff] %v488
      %529 = vst [vmem:[#allocation2 + $0xe8] sm:$0xff] %v489
      %530 = vst [vmem:[#allocation2 + $0xf0] sm:$0xff] %v490
      %531 = vst [vmem:[#allocation2 + $0xf8] sm:$0xff] %v491
      %532 = vst [vmem:[#allocation2 + $0x100] sm:$0xff] %v492
      %533 = vst [vmem:[#allocation2 + $0x108] sm:$0xff] %v493
      %534 = vst [vmem:[#allocation2 + $0x110] sm:$0xff] %v494
      %535 = vst [vmem:[#allocation2 + $0x118] sm:$0xff] %v495
      %536 = vst [vmem:[#allocation2 + $0x120] sm:$0xff] %v496
      %537 = vst [vmem:[#allocation2 + $0x128] sm:$0xff] %v497
      %538 = vst [vmem:[#allocation2 + $0x130] sm:$0xff] %v498
      %539 = vst [vmem:[#allocation2 + $0x138] sm:$0xff] %v499
      %540 = vst [vmem:[#allocation2] sm:$0xff] 0.0
      %541 = vst [vmem:[#allocation2 + $0x20] sm:$0xff] 0.0
      %542 = vst [vmem:[#allocation2 + $0x40] sm:$0xff] 0.0
      %543 = vst [vmem:[#allocation2 + $0x60] sm:$0xff] 0.0
      %544 = vst [vmem:[#allocation2 + $0x80] sm:$0xff] 0.0
      %545 = vst [vmem:[#allocation2 + $0xa0] sm:$0xff] 0.0
      %546 = vst [vmem:[#allocation2 + $0xc0] sm:$0xff] 0.0
      %547 = vst [vmem:[#allocation2 + $0xe0] sm:$0xff] 0.0
      %548 = vst [vmem:[#allocation2 + $0x100] sm:$0xff] 0.0
      %549 = vst [vmem:[#allocation2 + $0x120] sm:$0xff] 0.0
      %550 = vst [vmem:[#allocation2 + $0x18] sm:$0xff] 0.0
      %551 = vst [vmem:[#allocation2 + $0x38] sm:$0xff] 0.0
      %552 = vst [vmem:[#allocation2 + $0x58] sm:$0xff] 0.0
      %553 = vst [vmem:[#allocation2 + $0x78] sm:$0xff] 0.0
      %554 = vst [vmem:[#allocation2 + $0x98] sm:$0xff] 0.0
      %555 = vst [vmem:[#allocation2 + $0xb8] sm:$0xff] 0.0
      %556 = vst [vmem:[#allocation2 + $0xd8] sm:$0xff] 0.0
      %557 = vst [vmem:[#allocation2 + $0xf8] sm:$0xff] 0.0
      %558 = vst [vmem:[#allocation2 + $0x118] sm:$0xff] 0.0
      %559 = vst [vmem:[#allocation2 + $0x138] sm:$0xff] 0.0
      %p560 = scmp.eq.s32.totalorder %s22, 0
      // Predicated region
      $region37: #{residual_block.4} parent=35 // pred_check
        %p561 = pneg %p560
      $region38: #{residual_block.4} parent=35 // pred_check_branch
        %563 = sbr.rel (%p561) target = $region40
      $region39: #{residual_block.4} parent=35 // pred_region
        %564 = vst [vmem:[#allocation2] sm:$0xff] 0.0
        %565 = vst [vmem:[#allocation2 + $0x8] sm:$0xff] 0.0
        %566 = vst [vmem:[#allocation2 + $0x10] sm:$0xff] 0.0
        %567 = vst [vmem:[#allocation2 + $0x18] sm:$0xff] 0.0
      $region40: #{residual_block.4} parent=35 // pred_fallthru
        _
      %p568 = scmp.eq.s32.totalorder %s22, 1
      // Predicated region
      $region41: #{residual_block.4} parent=35 // pred_check
        %p569 = pneg %p568
      $region42: #{residual_block.4} parent=35 // pred_check_branch
        %571 = sbr.rel (%p569) target = $region44
      $region43: #{residual_block.4} parent=35 // pred_region
        %s572 = scalar_lea.vmem [#allocation2], 288
        %573 = vst [vmem:[%s572] sm:$0xff] 0.0
        %574 = vst [vmem:[%s572 + $0x8] sm:$0xff] 0.0
        %575 = vst [vmem:[%s572 + $0x10] sm:$0xff] 0.0
        %576 = vst [vmem:[%s572 + $0x18] sm:$0xff] 0.0
      $region44: #{residual_block.4} parent=35 // pred_fallthru
        _
      %v577 = vld [vmem:[#allocation2] sm:$0xff]
      %v578 = vld [vmem:[#allocation2 + $0x8] sm:$0xff]
      %v579 = vld [vmem:[#allocation2 + $0x10] sm:$0xff]
      %v580 = vld [vmem:[#allocation2 + $0x18] sm:$0xff]
      %v581 = vld [vmem:[#allocation2 + $0x20] sm:$0xff]
      %v582 = vld [vmem:[#allocation2 + $0x28] sm:$0xff]
      %v583 = vld [vmem:[#allocation2 + $0x30] sm:$0xff]
      %v584 = vld [vmem:[#allocation2 + $0x38] sm:$0xff]
      %v585 = vld [vmem:[#allocation2 + $0x40] sm:$0xff]
      %v586 = vld [vmem:[#allocation2 + $0x48] sm:$0xff]
      %v587 = vld [vmem:[#allocation2 + $0x50] sm:$0xff]
      %v588 = vld [vmem:[#allocation2 + $0x58] sm:$0xff]
      %v589 = vld [vmem:[#allocation2 + $0x60] sm:$0xff]
      %v590 = vld [vmem:[#allocation2 + $0x68] sm:$0xff]
      %v591 = vld [vmem:[#allocation2 + $0x70] sm:$0xff]
      %v592 = vld [vmem:[#allocation2 + $0x78] sm:$0xff]
      %v593 = vld [vmem:[#allocation2 + $0x80] sm:$0xff]
      %v594 = vld [vmem:[#allocation2 + $0x88] sm:$0xff]
      %v595 = vld [vmem:[#allocation2 + $0x90] sm:$0xff]
      %v596 = vld [vmem:[#allocation2 + $0x98] sm:$0xff]
      %v597 = vld [vmem:[#allocation2 + $0xa0] sm:$0xff]
      %v598 = vld [vmem:[#allocation2 + $0xa8] sm:$0xff]
      %v599 = vld [vmem:[#allocation2 + $0xb0] sm:$0xff]
      %v600 = vld [vmem:[#allocation2 + $0xb8] sm:$0xff]
      %v601 = vld [vmem:[#allocation2 + $0xc0] sm:$0xff]
      %v602 = vld [vmem:[#allocation2 + $0xc8] sm:$0xff]
      %v603 = vld [vmem:[#allocation2 + $0xd0] sm:$0xff]
      %v604 = vld [vmem:[#allocation2 + $0xd8] sm:$0xff]
      %v605 = vld [vmem:[#allocation2 + $0xe0] sm:$0xff]
      %v606 = vld [vmem:[#allocation2 + $0xe8] sm:$0xff]
      %v607 = vld [vmem:[#allocation2 + $0xf0] sm:$0xff]
      %v608 = vld [vmem:[#allocation2 + $0xf8] sm:$0xff]
      %v609 = vld [vmem:[#allocation2 + $0x100] sm:$0xff]
      %v610 = vld [vmem:[#allocation2 + $0x108] sm:$0xff]
      %v611 = vld [vmem:[#allocation2 + $0x110] sm:$0xff]
      %v612 = vld [vmem:[#allocation2 + $0x118] sm:$0xff]
      %v613 = vld [vmem:[#allocation2 + $0x120] sm:$0xff]
      %v614 = vld [vmem:[#allocation2 + $0x128] sm:$0xff]
      %v615 = vld [vmem:[#allocation2 + $0x130] sm:$0xff]
      %v616 = vld [vmem:[#allocation2 + $0x138] sm:$0xff]
      %v627 = vrot.slane %v580, 7
      %v628 = vrot.slane %v584, 7
      %v629 = vrot.slane %v588, 7
      %v630 = vrot.slane %v592, 7
      %v631 = vrot.slane %v596, 7
      %v632 = vrot.slane %v600, 7
      %v633 = vrot.slane %v604, 7
      %v634 = vrot.slane %v608, 7
      %v635 = vrot.slane %v612, 7
      %v636 = vrot.slane %v616, 7
      %vm677 = vcmask 1040384
      %v678 = vrot.slane %v577, 7
      %v679 = vrot.slane %v578, 7
      %v680 = vsel %vm677, %v678, %v679
      %v681 = vrot.slane %v579, 7
      %v682 = vsel %vm677, %v679, %v681
      %v683 = vsel %vm677, %v681, %v627
      %v684 = vrot.slane %v581, 7
      %v685 = vrot.slane %v582, 7
      %v686 = vsel %vm677, %v684, %v685
      %v687 = vrot.slane %v583, 7
      %v688 = vsel %vm677, %v685, %v687
      %v689 = vsel %vm677, %v687, %v628
      %v690 = vrot.slane %v585, 7
      %v691 = vrot.slane %v586, 7
      %v692 = vsel %vm677, %v690, %v691
      %v693 = vrot.slane %v587, 7
      %v694 = vsel %vm677, %v691, %v693
      %v695 = vsel %vm677, %v693, %v629
      %v696 = vrot.slane %v589, 7
      %v697 = vrot.slane %v590, 7
      %v698 = vsel %vm677, %v696, %v697
      %v699 = vrot.slane %v591, 7
      %v700 = vsel %vm677, %v697, %v699
      %v701 = vsel %vm677, %v699, %v630
      %v702 = vrot.slane %v593, 7
      %v703 = vrot.slane %v594, 7
      %v704 = vsel %vm677, %v702, %v703
      %v705 = vrot.slane %v595, 7
      %v706 = vsel %vm677, %v703, %v705
      %v707 = vsel %vm677, %v705, %v631
      %v708 = vrot.slane %v597, 7
      %v709 = vrot.slane %v598, 7
      %v710 = vsel %vm677, %v708, %v709
      %v711 = vrot.slane %v599, 7
      %v712 = vsel %vm677, %v709, %v711
      %v713 = vsel %vm677, %v711, %v632
      %v714 = vrot.slane %v601, 7
      %v715 = vrot.slane %v602, 7
      %v716 = vsel %vm677, %v714, %v715
      %v717 = vrot.slane %v603, 7
      %v718 = vsel %vm677, %v715, %v717
      %v719 = vsel %vm677, %v717, %v633
      %v720 = vrot.slane %v605, 7
      %v721 = vrot.slane %v606, 7
      %v722 = vsel %vm677, %v720, %v721
      %v723 = vrot.slane %v607, 7
      %v724 = vsel %vm677, %v721, %v723
      %v725 = vsel %vm677, %v723, %v634
      %v726 = vrot.slane %v609, 7
      %v727 = vrot.slane %v610, 7
      %v728 = vsel %vm677, %v726, %v727
      %v729 = vrot.slane %v611, 7
      %v730 = vsel %vm677, %v727, %v729
      %v731 = vsel %vm677, %v729, %v635
      %v732 = vrot.slane %v613, 7
      %v733 = vrot.slane %v614, 7
      %v734 = vsel %vm677, %v732, %v733
      %v735 = vrot.slane %v615, 7
      %v736 = vsel %vm677, %v733, %v735
      %v737 = vsel %vm677, %v735, %v636
      %v778 = vsel %vm677, %v627, %v678
      %v779 = vsel %vm677, %v628, %v684
      %v780 = vsel %vm677, %v629, %v690
      %v781 = vsel %vm677, %v630, %v696
      %v782 = vsel %vm677, %v631, %v702
      %v783 = vsel %vm677, %v632, %v708
      %v784 = vsel %vm677, %v633, %v714
      %v785 = vsel %vm677, %v634, %v720
      %v786 = vsel %vm677, %v635, %v726
      %v787 = vsel %vm677, %v636, %v732
      %vm788 = vcmask 1046528
      %v789 = vrot.slane %v577, 1
      %v790 = vrot.slane %v578, 1
      %v791 = vsel %vm788, %v789, %v790
      %v792 = vrot.slane %v579, 1
      %v793 = vsel %vm788, %v790, %v792
      %v794 = vrot.slane %v580, 1
      %v795 = vsel %vm788, %v792, %v794
      %v796 = vrot.slane %v581, 1
      %v797 = vrot.slane %v582, 1
      %v798 = vsel %vm788, %v796, %v797
      %v799 = vrot.slane %v583, 1
      %v800 = vsel %vm788, %v797, %v799
      %v801 = vrot.slane %v584, 1
      %v802 = vsel %vm788, %v799, %v801
      %v803 = vrot.slane %v585, 1
      %v804 = vrot.slane %v586, 1
      %v805 = vsel %vm788, %v803, %v804
      %v806 = vrot.slane %v587, 1
      %v807 = vsel %vm788, %v804, %v806
      %v808 = vrot.slane %v588, 1
      %v809 = vsel %vm788, %v806, %v808
      %v810 = vrot.slane %v589, 1
      %v811 = vrot.slane %v590, 1
      %v812 = vsel %vm788, %v810, %v811
      %v813 = vrot.slane %v591, 1
      %v814 = vsel %vm788, %v811, %v813
      %v815 = vrot.slane %v592, 1
      %v816 = vsel %vm788, %v813, %v815
      %v817 = vrot.slane %v593, 1
      %v818 = vrot.slane %v594, 1
      %v819 = vsel %vm788, %v817, %v818
      %v820 = vrot.slane %v595, 1
      %v821 = vsel %vm788, %v818, %v820
      %v822 = vrot.slane %v596, 1
      %v823 = vsel %vm788, %v820, %v822
      %v824 = vrot.slane %v597, 1
      %v825 = vrot.slane %v598, 1
      %v826 = vsel %vm788, %v824, %v825
      %v827 = vrot.slane %v599, 1
      %v828 = vsel %vm788, %v825, %v827
      %v829 = vrot.slane %v600, 1
      %v830 = vsel %vm788, %v827, %v829
      %v831 = vrot.slane %v601, 1
      %v832 = vrot.slane %v602, 1
      %v833 = vsel %vm788, %v831, %v832
      %v834 = vrot.slane %v603, 1
      %v835 = vsel %vm788, %v832, %v834
      %v836 = vrot.slane %v604, 1
      %v837 = vsel %vm788, %v834, %v836
      %v838 = vrot.slane %v605, 1
      %v839 = vrot.slane %v606, 1
      %v840 = vsel %vm788, %v838, %v839
      %v841 = vrot.slane %v607, 1
      %v842 = vsel %vm788, %v839, %v841
      %v843 = vrot.slane %v608, 1
      %v844 = vsel %vm788, %v841, %v843
      %v845 = vrot.slane %v609, 1
      %v846 = vrot.slane %v610, 1
      %v847 = vsel %vm788, %v845, %v846
      %v848 = vrot.slane %v611, 1
      %v849 = vsel %vm788, %v846, %v848
      %v850 = vrot.slane %v612, 1
      %v851 = vsel %vm788, %v848, %v850
      %v852 = vrot.slane %v613, 1
      %v853 = vrot.slane %v614, 1
      %v854 = vsel %vm788, %v852, %v853
      %v855 = vrot.slane %v615, 1
      %v856 = vsel %vm788, %v853, %v855
      %v857 = vrot.slane %v616, 1
      %v858 = vsel %vm788, %v855, %v857
      %v909 = vsel %vm788, %v794, %v789
      %v910 = vsel %vm788, %v801, %v796
      %v911 = vsel %vm788, %v808, %v803
      %v912 = vsel %vm788, %v815, %v810
      %v913 = vsel %vm788, %v822, %v817
      %v914 = vsel %vm788, %v829, %v824
      %v915 = vsel %vm788, %v836, %v831
      %v916 = vsel %vm788, %v843, %v838
      %v917 = vsel %vm788, %v850, %v845
      %v918 = vsel %vm788, %v857, %v852
      %v919 = vpack.c.bf16 %v680, %v778
      %v920 = vpack.c.bf16 %v683, %v682
      %v921 = vpack.c.bf16 %v686, %v779
      %v922 = vpack.c.bf16 %v689, %v688
      %v923 = vpack.c.bf16 %v692, %v780
      %v924 = vpack.c.bf16 %v695, %v694
      %v925 = vpack.c.bf16 %v698, %v781
      %v926 = vpack.c.bf16 %v701, %v700
      %v927 = vpack.c.bf16 %v704, %v782
      %v928 = vpack.c.bf16 %v707, %v706
      %v929 = vpack.c.bf16 %v710, %v783
      %v930 = vpack.c.bf16 %v713, %v712
      %v931 = vpack.c.bf16 %v716, %v784
      %v932 = vpack.c.bf16 %v719, %v718
      %v933 = vpack.c.bf16 %v722, %v785
      %v934 = vpack.c.bf16 %v725, %v724
      %v935 = vpack.c.bf16 %v728, %v786
      %v936 = vpack.c.bf16 %v731, %v730
      %v937 = vpack.c.bf16 %v734, %v787
      %v938 = vpack.c.bf16 %v737, %v736
      %v939 = vpack.c.bf16 %v578, %v577
      %v940 = vpack.c.bf16 %v580, %v579
      %v941 = vpack.c.bf16 %v582, %v581
      %v942 = vpack.c.bf16 %v584, %v583
      %v943 = vpack.c.bf16 %v586, %v585
      %v944 = vpack.c.bf16 %v588, %v587
      %v945 = vpack.c.bf16 %v590, %v589
      %v946 = vpack.c.bf16 %v592, %v591
      %v947 = vpack.c.bf16 %v594, %v593
      %v948 = vpack.c.bf16 %v596, %v595
      %v949 = vpack.c.bf16 %v598, %v597
      %v950 = vpack.c.bf16 %v600, %v599
      %v951 = vpack.c.bf16 %v602, %v601
      %v952 = vpack.c.bf16 %v604, %v603
      %v953 = vpack.c.bf16 %v606, %v605
      %v954 = vpack.c.bf16 %v608, %v607
      %v955 = vpack.c.bf16 %v610, %v609
      %v956 = vpack.c.bf16 %v612, %v611
      %v957 = vpack.c.bf16 %v614, %v613
      %v958 = vpack.c.bf16 %v616, %v615
      %v959 = vpack.c.bf16 %v793, %v791
      %v960 = vpack.c.bf16 %v909, %v795
      %v961 = vpack.c.bf16 %v800, %v798
      %v962 = vpack.c.bf16 %v910, %v802
      %v963 = vpack.c.bf16 %v807, %v805
      %v964 = vpack.c.bf16 %v911, %v809
      %v965 = vpack.c.bf16 %v814, %v812
      %v966 = vpack.c.bf16 %v912, %v816
      %v967 = vpack.c.bf16 %v821, %v819
      %v968 = vpack.c.bf16 %v913, %v823
      %v969 = vpack.c.bf16 %v828, %v826
      %v970 = vpack.c.bf16 %v914, %v830
      %v971 = vpack.c.bf16 %v835, %v833
      %v972 = vpack.c.bf16 %v915, %v837
      %v973 = vpack.c.bf16 %v842, %v840
      %v974 = vpack.c.bf16 %v916, %v844
      %v975 = vpack.c.bf16 %v849, %v847
      %v976 = vpack.c.bf16 %v917, %v851
      %v977 = vpack.c.bf16 %v856, %v854
      %v978 = vpack.c.bf16 %v918, %v858
      %v979 = vld [vmem:[%s1] sm:$0xf]
      %v980 = vld [vmem:[%s1 + $0x4] sm:$0xf]
      %v981 = vld [vmem:[%s1 + $0x8] sm:$0xf]
      %v982 = vld [vmem:[%s1 + $0xc] sm:$0xf]
      %v983 = vld [vmem:[%s1 + $0x10] sm:$0xf]
      %v984 = vld [vmem:[%s1 + $0x14] sm:$0xf]
      %v985 = vld [vmem:[%s1 + $0x18] sm:$0xf]
      %v986 = vld [vmem:[%s1 + $0x1c] sm:$0xf]
      %v987 = vld [vmem:[%s1 + $0x20] sm:$0xf]
      %v988 = vld [vmem:[%s1 + $0x24] sm:$0xf]
      %v989 = vld [vmem:[%s1 + $0x28] sm:$0xf]
      %v990 = vld [vmem:[%s1 + $0x2c] sm:$0xf]
      %v991 = vld [vmem:[%s1 + $0x30] sm:$0xf]
      %v992 = vld [vmem:[%s1 + $0x34] sm:$0xf]
      %v993 = vld [vmem:[%s1 + $0x38] sm:$0xf]
      %v994 = vld [vmem:[%s1 + $0x3c] sm:$0xf]
      %v995 = vld [vmem:[%s1 + $0x40] sm:$0xf]
      %v996 = vld [vmem:[%s1 + $0x44] sm:$0xf]
      %v997 = vld [vmem:[%s1 + $0x48] sm:$0xf]
      %v998 = vld [vmem:[%s1 + $0x4c] sm:$0xf]
      %v999 = vld [vmem:[%s1 + $0x50] sm:$0xf]
      %v1000 = vld [vmem:[%s1 + $0x54] sm:$0xf]
      %v1001 = vld [vmem:[%s1 + $0x58] sm:$0xf]
      %v1002 = vld [vmem:[%s1 + $0x5c] sm:$0xf]
      %v1003 = vld [vmem:[%s1 + $0x60] sm:$0xf]
      %v1004 = vld [vmem:[%s1 + $0x64] sm:$0xf]
      %v1005 = vld [vmem:[%s1 + $0x68] sm:$0xf]
      %v1006 = vld [vmem:[%s1 + $0x6c] sm:$0xf]
      %v1007 = vld [vmem:[%s1 + $0x70] sm:$0xf]
      %v1008 = vld [vmem:[%s1 + $0x74] sm:$0xf]
      %v1009 = vld [vmem:[%s1 + $0x78] sm:$0xf]
      %v1010 = vld [vmem:[%s1 + $0x7c] sm:$0xf]
      %v1011 = vld [vmem:[%s1 + $0x80] sm:$0xf]
      %v1012 = vld [vmem:[%s1 + $0x84] sm:$0xf]
      %v1013 = vld [vmem:[%s1 + $0x88] sm:$0xf]
      %v1014 = vld [vmem:[%s1 + $0x8c] sm:$0xf]
      %v1015 = vld [vmem:[%s1 + $0x90] sm:$0xf]
      %v1016 = vld [vmem:[%s1 + $0x94] sm:$0xf]
      %v1017 = vld [vmem:[%s1 + $0x98] sm:$0xf]
      %v1018 = vld [vmem:[%s1 + $0x9c] sm:$0xf]
      %v1019 = vld [vmem:[%s1 + $0xa0] sm:$0xf]
      %v1020 = vld [vmem:[%s1 + $0xa4] sm:$0xf]
      %v1021 = vld [vmem:[%s1 + $0xa8] sm:$0xf]
      %v1022 = vld [vmem:[%s1 + $0xac] sm:$0xf]
      %v1023 = vld [vmem:[%s1 + $0xb0] sm:$0xf]
      %v1024 = vld [vmem:[%s1 + $0xb4] sm:$0xf]
      %v1025 = vld [vmem:[%s1 + $0xb8] sm:$0xf]
      %v1026 = vld [vmem:[%s1 + $0xbc] sm:$0xf]
      %s1027 = scalar_lea.vmem %s1, 192
      %v1028 = vld [vmem:[%s1027] sm:$0xf]
      %v1029 = vld [vmem:[%s1027 + $0x4] sm:$0xf]
      %v1030 = vld [vmem:[%s1027 + $0x8] sm:$0xf]
      %v1031 = vld [vmem:[%s1027 + $0xc] sm:$0xf]
      %v1032 = vld [vmem:[%s1027 + $0x10] sm:$0xf]
      %v1033 = vld [vmem:[%s1027 + $0x14] sm:$0xf]
      %v1034 = vld [vmem:[%s1027 + $0x18] sm:$0xf]
      %v1035 = vld [vmem:[%s1027 + $0x1c] sm:$0xf]
      %v1036 = vld [vmem:[%s1027 + $0x20] sm:$0xf]
      %v1037 = vld [vmem:[%s1027 + $0x24] sm:$0xf]
      %v1038 = vld [vmem:[%s1027 + $0x28] sm:$0xf]
      %v1039 = vld [vmem:[%s1027 + $0x2c] sm:$0xf]
      %v1040 = vld [vmem:[%s1027 + $0x30] sm:$0xf]
      %v1041 = vld [vmem:[%s1027 + $0x34] sm:$0xf]
      %v1042 = vld [vmem:[%s1027 + $0x38] sm:$0xf]
      %v1043 = vld [vmem:[%s1027 + $0x3c] sm:$0xf]
      %v1044 = vld [vmem:[%s1027 + $0x40] sm:$0xf]
      %v1045 = vld [vmem:[%s1027 + $0x44] sm:$0xf]
      %v1046 = vld [vmem:[%s1027 + $0x48] sm:$0xf]
      %v1047 = vld [vmem:[%s1027 + $0x4c] sm:$0xf]
      %v1048 = vld [vmem:[%s1027 + $0x50] sm:$0xf]
      %v1049 = vld [vmem:[%s1027 + $0x54] sm:$0xf]
      %v1050 = vld [vmem:[%s1027 + $0x58] sm:$0xf]
      %v1051 = vld [vmem:[%s1027 + $0x5c] sm:$0xf]
      %v1052 = vld [vmem:[%s1027 + $0x60] sm:$0xf]
      %v1053 = vld [vmem:[%s1027 + $0x64] sm:$0xf]
      %v1054 = vld [vmem:[%s1027 + $0x68] sm:$0xf]
      %v1055 = vld [vmem:[%s1027 + $0x6c] sm:$0xf]
      %v1056 = vld [vmem:[%s1027 + $0x70] sm:$0xf]
      %v1057 = vld [vmem:[%s1027 + $0x74] sm:$0xf]
      %v1058 = vld [vmem:[%s1027 + $0x78] sm:$0xf]
      %v1059 = vld [vmem:[%s1027 + $0x7c] sm:$0xf]
      %v1060 = vld [vmem:[%s1027 + $0x80] sm:$0xf]
      %v1061 = vld [vmem:[%s1027 + $0x84] sm:$0xf]
      %v1062 = vld [vmem:[%s1027 + $0x88] sm:$0xf]
      %v1063 = vld [vmem:[%s1027 + $0x8c] sm:$0xf]
      %v1064 = vld [vmem:[%s1027 + $0x90] sm:$0xf]
      %v1065 = vld [vmem:[%s1027 + $0x94] sm:$0xf]
      %v1066 = vld [vmem:[%s1027 + $0x98] sm:$0xf]
      %v1067 = vld [vmem:[%s1027 + $0x9c] sm:$0xf]
      %v1068 = vld [vmem:[%s1027 + $0xa0] sm:$0xf]
      %v1069 = vld [vmem:[%s1027 + $0xa4] sm:$0xf]
      %v1070 = vld [vmem:[%s1027 + $0xa8] sm:$0xf]
      %v1071 = vld [vmem:[%s1027 + $0xac] sm:$0xf]
      %v1072 = vld [vmem:[%s1027 + $0xb0] sm:$0xf]
      %v1073 = vld [vmem:[%s1027 + $0xb4] sm:$0xf]
      %v1074 = vld [vmem:[%s1027 + $0xb8] sm:$0xf]
      %v1075 = vld [vmem:[%s1027 + $0xbc] sm:$0xf]
      %v1124 = vunpack.c.l.b16 %v1028
      %v1125 = vunpack.c.l.b16 %v1029
      %v1126 = vunpack.c.l.b16 %v1030
      %v1127 = vunpack.c.l.b16 %v1031
      %v1128 = vunpack.c.l.b16 %v1032
      %v1129 = vunpack.c.l.b16 %v1033
      %v1130 = vunpack.c.l.b16 %v1034
      %v1131 = vunpack.c.l.b16 %v1035
      %v1132 = vunpack.c.l.b16 %v1036
      %v1133 = vunpack.c.l.b16 %v1037
      %v1134 = vunpack.c.l.b16 %v1038
      %v1135 = vunpack.c.l.b16 %v1039
      %v1136 = vunpack.c.l.b16 %v1040
      %v1137 = vunpack.c.l.b16 %v1041
      %v1138 = vunpack.c.l.b16 %v1042
      %v1139 = vunpack.c.l.b16 %v1043
      %v1140 = vunpack.c.l.b16 %v1044
      %v1141 = vunpack.c.l.b16 %v1045
      %v1142 = vunpack.c.l.b16 %v1046
      %v1143 = vunpack.c.l.b16 %v1047
      %v1144 = vunpack.c.l.b16 %v1048
      %v1145 = vunpack.c.l.b16 %v1049
      %v1146 = vunpack.c.l.b16 %v1050
      %v1147 = vunpack.c.l.b16 %v1051
      %v1148 = vunpack.c.l.b16 %v1052
      %v1149 = vunpack.c.l.b16 %v1053
      %v1150 = vunpack.c.l.b16 %v1054
      %v1151 = vunpack.c.l.b16 %v1055
      %v1152 = vunpack.c.l.b16 %v1056
      %v1153 = vunpack.c.l.b16 %v1057
      %v1154 = vunpack.c.l.b16 %v1058
      %v1155 = vunpack.c.l.b16 %v1059
      %v1156 = vunpack.c.l.b16 %v1060
      %v1157 = vunpack.c.l.b16 %v1061
      %v1158 = vunpack.c.l.b16 %v1062
      %v1159 = vunpack.c.l.b16 %v1063
      %v1160 = vunpack.c.l.b16 %v1064
      %v1161 = vunpack.c.l.b16 %v1065
      %v1162 = vunpack.c.l.b16 %v1066
      %v1163 = vunpack.c.l.b16 %v1067
      %v1164 = vunpack.c.l.b16 %v1068
      %v1165 = vunpack.c.l.b16 %v1069
      %v1166 = vunpack.c.l.b16 %v1070
      %v1167 = vunpack.c.l.b16 %v1071
      %v1168 = vunpack.c.l.b16 %v1072
      %v1169 = vunpack.c.l.b16 %v1073
      %v1170 = vunpack.c.l.b16 %v1074
      %v1171 = vunpack.c.l.b16 %v1075
      %v1172 = vpack.c.b16 %v1125, %v1124
      %v1173 = vpack.c.b16 %v1127, %v1126
      %v1174 = vpack.c.b16 %v1129, %v1128
      %v1175 = vpack.c.b16 %v1131, %v1130
      %v1176 = vpack.c.b16 %v1133, %v1132
      %v1177 = vpack.c.b16 %v1135, %v1134
      %v1178 = vpack.c.b16 %v1137, %v1136
      %v1179 = vpack.c.b16 %v1139, %v1138
      %v1180 = vpack.c.b16 %v1141, %v1140
      %v1181 = vpack.c.b16 %v1143, %v1142
      %v1182 = vpack.c.b16 %v1145, %v1144
      %v1183 = vpack.c.b16 %v1147, %v1146
      %v1184 = vpack.c.b16 %v1149, %v1148
      %v1185 = vpack.c.b16 %v1151, %v1150
      %v1186 = vpack.c.b16 %v1153, %v1152
      %v1187 = vpack.c.b16 %v1155, %v1154
      %v1188 = vpack.c.b16 %v1157, %v1156
      %v1189 = vpack.c.b16 %v1159, %v1158
      %v1190 = vpack.c.b16 %v1161, %v1160
      %v1191 = vpack.c.b16 %v1163, %v1162
      %v1192 = vpack.c.b16 %v1165, %v1164
      %v1193 = vpack.c.b16 %v1167, %v1166
      %v1194 = vpack.c.b16 %v1169, %v1168
      %v1195 = vpack.c.b16 %v1171, %v1170
      %1220 = vmatprep.subr.bf16.mxu0 0
      %1221 = vmatpush1.bf16.msra.mxu0 %v1172
      %1222 = vmatprep.subr.bf16.mxu0 0
      %1223 = vmatpush1.bf16.msra.mxu0 %v1173
      %1224 = vmatprep.subr.bf16.mxu0 0
      %1225 = vmatpush1.bf16.msra.mxu0 %v1174
      %1226 = vmatprep.subr.bf16.mxu0 0
      %1227 = vmatpush1.bf16.msra.mxu0 %v1175
      %1228 = vmatprep.subr.bf16.mxu0 0
      %1229 = vmatpush1.bf16.msra.mxu0 %v1176
      %1230 = vmatprep.subr.bf16.mxu0 0
      %1231 = vmatpush1.bf16.msra.mxu0 %v1177
      %1232 = vmatprep.subr.bf16.mxu0 0
      %1233 = vmatpush1.bf16.msra.mxu0 %v1178
      %1234 = vmatprep.subr.bf16.mxu0 0
      %1235 = vmatpush1.bf16.msra.mxu0 %v1179
      %1236 = vmatprep.subr.bf16.mxu0 0
      %1237 = vmatpush1.bf16.msra.mxu0 %v1180
      %1238 = vmatprep.subr.bf16.mxu0 0
      %1239 = vmatpush1.bf16.msra.mxu0 %v1181
      %1240 = vmatprep.subr.bf16.mxu0 0
      %1241 = vmatpush1.bf16.msra.mxu0 %v1182
      %1242 = vmatprep.subr.bf16.mxu0 0
      %1243 = vmatpush1.bf16.msra.mxu0 %v1183
      %1244 = vmatprep.subr.bf16.mxu0 0
      %1245 = vmatpush1.bf16.msra.mxu0 %v1184
      %1246 = vmatprep.subr.bf16.mxu0 0
      %1247 = vmatpush1.bf16.msra.mxu0 %v1185
      %1248 = vmatprep.subr.bf16.mxu0 0
      %1249 = vmatpush1.bf16.msra.mxu0 %v1186
      %1250 = vmatprep.subr.bf16.mxu0 0
      %1251 = vmatpush1.bf16.msra.mxu0 %v1187
      %1252 = vmatprep.mubr.bf16.mxu0 %v941
      %1253 = vmatmul.mubr.bf16.gmra.mrb[0].mxu0 %v921
      %v1254 = vpop.f32.mrb[0].mxu0
      %v1255 = vpop.f32.mrb[0].mxu0
      %v1256 = vpop.f32.mrb[0].mxu0
      %v1257 = vadd.f32 0.0, %v1256
      %v1258 = vpop.f32.mrb[0].mxu0
      %1259 = vmatprep.mubr.bf16.mxu0 %v942
      %1260 = vmatmul.mubr.bf16.gmra.mrb[0].mxu0 %v922
      %v1261 = vpop.f32.mrb[0].mxu0
      %v1262 = vadd.f32 0.0, %v1261
      %v1263 = vpop.f32.mrb[0].mxu0
      %v1264 = vpop.f32.mrb[0].mxu0
      %v1265 = vpop.f32.mrb[0].mxu0
      %1266 = vmatprep.mubr.bf16.mxu0 %v943
      %1267 = vmatmul.mubr.bf16.gmra.mrb[0].mxu0 %v923
      %v1268 = vpop.f32.mrb[0].mxu0
      %v1269 = vpop.f32.mrb[0].mxu0
      %v1270 = vpop.f32.mrb[0].mxu0
      %v1271 = vadd.f32 0.0, %v1270
      %v1272 = vpop.f32.mrb[0].mxu0
      %1273 = vmatprep.mubr.bf16.mxu0 %v944
      %1274 = vmatmul.mubr.bf16.gmra.mrb[0].mxu0 %v924
      %v1275 = vpop.f32.mrb[0].mxu0
      %v1276 = vadd.f32 0.0, %v1275
      %v1277 = vpop.f32.mrb[0].mxu0
      %v1278 = vpop.f32.mrb[0].mxu0
      %v1279 = vpop.f32.mrb[0].mxu0
      %1280 = vmatprep.mubr.bf16.mxu0 %v945
      %1281 = vmatmul.mubr.bf16.gmra.mrb[0].mxu0 %v925
      %v1282 = vpop.f32.mrb[0].mxu0
      %v1283 = vpop.f32.mrb[0].mxu0
      %v1284 = vpop.f32.mrb[0].mxu0
      %v1285 = vadd.f32 0.0, %v1284
      %v1286 = vpop.f32.mrb[0].mxu0
      %1287 = vmatprep.mubr.bf16.mxu0 %v946
      %1288 = vmatmul.mubr.bf16.gmra.mrb[0].mxu0 %v926
      %v1289 = vpop.f32.mrb[0].mxu0
      %v1290 = vadd.f32 0.0, %v1289
      %v1291 = vpop.f32.mrb[0].mxu0
      %v1292 = vpop.f32.mrb[0].mxu0
      %v1293 = vpop.f32.mrb[0].mxu0
      %1294 = vmatprep.mubr.bf16.mxu0 %v947
      %1295 = vmatmul.mubr.bf16.gmra.mrb[0].mxu0 %v927
      %v1296 = vpop.f32.mrb[0].mxu0
      %v1297 = vpop.f32.mrb[0].mxu0
      %v1298 = vpop.f32.mrb[0].mxu0
      %v1299 = vadd.f32 0.0, %v1298
      %v1300 = vpop.f32.mrb[0].mxu0
      %1301 = vmatprep.mubr.bf16.mxu0 %v948
      %1302 = vmatmul.mubr.bf16.gmra.mrb[0].mxu0 %v928
      %v1303 = vpop.f32.mrb[0].mxu0
      %v1304 = vadd.f32 0.0, %v1303
      %v1305 = vpop.f32.mrb[0].mxu0
      %v1306 = vpop.f32.mrb[0].mxu0
      %v1307 = vpop.f32.mrb[0].mxu0
      %1308 = vmatprep.mubr.bf16.mxu0 %v949
      %1309 = vmatmul.mubr.bf16.gmra.mrb[0].mxu0 %v929
      %v1310 = vpop.f32.mrb[0].mxu0
      %v1311 = vpop.f32.mrb[0].mxu0
      %v1312 = vpop.f32.mrb[0].mxu0
      %v1313 = vadd.f32 0.0, %v1312
      %v1314 = vpop.f32.mrb[0].mxu0
      %1315 = vmatprep.mubr.bf16.mxu0 %v950
      %1316 = vmatmul.mubr.bf16.gmra.mrb[0].mxu0 %v930
      %v1317 = vpop.f32.mrb[0].mxu0
      %v1318 = vadd.f32 0.0, %v1317
      %v1319 = vpop.f32.mrb[0].mxu0
      %v1320 = vpop.f32.mrb[0].mxu0
      %v1321 = vpop.f32.mrb[0].mxu0
      %1322 = vmatprep.mubr.bf16.mxu0 %v951
      %1323 = vmatmul.mubr.bf16.gmra.mrb[0].mxu0 %v931
      %v1324 = vpop.f32.mrb[0].mxu0
      %v1325 = vpop.f32.mrb[0].mxu0
      %v1326 = vpop.f32.mrb[0].mxu0
      %v1327 = vadd.f32 0.0, %v1326
      %v1328 = vpop.f32.mrb[0].mxu0
      %1329 = vmatprep.mubr.bf16.mxu0 %v952
      %1330 = vmatmul.mubr.bf16.gmra.mrb[0].mxu0 %v932
      %v1331 = vpop.f32.mrb[0].mxu0
      %v1332 = vadd.f32 0.0, %v1331
      %v1333 = vpop.f32.mrb[0].mxu0
      %v1334 = vpop.f32.mrb[0].mxu0
      %v1335 = vpop.f32.mrb[0].mxu0
      %1336 = vmatprep.mubr.bf16.mxu0 %v953
      %1337 = vmatmul.mubr.bf16.gmra.mrb[0].mxu0 %v933
      %v1338 = vpop.f32.mrb[0].mxu0
      %v1339 = vpop.f32.mrb[0].mxu0
      %v1340 = vpop.f32.mrb[0].mxu0
      %v1341 = vadd.f32 0.0, %v1340
      %v1342 = vpop.f32.mrb[0].mxu0
      %1343 = vmatprep.mubr.bf16.mxu0 %v954
      %1344 = vmatmul.mubr.bf16.gmra.mrb[0].mxu0 %v934
      %v1345 = vpop.f32.mrb[0].mxu0
      %v1346 = vadd.f32 0.0, %v1345
      %v1347 = vpop.f32.mrb[0].mxu0
      %v1348 = vpop.f32.mrb[0].mxu0
      %v1349 = vpop.f32.mrb[0].mxu0
      %1350 = vmatprep.mubr.bf16.mxu0 %v955
      %1351 = vmatmul.mubr.bf16.gmra.mrb[0].mxu0 %v935
      %v1352 = vpop.f32.mrb[0].mxu0
      %v1353 = vpop.f32.mrb[0].mxu0
      %v1354 = vpop.f32.mrb[0].mxu0
      %v1355 = vadd.f32 0.0, %v1354
      %v1356 = vpop.f32.mrb[0].mxu0
      %1357 = vmatprep.mubr.bf16.mxu0 %v956
      %1358 = vmatmul.mubr.bf16.gmra.mrb[0].mxu0 %v936
      %v1359 = vpop.f32.mrb[0].mxu0
      %v1360 = vadd.f32 0.0, %v1359
      %v1361 = vpop.f32.mrb[0].mxu0
      %v1362 = vpop.f32.mrb[0].mxu0
      %v1363 = vpop.f32.mrb[0].mxu0
      %1364 = vdwg.mxu0
      %1365 = vmatprep.subr.bf16.mxu0 0
      %1366 = vmatpush1.bf16.msra.mxu0 %v1188
      %1367 = vmatprep.subr.bf16.mxu0 0
      %1368 = vmatpush1.bf16.msra.mxu0 %v1189
      %1369 = vmatprep.subr.bf16.mxu0 0
      %1370 = vmatpush1.bf16.msra.mxu0 %v1190
      %1371 = vmatprep.subr.bf16.mxu0 0
      %1372 = vmatpush1.bf16.msra.mxu0 %v1191
      %1373 = vmatprep.subr.bf16.mxu0 0
      %1374 = vmatpush1.bf16.msra.mxu0 %v1192
      %1375 = vmatprep.subr.bf16.mxu0 0
      %1376 = vmatpush1.bf16.msra.mxu0 %v1193
      %1377 = vmatprep.subr.bf16.mxu0 0
      %1378 = vmatpush1.bf16.msra.mxu0 %v1194
      %1379 = vmatprep.subr.bf16.mxu0 0
      %1380 = vmatpush1.bf16.msra.mxu0 %v1195
      %1381 = vmatprep.subr.bf16.mxu0 0
      %1382 = vmatpush1.bf16.msra.mxu0 0
      %1383 = vmatprep.subr.bf16.mxu0 0
      %1384 = vmatpush1.bf16.msra.mxu0 0
      %1385 = vmatprep.subr.bf16.mxu0 0
      %1386 = vmatpush1.bf16.msra.mxu0 0
      %1387 = vmatprep.subr.bf16.mxu0 0
      %1388 = vmatpush1.bf16.msra.mxu0 0
      %1389 = vmatprep.subr.bf16.mxu0 0
      %1390 = vmatpush1.bf16.msra.mxu0 0
      %1391 = vmatprep.subr.bf16.mxu0 0
      %1392 = vmatpush1.bf16.msra.mxu0 0
      %1393 = vmatprep.subr.bf16.mxu0 0
      %1394 = vmatpush1.bf16.msra.mxu0 0
      %1395 = vmatprep.subr.bf16.mxu0 0
      %1396 = vmatpush1.bf16.msra.mxu0 0
      %1397 = vmatprep.mubr.bf16.mxu0 0
      %1398 = vmatmul.mubr.bf16.gmra.mrb[0].mxu0 %v961
      %v1399 = vpop.f32.mrb[0].mxu0
      %v1400 = vpop.f32.mrb[0].mxu0
      %v1401 = vpop.f32.mrb[0].mxu0
      %v1402 = vadd.f32 %v1257, %v1401
      %v1403 = vpop.f32.mrb[0].mxu0
      %1404 = vmatprep.mubr.bf16.mxu0 0
      %1405 = vmatmul.mubr.bf16.gmra.mrb[0].mxu0 %v962
      %v1406 = vpop.f32.mrb[0].mxu0
      %v1407 = vadd.f32 %v1262, %v1406
      %v1408 = vpop.f32.mrb[0].mxu0
      %v1409 = vpop.f32.mrb[0].mxu0
      %v1410 = vpop.f32.mrb[0].mxu0
      %1411 = vmatprep.mubr.bf16.mxu0 0
      %1412 = vmatmul.mubr.bf16.gmra.mrb[0].mxu0 %v963
      %v1413 = vpop.f32.mrb[0].mxu0
      %v1414 = vpop.f32.mrb[0].mxu0
      %v1415 = vpop.f32.mrb[0].mxu0
      %v1416 = vadd.f32 %v1271, %v1415
      %v1417 = vpop.f32.mrb[0].mxu0
      %1418 = vmatprep.mubr.bf16.mxu0 0
      %1419 = vmatmul.mubr.bf16.gmra.mrb[0].mxu0 %v964
      %v1420 = vpop.f32.mrb[0].mxu0
      %v1421 = vadd.f32 %v1276, %v1420
      %v1422 = vpop.f32.mrb[0].mxu0
      %v1423 = vpop.f32.mrb[0].mxu0
      %v1424 = vpop.f32.mrb[0].mxu0
      %1425 = vmatprep.mubr.bf16.mxu0 0
      %1426 = vmatmul.mubr.bf16.gmra.mrb[0].mxu0 %v965
      %v1427 = vpop.f32.mrb[0].mxu0
      %v1428 = vpop.f32.mrb[0].mxu0
      %v1429 = vpop.f32.mrb[0].mxu0
      %v1430 = vadd.f32 %v1285, %v1429
      %v1431 = vpop.f32.mrb[0].mxu0
      %1432 = vmatprep.mubr.bf16.mxu0 0
      %1433 = vmatmul.mubr.bf16.gmra.mrb[0].mxu0 %v966
      %v1434 = vpop.f32.mrb[0].mxu0
      %v1435 = vadd.f32 %v1290, %v1434
      %v1436 = vpop.f32.mrb[0].mxu0
      %v1437 = vpop.f32.mrb[0].mxu0
      %v1438 = vpop.f32.mrb[0].mxu0
      %1439 = vmatprep.mubr.bf16.mxu0 0
      %1440 = vmatmul.mubr.bf16.gmra.mrb[0].mxu0 %v967
      %v1441 = vpop.f32.mrb[0].mxu0
      %v1442 = vpop.f32.mrb[0].mxu0
      %v1443 = vpop.f32.mrb[0].mxu0
      %v1444 = vadd.f32 %v1299, %v1443
      %v1445 = vpop.f32.mrb[0].mxu0
      %1446 = vmatprep.mubr.bf16.mxu0 0
      %1447 = vmatmul.mubr.bf16.gmra.mrb[0].mxu0 %v968
      %v1448 = vpop.f32.mrb[0].mxu0
      %v1449 = vadd.f32 %v1304, %v1448
      %v1450 = vpop.f32.mrb[0].mxu0
      %v1451 = vpop.f32.mrb[0].mxu0
      %v1452 = vpop.f32.mrb[0].mxu0
      %1453 = vmatprep.mubr.bf16.mxu0 0
      %1454 = vmatmul.mubr.bf16.gmra.mrb[0].mxu0 %v969
      %v1455 = vpop.f32.mrb[0].mxu0
      %v1456 = vpop.f32.mrb[0].mxu0
      %v1457 = vpop.f32.mrb[0].mxu0
      %v1458 = vadd.f32 %v1313, %v1457
      %v1459 = vpop.f32.mrb[0].mxu0
      %1460 = vmatprep.mubr.bf16.mxu0 0
      %1461 = vmatmul.mubr.bf16.gmra.mrb[0].mxu0 %v970
      %v1462 = vpop.f32.mrb[0].mxu0
      %v1463 = vadd.f32 %v1318, %v1462
      %v1464 = vpop.f32.mrb[0].mxu0
      %v1465 = vpop.f32.mrb[0].mxu0
      %v1466 = vpop.f32.mrb[0].mxu0
      %1467 = vmatprep.mubr.bf16.mxu0 0
      %1468 = vmatmul.mubr.bf16.gmra.mrb[0].mxu0 %v971
      %v1469 = vpop.f32.mrb[0].mxu0
      %v1470 = vpop.f32.mrb[0].mxu0
      %v1471 = vpop.f32.mrb[0].mxu0
      %v1472 = vadd.f32 %v1327, %v1471
      %v1473 = vpop.f32.mrb[0].mxu0
      %1474 = vmatprep.mubr.bf16.mxu0 0
      %1475 = vmatmul.mubr.bf16.gmra.mrb[0].mxu0 %v972
      %v1476 = vpop.f32.mrb[0].mxu0
      %v1477 = vadd.f32 %v1332, %v1476
      %v1478 = vpop.f32.mrb[0].mxu0
      %v1479 = vpop.f32.mrb[0].mxu0
      %v1480 = vpop.f32.mrb[0].mxu0
      %1481 = vmatprep.mubr.bf16.mxu0 0
      %1482 = vmatmul.mubr.bf16.gmra.mrb[0].mxu0 %v973
      %v1483 = vpop.f32.mrb[0].mxu0
      %v1484 = vpop.f32.mrb[0].mxu0
      %v1485 = vpop.f32.mrb[0].mxu0
      %v1486 = vadd.f32 %v1341, %v1485
      %v1487 = vpop.f32.mrb[0].mxu0
      %1488 = vmatprep.mubr.bf16.mxu0 0
      %1489 = vmatmul.mubr.bf16.gmra.mrb[0].mxu0 %v974
      %v1490 = vpop.f32.mrb[0].mxu0
      %v1491 = vadd.f32 %v1346, %v1490
      %v1492 = vpop.f32.mrb[0].mxu0
      %v1493 = vpop.f32.mrb[0].mxu0
      %v1494 = vpop.f32.mrb[0].mxu0
      %1495 = vmatprep.mubr.bf16.mxu0 0
      %1496 = vmatmul.mubr.bf16.gmra.mrb[0].mxu0 %v975
      %v1497 = vpop.f32.mrb[0].mxu0
      %v1498 = vpop.f32.mrb[0].mxu0
      %v1499 = vpop.f32.mrb[0].mxu0
      %v1500 = vadd.f32 %v1355, %v1499
      %v1501 = vpop.f32.mrb[0].mxu0
      %1502 = vmatprep.mubr.bf16.mxu0 0
      %1503 = vmatmul.mubr.bf16.gmra.mrb[0].mxu0 %v976
      %v1504 = vpop.f32.mrb[0].mxu0
      %v1505 = vadd.f32 %v1360, %v1504
      %v1506 = vpop.f32.mrb[0].mxu0
      %v1507 = vpop.f32.mrb[0].mxu0
      %v1508 = vpop.f32.mrb[0].mxu0
      %1509 = vdwg.mxu0
      %v1558 = vunpack.c.l.b16 %v979
      %v1559 = vunpack.c.l.b16 %v980
      %v1560 = vunpack.c.l.b16 %v981
      %v1561 = vunpack.c.l.b16 %v982
      %v1562 = vunpack.c.l.b16 %v983
      %v1563 = vunpack.c.l.b16 %v984
      %v1564 = vunpack.c.l.b16 %v985
      %v1565 = vunpack.c.l.b16 %v986
      %v1566 = vunpack.c.l.b16 %v987
      %v1567 = vunpack.c.l.b16 %v988
      %v1568 = vunpack.c.l.b16 %v989
      %v1569 = vunpack.c.l.b16 %v990
      %v1570 = vunpack.c.l.b16 %v991
      %v1571 = vunpack.c.l.b16 %v992
      %v1572 = vunpack.c.l.b16 %v993
      %v1573 = vunpack.c.l.b16 %v994
      %v1574 = vunpack.c.l.b16 %v995
      %v1575 = vunpack.c.l.b16 %v996
      %v1576 = vunpack.c.l.b16 %v997
      %v1577 = vunpack.c.l.b16 %v998
      %v1578 = vunpack.c.l.b16 %v999
      %v1579 = vunpack.c.l.b16 %v1000
      %v1580 = vunpack.c.l.b16 %v1001
      %v1581 = vunpack.c.l.b16 %v1002
      %v1582 = vunpack.c.l.b16 %v1003
      %v1583 = vunpack.c.l.b16 %v1004
      %v1584 = vunpack.c.l.b16 %v1005
      %v1585 = vunpack.c.l.b16 %v1006
      %v1586 = vunpack.c.l.b16 %v1007
      %v1587 = vunpack.c.l.b16 %v1008
      %v1588 = vunpack.c.l.b16 %v1009
      %v1589 = vunpack.c.l.b16 %v1010
      %v1590 = vunpack.c.l.b16 %v1011
      %v1591 = vunpack.c.l.b16 %v1012
      %v1592 = vunpack.c.l.b16 %v1013
      %v1593 = vunpack.c.l.b16 %v1014
      %v1594 = vunpack.c.l.b16 %v1015
      %v1595 = vunpack.c.l.b16 %v1016
      %v1596 = vunpack.c.l.b16 %v1017
      %v1597 = vunpack.c.l.b16 %v1018
      %v1598 = vunpack.c.l.b16 %v1019
      %v1599 = vunpack.c.l.b16 %v1020
      %v1600 = vunpack.c.l.b16 %v1021
      %v1601 = vunpack.c.l.b16 %v1022
      %v1602 = vunpack.c.l.b16 %v1023
      %v1603 = vunpack.c.l.b16 %v1024
      %v1604 = vunpack.c.l.b16 %v1025
      %v1605 = vunpack.c.l.b16 %v1026
      %v1606 = vpack.c.b16 %v1559, %v1558
      %v1607 = vpack.c.b16 %v1561, %v1560
      %v1608 = vpack.c.b16 %v1563, %v1562
      %v1609 = vpack.c.b16 %v1565, %v1564
      %v1610 = vpack.c.b16 %v1567, %v1566
      %v1611 = vpack.c.b16 %v1569, %v1568
      %v1612 = vpack.c.b16 %v1571, %v1570
      %v1613 = vpack.c.b16 %v1573, %v1572
      %v1614 = vpack.c.b16 %v1575, %v1574
      %v1615 = vpack.c.b16 %v1577, %v1576
      %v1616 = vpack.c.b16 %v1579, %v1578
      %v1617 = vpack.c.b16 %v1581, %v1580
      %v1618 = vpack.c.b16 %v1583, %v1582
      %v1619 = vpack.c.b16 %v1585, %v1584
      %v1620 = vpack.c.b16 %v1587, %v1586
      %v1621 = vpack.c.b16 %v1589, %v1588
      %v1622 = vpack.c.b16 %v1591, %v1590
      %v1623 = vpack.c.b16 %v1593, %v1592
      %v1624 = vpack.c.b16 %v1595, %v1594
      %v1625 = vpack.c.b16 %v1597, %v1596
      %v1626 = vpack.c.b16 %v1599, %v1598
      %v1627 = vpack.c.b16 %v1601, %v1600
      %v1628 = vpack.c.b16 %v1603, %v1602
      %v1629 = vpack.c.b16 %v1605, %v1604
      %1654 = vmatprep.subr.bf16.mxu0 0
      %1655 = vmatpush1.bf16.msra.mxu0 %v1606
      %1656 = vmatprep.subr.bf16.mxu0 0
      %1657 = vmatpush1.bf16.msra.mxu0 %v1607
      %1658 = vmatprep.subr.bf16.mxu0 0
      %1659 = vmatpush1.bf16.msra.mxu0 %v1608
      %1660 = vmatprep.subr.bf16.mxu0 0
      %1661 = vmatpush1.bf16.msra.mxu0 %v1609
      %1662 = vmatprep.subr.bf16.mxu0 0
      %1663 = vmatpush1.bf16.msra.mxu0 %v1610
      %1664 = vmatprep.subr.bf16.mxu0 0
      %1665 = vmatpush1.bf16.msra.mxu0 %v1611
      %1666 = vmatprep.subr.bf16.mxu0 0
      %1667 = vmatpush1.bf16.msra.mxu0 %v1612
      %1668 = vmatprep.subr.bf16.mxu0 0
      %1669 = vmatpush1.bf16.msra.mxu0 %v1613
      %1670 = vmatprep.subr.bf16.mxu0 0
      %1671 = vmatpush1.bf16.msra.mxu0 %v1614
      %1672 = vmatprep.subr.bf16.mxu0 0
      %1673 = vmatpush1.bf16.msra.mxu0 %v1615
      %1674 = vmatprep.subr.bf16.mxu0 0
      %1675 = vmatpush1.bf16.msra.mxu0 %v1616
      %1676 = vmatprep.subr.bf16.mxu0 0
      %1677 = vmatpush1.bf16.msra.mxu0 %v1617
      %1678 = vmatprep.subr.bf16.mxu0 0
      %1679 = vmatpush1.bf16.msra.mxu0 %v1618
      %1680 = vmatprep.subr.bf16.mxu0 0
      %1681 = vmatpush1.bf16.msra.mxu0 %v1619
      %1682 = vmatprep.subr.bf16.mxu0 0
      %1683 = vmatpush1.bf16.msra.mxu0 %v1620
      %1684 = vmatprep.subr.bf16.mxu0 0
      %1685 = vmatpush1.bf16.msra.mxu0 %v1621
      %1686 = vmatprep.mubr.bf16.mxu0 %v939
      %1687 = vmatmul.mubr.bf16.gmra.mrb[0].mxu0 %v919
      %v1688 = vpop.f32.mrb[0].mxu0
      %v1689 = vpop.f32.mrb[0].mxu0
      %v1690 = vpop.f32.mrb[0].mxu0
      %v1691 = vadd.f32 %v1402, %v1690
      %v1692 = vpop.f32.mrb[0].mxu0
      %1693 = vmatprep.mubr.bf16.mxu0 %v940
      %1694 = vmatmul.mubr.bf16.gmra.mrb[0].mxu0 %v920
      %v1695 = vpop.f32.mrb[0].mxu0
      %v1696 = vadd.f32 %v1407, %v1695
      %v1697 = vpop.f32.mrb[0].mxu0
      %v1698 = vpop.f32.mrb[0].mxu0
      %v1699 = vpop.f32.mrb[0].mxu0
      %1700 = vmatprep.mubr.bf16.mxu0 %v941
      %1701 = vmatmul.mubr.bf16.gmra.mrb[0].mxu0 %v921
      %v1702 = vpop.f32.mrb[0].mxu0
      %v1703 = vpop.f32.mrb[0].mxu0
      %v1704 = vpop.f32.mrb[0].mxu0
      %v1705 = vadd.f32 %v1416, %v1704
      %v1706 = vpop.f32.mrb[0].mxu0
      %1707 = vmatprep.mubr.bf16.mxu0 %v942
      %1708 = vmatmul.mubr.bf16.gmra.mrb[0].mxu0 %v922
      %v1709 = vpop.f32.mrb[0].mxu0
      %v1710 = vadd.f32 %v1421, %v1709
      %v1711 = vpop.f32.mrb[0].mxu0
      %v1712 = vpop.f32.mrb[0].mxu0
      %v1713 = vpop.f32.mrb[0].mxu0
      %1714 = vmatprep.mubr.bf16.mxu0 %v943
      %1715 = vmatmul.mubr.bf16.gmra.mrb[0].mxu0 %v923
      %v1716 = vpop.f32.mrb[0].mxu0
      %v1717 = vpop.f32.mrb[0].mxu0
      %v1718 = vpop.f32.mrb[0].mxu0
      %v1719 = vadd.f32 %v1430, %v1718
      %v1720 = vpop.f32.mrb[0].mxu0
      %1721 = vmatprep.mubr.bf16.mxu0 %v944
      %1722 = vmatmul.mubr.bf16.gmra.mrb[0].mxu0 %v924
      %v1723 = vpop.f32.mrb[0].mxu0
      %v1724 = vadd.f32 %v1435, %v1723
      %v1725 = vpop.f32.mrb[0].mxu0
      %v1726 = vpop.f32.mrb[0].mxu0
      %v1727 = vpop.f32.mrb[0].mxu0
      %1728 = vmatprep.mubr.bf16.mxu0 %v945
      %1729 = vmatmul.mubr.bf16.gmra.mrb[0].mxu0 %v925
      %v1730 = vpop.f32.mrb[0].mxu0
      %v1731 = vpop.f32.mrb[0].mxu0
      %v1732 = vpop.f32.mrb[0].mxu0
      %v1733 = vadd.f32 %v1444, %v1732
      %v1734 = vpop.f32.mrb[0].mxu0
      %1735 = vmatprep.mubr.bf16.mxu0 %v946
      %1736 = vmatmul.mubr.bf16.gmra.mrb[0].mxu0 %v926
      %v1737 = vpop.f32.mrb[0].mxu0
      %v1738 = vadd.f32 %v1449, %v1737
      %v1739 = vpop.f32.mrb[0].mxu0
      %v1740 = vpop.f32.mrb[0].mxu0
      %v1741 = vpop.f32.mrb[0].mxu0
      %1742 = vmatprep.mubr.bf16.mxu0 %v947
      %1743 = vmatmul.mubr.bf16.gmra.mrb[0].mxu0 %v927
      %v1744 = vpop.f32.mrb[0].mxu0
      %v1745 = vpop.f32.mrb[0].mxu0
      %v1746 = vpop.f32.mrb[0].mxu0
      %v1747 = vadd.f32 %v1458, %v1746
      %v1748 = vpop.f32.mrb[0].mxu0
      %1749 = vmatprep.mubr.bf16.mxu0 %v948
      %1750 = vmatmul.mubr.bf16.gmra.mrb[0].mxu0 %v928
      %v1751 = vpop.f32.mrb[0].mxu0
      %v1752 = vadd.f32 %v1463, %v1751
      %v1753 = vpop.f32.mrb[0].mxu0
      %v1754 = vpop.f32.mrb[0].mxu0
      %v1755 = vpop.f32.mrb[0].mxu0
      %1756 = vmatprep.mubr.bf16.mxu0 %v949
      %1757 = vmatmul.mubr.bf16.gmra.mrb[0].mxu0 %v929
      %v1758 = vpop.f32.mrb[0].mxu0
      %v1759 = vpop.f32.mrb[0].mxu0
      %v1760 = vpop.f32.mrb[0].mxu0
      %v1761 = vadd.f32 %v1472, %v1760
      %v1762 = vpop.f32.mrb[0].mxu0
      %1763 = vmatprep.mubr.bf16.mxu0 %v950
      %1764 = vmatmul.mubr.bf16.gmra.mrb[0].mxu0 %v930
      %v1765 = vpop.f32.mrb[0].mxu0
      %v1766 = vadd.f32 %v1477, %v1765
      %v1767 = vpop.f32.mrb[0].mxu0
      %v1768 = vpop.f32.mrb[0].mxu0
      %v1769 = vpop.f32.mrb[0].mxu0
      %1770 = vmatprep.mubr.bf16.mxu0 %v951
      %1771 = vmatmul.mubr.bf16.gmra.mrb[0].mxu0 %v931
      %v1772 = vpop.f32.mrb[0].mxu0
      %v1773 = vpop.f32.mrb[0].mxu0
      %v1774 = vpop.f32.mrb[0].mxu0
      %v1775 = vadd.f32 %v1486, %v1774
      %v1776 = vpop.f32.mrb[0].mxu0
      %1777 = vmatprep.mubr.bf16.mxu0 %v952
      %1778 = vmatmul.mubr.bf16.gmra.mrb[0].mxu0 %v932
      %v1779 = vpop.f32.mrb[0].mxu0
      %v1780 = vadd.f32 %v1491, %v1779
      %v1781 = vpop.f32.mrb[0].mxu0
      %v1782 = vpop.f32.mrb[0].mxu0
      %v1783 = vpop.f32.mrb[0].mxu0
      %1784 = vmatprep.mubr.bf16.mxu0 %v953
      %1785 = vmatmul.mubr.bf16.gmra.mrb[0].mxu0 %v933
      %v1786 = vpop.f32.mrb[0].mxu0
      %v1787 = vpop.f32.mrb[0].mxu0
      %v1788 = vpop.f32.mrb[0].mxu0
      %v1789 = vadd.f32 %v1500, %v1788
      %v1790 = vpop.f32.mrb[0].mxu0
      %1791 = vmatprep.mubr.bf16.mxu0 %v954
      %1792 = vmatmul.mubr.bf16.gmra.mrb[0].mxu0 %v934
      %v1793 = vpop.f32.mrb[0].mxu0
      %v1794 = vadd.f32 %v1505, %v1793
      %v1795 = vpop.f32.mrb[0].mxu0
      %v1796 = vpop.f32.mrb[0].mxu0
      %v1797 = vpop.f32.mrb[0].mxu0
      %1798 = vdwg.mxu0
      %1799 = vmatprep.subr.bf16.mxu0 0
      %1800 = vmatpush1.bf16.msra.mxu0 %v1622
      %1801 = vmatprep.subr.bf16.mxu0 0
      %1802 = vmatpush1.bf16.msra.mxu0 %v1623
      %1803 = vmatprep.subr.bf16.mxu0 0
      %1804 = vmatpush1.bf16.msra.mxu0 %v1624
      %1805 = vmatprep.subr.bf16.mxu0 0
      %1806 = vmatpush1.bf16.msra.mxu0 %v1625
      %1807 = vmatprep.subr.bf16.mxu0 0
      %1808 = vmatpush1.bf16.msra.mxu0 %v1626
      %1809 = vmatprep.subr.bf16.mxu0 0
      %1810 = vmatpush1.bf16.msra.mxu0 %v1627
      %1811 = vmatprep.subr.bf16.mxu0 0
      %1812 = vmatpush1.bf16.msra.mxu0 %v1628
      %1813 = vmatprep.subr.bf16.mxu0 0
      %1814 = vmatpush1.bf16.msra.mxu0 %v1629
      %1815 = vmatprep.subr.bf16.mxu0 0
      %1816 = vmatpush1.bf16.msra.mxu0 0
      %1817 = vmatprep.subr.bf16.mxu0 0
      %1818 = vmatpush1.bf16.msra.mxu0 0
      %1819 = vmatprep.subr.bf16.mxu0 0
      %1820 = vmatpush1.bf16.msra.mxu0 0
      %1821 = vmatprep.subr.bf16.mxu0 0
      %1822 = vmatpush1.bf16.msra.mxu0 0
      %1823 = vmatprep.subr.bf16.mxu0 0
      %1824 = vmatpush1.bf16.msra.mxu0 0
      %1825 = vmatprep.subr.bf16.mxu0 0
      %1826 = vmatpush1.bf16.msra.mxu0 0
      %1827 = vmatprep.subr.bf16.mxu0 0
      %1828 = vmatpush1.bf16.msra.mxu0 0
      %1829 = vmatprep.subr.bf16.mxu0 0
      %1830 = vmatpush1.bf16.msra.mxu0 0
      %1831 = vmatprep.mubr.bf16.mxu0 0
      %1832 = vmatmul.mubr.bf16.gmra.mrb[0].mxu0 %v959
      %v1833 = vpop.f32.mrb[0].mxu0
      %v1834 = vpop.f32.mrb[0].mxu0
      %v1835 = vpop.f32.mrb[0].mxu0
      %v1836 = vadd.f32 %v1691, %v1835
      %v1837 = vpop.f32.mrb[0].mxu0
      %1838 = vmatprep.mubr.bf16.mxu0 0
      %1839 = vmatmul.mubr.bf16.gmra.mrb[0].mxu0 %v960
      %v1840 = vpop.f32.mrb[0].mxu0
      %v1841 = vadd.f32 %v1696, %v1840
      %v1842 = vpop.f32.mrb[0].mxu0
      %v1843 = vpop.f32.mrb[0].mxu0
      %v1844 = vpop.f32.mrb[0].mxu0
      %1845 = vmatprep.mubr.bf16.mxu0 0
      %1846 = vmatmul.mubr.bf16.gmra.mrb[0].mxu0 %v961
      %v1847 = vpop.f32.mrb[0].mxu0
      %v1848 = vpop.f32.mrb[0].mxu0
      %v1849 = vpop.f32.mrb[0].mxu0
      %v1850 = vadd.f32 %v1705, %v1849
      %v1851 = vpop.f32.mrb[0].mxu0
      %1852 = vmatprep.mubr.bf16.mxu0 0
      %1853 = vmatmul.mubr.bf16.gmra.mrb[0].mxu0 %v962
      %v1854 = vpop.f32.mrb[0].mxu0
      %v1855 = vadd.f32 %v1710, %v1854
      %v1856 = vpop.f32.mrb[0].mxu0
      %v1857 = vpop.f32.mrb[0].mxu0
      %v1858 = vpop.f32.mrb[0].mxu0
      %1859 = vmatprep.mubr.bf16.mxu0 0
      %1860 = vmatmul.mubr.bf16.gmra.mrb[0].mxu0 %v963
      %v1861 = vpop.f32.mrb[0].mxu0
      %v1862 = vpop.f32.mrb[0].mxu0
      %v1863 = vpop.f32.mrb[0].mxu0
      %v1864 = vadd.f32 %v1719, %v1863
      %v1865 = vpop.f32.mrb[0].mxu0
      %1866 = vmatprep.mubr.bf16.mxu0 0
      %1867 = vmatmul.mubr.bf16.gmra.mrb[0].mxu0 %v964
      %v1868 = vpop.f32.mrb[0].mxu0
      %v1869 = vadd.f32 %v1724, %v1868
      %v1870 = vpop.f32.mrb[0].mxu0
      %v1871 = vpop.f32.mrb[0].mxu0
      %v1872 = vpop.f32.mrb[0].mxu0
      %1873 = vmatprep.mubr.bf16.mxu0 0
      %1874 = vmatmul.mubr.bf16.gmra.mrb[0].mxu0 %v965
      %v1875 = vpop.f32.mrb[0].mxu0
      %v1876 = vpop.f32.mrb[0].mxu0
      %v1877 = vpop.f32.mrb[0].mxu0
      %v1878 = vadd.f32 %v1733, %v1877
      %v1879 = vpop.f32.mrb[0].mxu0
      %1880 = vmatprep.mubr.bf16.mxu0 0
      %1881 = vmatmul.mubr.bf16.gmra.mrb[0].mxu0 %v966
      %v1882 = vpop.f32.mrb[0].mxu0
      %v1883 = vadd.f32 %v1738, %v1882
      %v1884 = vpop.f32.mrb[0].mxu0
      %v1885 = vpop.f32.mrb[0].mxu0
      %v1886 = vpop.f32.mrb[0].mxu0
      %1887 = vmatprep.mubr.bf16.mxu0 0
      %1888 = vmatmul.mubr.bf16.gmra.mrb[0].mxu0 %v967
      %v1889 = vpop.f32.mrb[0].mxu0
      %v1890 = vpop.f32.mrb[0].mxu0
      %v1891 = vpop.f32.mrb[0].mxu0
      %v1892 = vadd.f32 %v1747, %v1891
      %v1893 = vpop.f32.mrb[0].mxu0
      %1894 = vmatprep.mubr.bf16.mxu0 0
      %1895 = vmatmul.mubr.bf16.gmra.mrb[0].mxu0 %v968
      %v1896 = vpop.f32.mrb[0].mxu0
      %v1897 = vadd.f32 %v1752, %v1896
      %v1898 = vpop.f32.mrb[0].mxu0
      %v1899 = vpop.f32.mrb[0].mxu0
      %v1900 = vpop.f32.mrb[0].mxu0
      %1901 = vmatprep.mubr.bf16.mxu0 0
      %1902 = vmatmul.mubr.bf16.gmra.mrb[0].mxu0 %v969
      %v1903 = vpop.f32.mrb[0].mxu0
      %v1904 = vpop.f32.mrb[0].mxu0
      %v1905 = vpop.f32.mrb[0].mxu0
      %v1906 = vadd.f32 %v1761, %v1905
      %v1907 = vpop.f32.mrb[0].mxu0
      %1908 = vmatprep.mubr.bf16.mxu0 0
      %1909 = vmatmul.mubr.bf16.gmra.mrb[0].mxu0 %v970
      %v1910 = vpop.f32.mrb[0].mxu0
      %v1911 = vadd.f32 %v1766, %v1910
      %v1912 = vpop.f32.mrb[0].mxu0
      %v1913 = vpop.f32.mrb[0].mxu0
      %v1914 = vpop.f32.mrb[0].mxu0
      %1915 = vmatprep.mubr.bf16.mxu0 0
      %1916 = vmatmul.mubr.bf16.gmra.mrb[0].mxu0 %v971
      %v1917 = vpop.f32.mrb[0].mxu0
      %v1918 = vpop.f32.mrb[0].mxu0
      %v1919 = vpop.f32.mrb[0].mxu0
      %v1920 = vadd.f32 %v1775, %v1919
      %v1921 = vpop.f32.mrb[0].mxu0
      %1922 = vmatprep.mubr.bf16.mxu0 0
      %1923 = vmatmul.mubr.bf16.gmra.mrb[0].mxu0 %v972
      %v1924 = vpop.f32.mrb[0].mxu0
      %v1925 = vadd.f32 %v1780, %v1924
      %v1926 = vpop.f32.mrb[0].mxu0
      %v1927 = vpop.f32.mrb[0].mxu0
      %v1928 = vpop.f32.mrb[0].mxu0
      %1929 = vmatprep.mubr.bf16.mxu0 0
      %1930 = vmatmul.mubr.bf16.gmra.mrb[0].mxu0 %v973
      %v1931 = vpop.f32.mrb[0].mxu0
      %v1932 = vpop.f32.mrb[0].mxu0
      %v1933 = vpop.f32.mrb[0].mxu0
      %v1934 = vadd.f32 %v1789, %v1933
      %v1935 = vpop.f32.mrb[0].mxu0
      %1936 = vmatprep.mubr.bf16.mxu0 0
      %1937 = vmatmul.mubr.bf16.gmra.mrb[0].mxu0 %v974
      %v1938 = vpop.f32.mrb[0].mxu0
      %v1939 = vadd.f32 %v1794, %v1938
      %v1940 = vpop.f32.mrb[0].mxu0
      %v1941 = vpop.f32.mrb[0].mxu0
      %v1942 = vpop.f32.mrb[0].mxu0
      %1943 = vdwg.mxu0
      %s1944 = scalar_lea.vmem %s1, 384
      %v1945 = vld [vmem:[%s1944] sm:$0xf]
      %v1946 = vld [vmem:[%s1944 + $0x4] sm:$0xf]
      %v1947 = vld [vmem:[%s1944 + $0x8] sm:$0xf]
      %v1948 = vld [vmem:[%s1944 + $0xc] sm:$0xf]
      %v1949 = vld [vmem:[%s1944 + $0x10] sm:$0xf]
      %v1950 = vld [vmem:[%s1944 + $0x14] sm:$0xf]
      %v1951 = vld [vmem:[%s1944 + $0x18] sm:$0xf]
      %v1952 = vld [vmem:[%s1944 + $0x1c] sm:$0xf]
      %v1953 = vld [vmem:[%s1944 + $0x20] sm:$0xf]
      %v1954 = vld [vmem:[%s1944 + $0x24] sm:$0xf]
      %v1955 = vld [vmem:[%s1944 + $0x28] sm:$0xf]
      %v1956 = vld [vmem:[%s1944 + $0x2c] sm:$0xf]
      %v1957 = vld [vmem:[%s1944 + $0x30] sm:$0xf]
      %v1958 = vld [vmem:[%s1944 + $0x34] sm:$0xf]
      %v1959 = vld [vmem:[%s1944 + $0x38] sm:$0xf]
      %v1960 = vld [vmem:[%s1944 + $0x3c] sm:$0xf]
      %v1961 = vld [vmem:[%s1944 + $0x40] sm:$0xf]
      %v1962 = vld [vmem:[%s1944 + $0x44] sm:$0xf]
      %v1963 = vld [vmem:[%s1944 + $0x48] sm:$0xf]
      %v1964 = vld [vmem:[%s1944 + $0x4c] sm:$0xf]
      %v1965 = vld [vmem:[%s1944 + $0x50] sm:$0xf]
      %v1966 = vld [vmem:[%s1944 + $0x54] sm:$0xf]
      %v1967 = vld [vmem:[%s1944 + $0x58] sm:$0xf]
      %v1968 = vld [vmem:[%s1944 + $0x5c] sm:$0xf]
      %v1969 = vld [vmem:[%s1944 + $0x60] sm:$0xf]
      %v1970 = vld [vmem:[%s1944 + $0x64] sm:$0xf]
      %v1971 = vld [vmem:[%s1944 + $0x68] sm:$0xf]
      %v1972 = vld [vmem:[%s1944 + $0x6c] sm:$0xf]
      %v1973 = vld [vmem:[%s1944 + $0x70] sm:$0xf]
      %v1974 = vld [vmem:[%s1944 + $0x74] sm:$0xf]
      %v1975 = vld [vmem:[%s1944 + $0x78] sm:$0xf]
      %v1976 = vld [vmem:[%s1944 + $0x7c] sm:$0xf]
      %v1977 = vld [vmem:[%s1944 + $0x80] sm:$0xf]
      %v1978 = vld [vmem:[%s1944 + $0x84] sm:$0xf]
      %v1979 = vld [vmem:[%s1944 + $0x88] sm:$0xf]
      %v1980 = vld [vmem:[%s1944 + $0x8c] sm:$0xf]
      %v1981 = vld [vmem:[%s1944 + $0x90] sm:$0xf]
      %v1982 = vld [vmem:[%s1944 + $0x94] sm:$0xf]
      %v1983 = vld [vmem:[%s1944 + $0x98] sm:$0xf]
      %v1984 = vld [vmem:[%s1944 + $0x9c] sm:$0xf]
      %v1985 = vld [vmem:[%s1944 + $0xa0] sm:$0xf]
      %v1986 = vld [vmem:[%s1944 + $0xa4] sm:$0xf]
      %v1987 = vld [vmem:[%s1944 + $0xa8] sm:$0xf]
      %v1988 = vld [vmem:[%s1944 + $0xac] sm:$0xf]
      %v1989 = vld [vmem:[%s1944 + $0xb0] sm:$0xf]
      %v1990 = vld [vmem:[%s1944 + $0xb4] sm:$0xf]
      %v1991 = vld [vmem:[%s1944 + $0xb8] sm:$0xf]
      %v1992 = vld [vmem:[%s1944 + $0xbc] sm:$0xf]
      %v2041 = vunpack.c.l.b16 %v1945
      %v2042 = vunpack.c.l.b16 %v1946
      %v2043 = vunpack.c.l.b16 %v1947
      %v2044 = vunpack.c.l.b16 %v1948
      %v2045 = vunpack.c.l.b16 %v1949
      %v2046 = vunpack.c.l.b16 %v1950
      %v2047 = vunpack.c.l.b16 %v1951
      %v2048 = vunpack.c.l.b16 %v1952
      %v2049 = vunpack.c.l.b16 %v1953
      %v2050 = vunpack.c.l.b16 %v1954
      %v2051 = vunpack.c.l.b16 %v1955
      %v2052 = vunpack.c.l.b16 %v1956
      %v2053 = vunpack.c.l.b16 %v1957
      %v2054 = vunpack.c.l.b16 %v1958
      %v2055 = vunpack.c.l.b16 %v1959
      %v2056 = vunpack.c.l.b16 %v1960
      %v2057 = vunpack.c.l.b16 %v1961
      %v2058 = vunpack.c.l.b16 %v1962
      %v2059 = vunpack.c.l.b16 %v1963
      %v2060 = vunpack.c.l.b16 %v1964
      %v2061 = vunpack.c.l.b16 %v1965
      %v2062 = vunpack.c.l.b16 %v1966
      %v2063 = vunpack.c.l.b16 %v1967
      %v2064 = vunpack.c.l.b16 %v1968
      %v2065 = vunpack.c.l.b16 %v1969
      %v2066 = vunpack.c.l.b16 %v1970
      %v2067 = vunpack.c.l.b16 %v1971
      %v2068 = vunpack.c.l.b16 %v1972
      %v2069 = vunpack.c.l.b16 %v1973
      %v2070 = vunpack.c.l.b16 %v1974
      %v2071 = vunpack.c.l.b16 %v1975
      %v2072 = vunpack.c.l.b16 %v1976
      %v2073 = vunpack.c.l.b16 %v1977
      %v2074 = vunpack.c.l.b16 %v1978
      %v2075 = vunpack.c.l.b16 %v1979
      %v2076 = vunpack.c.l.b16 %v1980
      %v2077 = vunpack.c.l.b16 %v1981
      %v2078 = vunpack.c.l.b16 %v1982
      %v2079 = vunpack.c.l.b16 %v1983
      %v2080 = vunpack.c.l.b16 %v1984
      %v2081 = vunpack.c.l.b16 %v1985
      %v2082 = vunpack.c.l.b16 %v1986
      %v2083 = vunpack.c.l.b16 %v1987
      %v2084 = vunpack.c.l.b16 %v1988
      %v2085 = vunpack.c.l.b16 %v1989
      %v2086 = vunpack.c.l.b16 %v1990
      %v2087 = vunpack.c.l.b16 %v1991
      %v2088 = vunpack.c.l.b16 %v1992
      %v2089 = vpack.c.b16 %v2042, %v2041
      %v2090 = vpack.c.b16 %v2044, %v2043
      %v2091 = vpack.c.b16 %v2046, %v2045
      %v2092 = vpack.c.b16 %v2048, %v2047
      %v2093 = vpack.c.b16 %v2050, %v2049
      %v2094 = vpack.c.b16 %v2052, %v2051
      %v2095 = vpack.c.b16 %v2054, %v2053
      %v2096 = vpack.c.b16 %v2056, %v2055
      %v2097 = vpack.c.b16 %v2058, %v2057
      %v2098 = vpack.c.b16 %v2060, %v2059
      %v2099 = vpack.c.b16 %v2062, %v2061
      %v2100 = vpack.c.b16 %v2064, %v2063
      %v2101 = vpack.c.b16 %v2066, %v2065
      %v2102 = vpack.c.b16 %v2068, %v2067
      %v2103 = vpack.c.b16 %v2070, %v2069
      %v2104 = vpack.c.b16 %v2072, %v2071
      %v2105 = vpack.c.b16 %v2074, %v2073
      %v2106 = vpack.c.b16 %v2076, %v2075
      %v2107 = vpack.c.b16 %v2078, %v2077
      %v2108 = vpack.c.b16 %v2080, %v2079
      %v2109 = vpack.c.b16 %v2082, %v2081
      %v2110 = vpack.c.b16 %v2084, %v2083
      %v2111 = vpack.c.b16 %v2086, %v2085
      %v2112 = vpack.c.b16 %v2088, %v2087
      %2137 = vmatprep.subr.bf16.mxu0 0
      %2138 = vmatpush1.bf16.msra.mxu0 %v2089
      %2139 = vmatprep.subr.bf16.mxu0 0
      %2140 = vmatpush1.bf16.msra.mxu0 %v2090
      %2141 = vmatprep.subr.bf16.mxu0 0
      %2142 = vmatpush1.bf16.msra.mxu0 %v2091
      %2143 = vmatprep.subr.bf16.mxu0 0
      %2144 = vmatpush1.bf16.msra.mxu0 %v2092
      %2145 = vmatprep.subr.bf16.mxu0 0
      %2146 = vmatpush1.bf16.msra.mxu0 %v2093
      %2147 = vmatprep.subr.bf16.mxu0 0
      %2148 = vmatpush1.bf16.msra.mxu0 %v2094
      %2149 = vmatprep.subr.bf16.mxu0 0
      %2150 = vmatpush1.bf16.msra.mxu0 %v2095
      %2151 = vmatprep.subr.bf16.mxu0 0
      %2152 = vmatpush1.bf16.msra.mxu0 %v2096
      %2153 = vmatprep.subr.bf16.mxu0 0
      %2154 = vmatpush1.bf16.msra.mxu0 %v2097
      %2155 = vmatprep.subr.bf16.mxu0 0
      %2156 = vmatpush1.bf16.msra.mxu0 %v2098
      %2157 = vmatprep.subr.bf16.mxu0 0
      %2158 = vmatpush1.bf16.msra.mxu0 %v2099
      %2159 = vmatprep.subr.bf16.mxu0 0
      %2160 = vmatpush1.bf16.msra.mxu0 %v2100
      %2161 = vmatprep.subr.bf16.mxu0 0
      %2162 = vmatpush1.bf16.msra.mxu0 %v2101
      %2163 = vmatprep.subr.bf16.mxu0 0
      %2164 = vmatpush1.bf16.msra.mxu0 %v2102
      %2165 = vmatprep.subr.bf16.mxu0 0
      %2166 = vmatpush1.bf16.msra.mxu0 %v2103
      %2167 = vmatprep.subr.bf16.mxu0 0
      %2168 = vmatpush1.bf16.msra.mxu0 %v2104
      %2169 = vmatprep.mubr.bf16.mxu0 %v943
      %2170 = vmatmul.mubr.bf16.gmra.mrb[0].mxu0 %v923
      %v2171 = vpop.f32.mrb[0].mxu0
      %v2172 = vpop.f32.mrb[0].mxu0
      %v2173 = vpop.f32.mrb[0].mxu0
      %v2174 = vadd.f32 0.0, %v2173
      %v2175 = vpop.f32.mrb[0].mxu0
      %2176 = vmatprep.mubr.bf16.mxu0 %v944
      %2177 = vmatmul.mubr.bf16.gmra.mrb[0].mxu0 %v924
      %v2178 = vpop.f32.mrb[0].mxu0
      %v2179 = vadd.f32 0.0, %v2178
      %v2180 = vpop.f32.mrb[0].mxu0
      %v2181 = vpop.f32.mrb[0].mxu0
      %v2182 = vpop.f32.mrb[0].mxu0
      %2183 = vmatprep.mubr.bf16.mxu0 %v945
      %2184 = vmatmul.mubr.bf16.gmra.mrb[0].mxu0 %v925
      %v2185 = vpop.f32.mrb[0].mxu0
      %v2186 = vpop.f32.mrb[0].mxu0
      %v2187 = vpop.f32.mrb[0].mxu0
      %v2188 = vadd.f32 0.0, %v2187
      %v2189 = vpop.f32.mrb[0].mxu0
      %2190 = vmatprep.mubr.bf16.mxu0 %v946
      %2191 = vmatmul.mubr.bf16.gmra.mrb[0].mxu0 %v926
      %v2192 = vpop.f32.mrb[0].mxu0
      %v2193 = vadd.f32 0.0, %v2192
      %v2194 = vpop.f32.mrb[0].mxu0
      %v2195 = vpop.f32.mrb[0].mxu0
      %v2196 = vpop.f32.mrb[0].mxu0
      %2197 = vmatprep.mubr.bf16.mxu0 %v947
      %2198 = vmatmul.mubr.bf16.gmra.mrb[0].mxu0 %v927
      %v2199 = vpop.f32.mrb[0].mxu0
      %v2200 = vpop.f32.mrb[0].mxu0
      %v2201 = vpop.f32.mrb[0].mxu0
      %v2202 = vadd.f32 0.0, %v2201
      %v2203 = vpop.f32.mrb[0].mxu0
      %2204 = vmatprep.mubr.bf16.mxu0 %v948
      %2205 = vmatmul.mubr.bf16.gmra.mrb[0].mxu0 %v928
      %v2206 = vpop.f32.mrb[0].mxu0
      %v2207 = vadd.f32 0.0, %v2206
      %v2208 = vpop.f32.mrb[0].mxu0
      %v2209 = vpop.f32.mrb[0].mxu0
      %v2210 = vpop.f32.mrb[0].mxu0
      %2211 = vmatprep.mubr.bf16.mxu0 %v949
      %2212 = vmatmul.mubr.bf16.gmra.mrb[0].mxu0 %v929
      %v2213 = vpop.f32.mrb[0].mxu0
      %v2214 = vpop.f32.mrb[0].mxu0
      %v2215 = vpop.f32.mrb[0].mxu0
      %v2216 = vadd.f32 0.0, %v2215
      %v2217 = vpop.f32.mrb[0].mxu0
      %2218 = vmatprep.mubr.bf16.mxu0 %v950
      %2219 = vmatmul.mubr.bf16.gmra.mrb[0].mxu0 %v930
      %v2220 = vpop.f32.mrb[0].mxu0
      %v2221 = vadd.f32 0.0, %v2220
      %v2222 = vpop.f32.mrb[0].mxu0
      %v2223 = vpop.f32.mrb[0].mxu0
      %v2224 = vpop.f32.mrb[0].mxu0
      %2225 = vmatprep.mubr.bf16.mxu0 %v951
      %2226 = vmatmul.mubr.bf16.gmra.mrb[0].mxu0 %v931
      %v2227 = vpop.f32.mrb[0].mxu0
      %v2228 = vpop.f32.mrb[0].mxu0
      %v2229 = vpop.f32.mrb[0].mxu0
      %v2230 = vadd.f32 0.0, %v2229
      %v2231 = vpop.f32.mrb[0].mxu0
      %2232 = vmatprep.mubr.bf16.mxu0 %v952
      %2233 = vmatmul.mubr.bf16.gmra.mrb[0].mxu0 %v932
      %v2234 = vpop.f32.mrb[0].mxu0
      %v2235 = vadd.f32 0.0, %v2234
      %v2236 = vpop.f32.mrb[0].mxu0
      %v2237 = vpop.f32.mrb[0].mxu0
      %v2238 = vpop.f32.mrb[0].mxu0
      %2239 = vmatprep.mubr.bf16.mxu0 %v953
      %2240 = vmatmul.mubr.bf16.gmra.mrb[0].mxu0 %v933
      %v2241 = vpop.f32.mrb[0].mxu0
      %v2242 = vpop.f32.mrb[0].mxu0
      %v2243 = vpop.f32.mrb[0].mxu0
      %v2244 = vadd.f32 0.0, %v2243
      %v2245 = vpop.f32.mrb[0].mxu0
      %2246 = vmatprep.mubr.bf16.mxu0 %v954
      %2247 = vmatmul.mubr.bf16.gmra.mrb[0].mxu0 %v934
      %v2248 = vpop.f32.mrb[0].mxu0
      %v2249 = vadd.f32 0.0, %v2248
      %v2250 = vpop.f32.mrb[0].mxu0
      %v2251 = vpop.f32.mrb[0].mxu0
      %v2252 = vpop.f32.mrb[0].mxu0
      %2253 = vmatprep.mubr.bf16.mxu0 %v955
      %2254 = vmatmul.mubr.bf16.gmra.mrb[0].mxu0 %v935
      %v2255 = vpop.f32.mrb[0].mxu0
      %v2256 = vpop.f32.mrb[0].mxu0
      %v2257 = vpop.f32.mrb[0].mxu0
      %v2258 = vadd.f32 0.0, %v2257
      %v2259 = vpop.f32.mrb[0].mxu0
      %2260 = vmatprep.mubr.bf16.mxu0 %v956
      %2261 = vmatmul.mubr.bf16.gmra.mrb[0].mxu0 %v936
      %v2262 = vpop.f32.mrb[0].mxu0
      %v2263 = vadd.f32 0.0, %v2262
      %v2264 = vpop.f32.mrb[0].mxu0
      %v2265 = vpop.f32.mrb[0].mxu0
      %v2266 = vpop.f32.mrb[0].mxu0
      %2267 = vmatprep.mubr.bf16.mxu0 %v957
      %2268 = vmatmul.mubr.bf16.gmra.mrb[0].mxu0 %v937
      %v2269 = vpop.f32.mrb[0].mxu0
      %v2270 = vpop.f32.mrb[0].mxu0
      %v2271 = vpop.f32.mrb[0].mxu0
      %v2272 = vadd.f32 0.0, %v2271
      %v2273 = vpop.f32.mrb[0].mxu0
      %2274 = vmatprep.mubr.bf16.mxu0 %v958
      %2275 = vmatmul.mubr.bf16.gmra.mrb[0].mxu0 %v938
      %v2276 = vpop.f32.mrb[0].mxu0
      %v2277 = vadd.f32 0.0, %v2276
      %v2278 = vpop.f32.mrb[0].mxu0
      %v2279 = vpop.f32.mrb[0].mxu0
      %v2280 = vpop.f32.mrb[0].mxu0
      %2281 = vdwg.mxu0
      %2282 = vmatprep.subr.bf16.mxu0 0
      %2283 = vmatpush1.bf16.msra.mxu0 %v2105
      %2284 = vmatprep.subr.bf16.mxu0 0
      %2285 = vmatpush1.bf16.msra.mxu0 %v2106
      %2286 = vmatprep.subr.bf16.mxu0 0
      %2287 = vmatpush1.bf16.msra.mxu0 %v2107
      %2288 = vmatprep.subr.bf16.mxu0 0
      %2289 = vmatpush1.bf16.msra.mxu0 %v2108
      %2290 = vmatprep.subr.bf16.mxu0 0
      %2291 = vmatpush1.bf16.msra.mxu0 %v2109
      %2292 = vmatprep.subr.bf16.mxu0 0
      %2293 = vmatpush1.bf16.msra.mxu0 %v2110
      %2294 = vmatprep.subr.bf16.mxu0 0
      %2295 = vmatpush1.bf16.msra.mxu0 %v2111
      %2296 = vmatprep.subr.bf16.mxu0 0
      %2297 = vmatpush1.bf16.msra.mxu0 %v2112
      %2298 = vmatprep.subr.bf16.mxu0 0
      %2299 = vmatpush1.bf16.msra.mxu0 0
      %2300 = vmatprep.subr.bf16.mxu0 0
      %2301 = vmatpush1.bf16.msra.mxu0 0
      %2302 = vmatprep.subr.bf16.mxu0 0
      %2303 = vmatpush1.bf16.msra.mxu0 0
      %2304 = vmatprep.subr.bf16.mxu0 0
      %2305 = vmatpush1.bf16.msra.mxu0 0
      %2306 = vmatprep.subr.bf16.mxu0 0
      %2307 = vmatpush1.bf16.msra.mxu0 0
      %2308 = vmatprep.subr.bf16.mxu0 0
      %2309 = vmatpush1.bf16.msra.mxu0 0
      %2310 = vmatprep.subr.bf16.mxu0 0
      %2311 = vmatpush1.bf16.msra.mxu0 0
      %2312 = vmatprep.subr.bf16.mxu0 0
      %2313 = vmatpush1.bf16.msra.mxu0 0
      %2314 = vmatprep.mubr.bf16.mxu0 0
      %2315 = vmatmul.mubr.bf16.gmra.mrb[0].mxu0 %v963
      %v2316 = vpop.f32.mrb[0].mxu0
      %v2317 = vpop.f32.mrb[0].mxu0
      %v2318 = vpop.f32.mrb[0].mxu0
      %v2319 = vadd.f32 %v2174, %v2318
      %v2320 = vpop.f32.mrb[0].mxu0
      %2321 = vmatprep.mubr.bf16.mxu0 0
      %2322 = vmatmul.mubr.bf16.gmra.mrb[0].mxu0 %v964
      %v2323 = vpop.f32.mrb[0].mxu0
      %v2324 = vadd.f32 %v2179, %v2323
      %v2325 = vpop.f32.mrb[0].mxu0
      %v2326 = vpop.f32.mrb[0].mxu0
      %v2327 = vpop.f32.mrb[0].mxu0
      %2328 = vmatprep.mubr.bf16.mxu0 0
      %2329 = vmatmul.mubr.bf16.gmra.mrb[0].mxu0 %v965
      %v2330 = vpop.f32.mrb[0].mxu0
      %v2331 = vpop.f32.mrb[0].mxu0
      %v2332 = vpop.f32.mrb[0].mxu0
      %v2333 = vadd.f32 %v2188, %v2332
      %v2334 = vpop.f32.mrb[0].mxu0
      %2335 = vmatprep.mubr.bf16.mxu0 0
      %2336 = vmatmul.mubr.bf16.gmra.mrb[0].mxu0 %v966
      %v2337 = vpop.f32.mrb[0].mxu0
      %v2338 = vadd.f32 %v2193, %v2337
      %v2339 = vpop.f32.mrb[0].mxu0
      %v2340 = vpop.f32.mrb[0].mxu0
      %v2341 = vpop.f32.mrb[0].mxu0
      %2342 = vmatprep.mubr.bf16.mxu0 0
      %2343 = vmatmul.mubr.bf16.gmra.mrb[0].mxu0 %v967
      %v2344 = vpop.f32.mrb[0].mxu0
      %v2345 = vpop.f32.mrb[0].mxu0
      %v2346 = vpop.f32.mrb[0].mxu0
      %v2347 = vadd.f32 %v2202, %v2346
      %v2348 = vpop.f32.mrb[0].mxu0
      %2349 = vmatprep.mubr.bf16.mxu0 0
      %2350 = vmatmul.mubr.bf16.gmra.mrb[0].mxu0 %v968
      %v2351 = vpop.f32.mrb[0].mxu0
      %v2352 = vadd.f32 %v2207, %v2351
      %v2353 = vpop.f32.mrb[0].mxu0
      %v2354 = vpop.f32.mrb[0].mxu0
      %v2355 = vpop.f32.mrb[0].mxu0
      %2356 = vmatprep.mubr.bf16.mxu0 0
      %2357 = vmatmul.mubr.bf16.gmra.mrb[0].mxu0 %v969
      %v2358 = vpop.f32.mrb[0].mxu0
      %v2359 = vpop.f32.mrb[0].mxu0
      %v2360 = vpop.f32.mrb[0].mxu0
      %v2361 = vadd.f32 %v2216, %v2360
      %v2362 = vpop.f32.mrb[0].mxu0
      %2363 = vmatprep.mubr.bf16.mxu0 0
      %2364 = vmatmul.mubr.bf16.gmra.mrb[0].mxu0 %v970
      %v2365 = vpop.f32.mrb[0].mxu0
      %v2366 = vadd.f32 %v2221, %v2365
      %v2367 = vpop.f32.mrb[0].mxu0
      %v2368 = vpop.f32.mrb[0].mxu0
      %v2369 = vpop.f32.mrb[0].mxu0
      %2370 = vmatprep.mubr.bf16.mxu0 0
      %2371 = vmatmul.mubr.bf16.gmra.mrb[0].mxu0 %v971
      %v2372 = vpop.f32.mrb[0].mxu0
      %v2373 = vpop.f32.mrb[0].mxu0
      %v2374 = vpop.f32.mrb[0].mxu0
      %v2375 = vadd.f32 %v2230, %v2374
      %v2376 = vpop.f32.mrb[0].mxu0
      %2377 = vmatprep.mubr.bf16.mxu0 0
      %2378 = vmatmul.mubr.bf16.gmra.mrb[0].mxu0 %v972
      %v2379 = vpop.f32.mrb[0].mxu0
      %v2380 = vadd.f32 %v2235, %v2379
      %v2381 = vpop.f32.mrb[0].mxu0
      %v2382 = vpop.f32.mrb[0].mxu0
      %v2383 = vpop.f32.mrb[0].mxu0
      %2384 = vmatprep.mubr.bf16.mxu0 0
      %2385 = vmatmul.mubr.bf16.gmra.mrb[0].mxu0 %v973
      %v2386 = vpop.f32.mrb[0].mxu0
      %v2387 = vpop.f32.mrb[0].mxu0
      %v2388 = vpop.f32.mrb[0].mxu0
      %v2389 = vadd.f32 %v2244, %v2388
      %v2390 = vpop.f32.mrb[0].mxu0
      %2391 = vmatprep.mubr.bf16.mxu0 0
      %2392 = vmatmul.mubr.bf16.gmra.mrb[0].mxu0 %v974
      %v2393 = vpop.f32.mrb[0].mxu0
      %v2394 = vadd.f32 %v2249, %v2393
      %v2395 = vpop.f32.mrb[0].mxu0
      %v2396 = vpop.f32.mrb[0].mxu0
      %v2397 = vpop.f32.mrb[0].mxu0
      %2398 = vmatprep.mubr.bf16.mxu0 0
      %2399 = vmatmul.mubr.bf16.gmra.mrb[0].mxu0 %v975
      %v2400 = vpop.f32.mrb[0].mxu0
      %v2401 = vpop.f32.mrb[0].mxu0
      %v2402 = vpop.f32.mrb[0].mxu0
      %v2403 = vadd.f32 %v2258, %v2402
      %v2404 = vpop.f32.mrb[0].mxu0
      %2405 = vmatprep.mubr.bf16.mxu0 0
      %2406 = vmatmul.mubr.bf16.gmra.mrb[0].mxu0 %v976
      %v2407 = vpop.f32.mrb[0].mxu0
      %v2408 = vadd.f32 %v2263, %v2407
      %v2409 = vpop.f32.mrb[0].mxu0
      %v2410 = vpop.f32.mrb[0].mxu0
      %v2411 = vpop.f32.mrb[0].mxu0
      %2412 = vmatprep.mubr.bf16.mxu0 0
      %2413 = vmatmul.mubr.bf16.gmra.mrb[0].mxu0 %v977
      %v2414 = vpop.f32.mrb[0].mxu0
      %v2415 = vpop.f32.mrb[0].mxu0
      %v2416 = vpop.f32.mrb[0].mxu0
      %v2417 = vadd.f32 %v2272, %v2416
      %v2418 = vpop.f32.mrb[0].mxu0
      %2419 = vmatprep.mubr.bf16.mxu0 0
      %2420 = vmatmul.mubr.bf16.gmra.mrb[0].mxu0 %v978
      %v2421 = vpop.f32.mrb[0].mxu0
      %v2422 = vadd.f32 %v2277, %v2421
      %v2423 = vpop.f32.mrb[0].mxu0
      %v2424 = vpop.f32.mrb[0].mxu0
      %v2425 = vpop.f32.mrb[0].mxu0
      %2426 = vdwg.mxu0
      %v2427 = vadd.f32 %v1836, %v2319
      %v2428 = vadd.f32 %v1841, %v2324
      %v2429 = vadd.f32 %v1850, %v2333
      %v2430 = vadd.f32 %v1855, %v2338
      %v2431 = vadd.f32 %v1864, %v2347
      %v2432 = vadd.f32 %v1869, %v2352
      %v2433 = vadd.f32 %v1878, %v2361
      %v2434 = vadd.f32 %v1883, %v2366
      %v2435 = vadd.f32 %v1892, %v2375
      %v2436 = vadd.f32 %v1897, %v2380
      %v2437 = vadd.f32 %v1906, %v2389
      %v2438 = vadd.f32 %v1911, %v2394
      %v2439 = vadd.f32 %v1920, %v2403
      %v2440 = vadd.f32 %v1925, %v2408
      %v2441 = vadd.f32 %v1934, %v2417
      %v2442 = vadd.f32 %v1939, %v2422
      %2443 = vst [vmem:[%s275] sm:$0xff] %v2427
      %2444 = vst [vmem:[%s275 + $0x8] sm:$0xff] %v2428
      %2445 = vst [vmem:[%s275 + $0x10] sm:$0xff] %v2429
      %2446 = vst [vmem:[%s275 + $0x18] sm:$0xff] %v2430
      %2447 = vst [vmem:[%s275 + $0x20] sm:$0xff] %v2431
      %2448 = vst [vmem:[%s275 + $0x28] sm:$0xff] %v2432
      %2449 = vst [vmem:[%s275 + $0x30] sm:$0xff] %v2433
      %2450 = vst [vmem:[%s275 + $0x38] sm:$0xff] %v2434
      %2451 = vst [vmem:[%s275 + $0x40] sm:$0xff] %v2435
      %2452 = vst [vmem:[%s275 + $0x48] sm:$0xff] %v2436
      %2453 = vst [vmem:[%s275 + $0x50] sm:$0xff] %v2437
      %2454 = vst [vmem:[%s275 + $0x58] sm:$0xff] %v2438
      %2455 = vst [vmem:[%s275 + $0x60] sm:$0xff] %v2439
      %2456 = vst [vmem:[%s275 + $0x68] sm:$0xff] %v2440
      %2457 = vst [vmem:[%s275 + $0x70] sm:$0xff] %v2441
      %2458 = vst [vmem:[%s275 + $0x78] sm:$0xff] %v2442
      %v2459 = vadd.f32 %v2427, %v2428
      %v2460 = vadd.f32 %v2459, %v2429
      %v2461 = vadd.f32 %v2460, %v2430
      %v2462 = vadd.f32 %v2461, %v2431
      %v2463 = vadd.f32 %v2462, %v2432
      %v2464 = vadd.f32 %v2463, %v2433
      %v2465 = vadd.f32 %v2464, %v2434
      %v2466 = vadd.f32 %v2465, %v2435
      %v2467 = vadd.f32 %v2466, %v2436
      %v2468 = vadd.f32 %v2467, %v2437
      %v2469 = vadd.f32 %v2468, %v2438
      %v2470 = vadd.f32 %v2469, %v2439
      %v2471 = vadd.f32 %v2470, %v2440
      %v2472 = vadd.f32 %v2471, %v2441
      %v2473 = vadd.f32 %v2472, %v2442
      %v2474 = vrot.slane %v2473, 4
      %v2475 = vadd.f32 %v2473, %v2474
      %v2476 = vrot.slane %v2475, 2
      %v2477 = vadd.f32 %v2475, %v2476
      %v2478 = vrot.slane %v2477, 1
      %v2479 = vadd.f32 %v2477, %v2478
      %v2480 = vmul.f32 %v2427, %v2427
      %v2481 = vmul.f32 %v2428, %v2428
      %v2482 = vmul.f32 %v2429, %v2429
      %v2483 = vmul.f32 %v2430, %v2430
      %v2484 = vmul.f32 %v2431, %v2431
      %v2485 = vmul.f32 %v2432, %v2432
      %v2486 = vmul.f32 %v2433, %v2433
      %v2487 = vmul.f32 %v2434, %v2434
      %v2488 = vmul.f32 %v2435, %v2435
      %v2489 = vmul.f32 %v2436, %v2436
      %v2490 = vmul.f32 %v2437, %v2437
      %v2491 = vmul.f32 %v2438, %v2438
      %v2492 = vmul.f32 %v2439, %v2439
      %v2493 = vmul.f32 %v2440, %v2440
      %v2494 = vmul.f32 %v2441, %v2441
      %v2495 = vmul.f32 %v2442, %v2442
      %v2496 = vadd.f32 %v2480, %v2481
      %v2497 = vadd.f32 %v2496, %v2482
      %v2498 = vadd.f32 %v2497, %v2483
      %v2499 = vadd.f32 %v2498, %v2484
      %v2500 = vadd.f32 %v2499, %v2485
      %v2501 = vadd.f32 %v2500, %v2486
      %v2502 = vadd.f32 %v2501, %v2487
      %v2503 = vadd.f32 %v2502, %v2488
      %v2504 = vadd.f32 %v2503, %v2489
      %v2505 = vadd.f32 %v2504, %v2490
      %v2506 = vadd.f32 %v2505, %v2491
      %v2507 = vadd.f32 %v2506, %v2492
      %v2508 = vadd.f32 %v2507, %v2493
      %v2509 = vadd.f32 %v2508, %v2494
      %v2510 = vadd.f32 %v2509, %v2495
      %v2511 = vrot.slane %v2510, 4
      %v2512 = vadd.f32 %v2510, %v2511
      %v2513 = vrot.slane %v2512, 2
      %v2514 = vadd.f32 %v2512, %v2513
      %v2515 = vrot.slane %v2514, 1
      %v2516 = vadd.f32 %v2514, %v2515
      %v2517 = vsel %vm677, %v2479, %v2516
      %2518 = vst [vmem:[%s284] sm:$0x3] %v2517
      %s2519 = smul.u32 8, %s22
      %p2520 = scmp.lt.s32.totalorder %s21, 1
      %s2521 = scalar_select %p2520, %s21, 1
      %p2522 = scmp.lt.s32.totalorder %s2519, 15
      %s2523 = scalar_select %p2522, %s2519, 15
      %s2524 = smul.addr %s2523, 2
      %s2525 = smul.addr %s2521, 32
      %s2526 = sadd.s32 %s2524, %s2525
      %s2527 = smul.addr %s2526, 8
      %s2528 = scalar_lea.vmem %s4, %s2527
      %p2529 = scmp.lt.s32.totalorder %s21, 1
      %s2530 = scalar_select %p2529, %s21, 1
      %p2531 = scmp.lt.s32.totalorder %s22, 1
      %s2532 = scalar_select %p2531, %s22, 1
      %s2533 = smul.addr %s2530, 2
      %s2534 = sadd.s32 %s2532, %s2533
      %s2535 = smul.addr %s2534, 2
      %s2536 = scalar_lea.vmem %s5, %s2535
      // Predicated region
      $region45: #{residual_block.4} parent=35 // pred_check
        %p2537 = pneg %p140
      $region46: #{residual_block.4} parent=35 // pred_check_branch
        %2539 = sbr.rel (%p2537) target = $region48
      $region47: #{residual_block.4} parent=35 // pred_region
        %s2540 = smul.u32 8, %s22
      $region48: #{residual_block.4} parent=35 // pred_fallthru
        _
      // Predicated region
      $region49: #{residual_block.4} parent=35 // pred_check
        %p2541 = pneg %p168
      $region50: #{residual_block.4} parent=35 // pred_check_branch
        %2543 = sbr.rel (%p2541) target = $region52
      $region51: #{residual_block.4} parent=35 // pred_region
        _
      $region52: #{residual_block.4} parent=35 // pred_fallthru
        _
    $region36: #{residual_block.4} parent=5 // pred_fallthru
      _
    %p2544 = scmp.le.s32.totalorder 2, %s12
    // Predicated region
    $region53: #{residual_block.4} parent=5 // pred_check
      %p2545 = pneg %p2544
    $region54: #{residual_block.4} parent=5 // pred_check_branch
      %2547 = sbr.rel (%p2545) target = $region56
    $region55: #{residual_block.4} parent=5 // pred_region
      %s2548 = ssub.s32 %s12, 2
      // Predicated region
      $region57: #{residual_block.4} parent=55 // pred_check
        %p2549 = pneg %p146
      $region58: #{residual_block.4} parent=55 // pred_check_branch
        %2551 = sbr.rel (%p2549) target = $region60
      $region59: #{residual_block.4} parent=55 // pred_region
        %s2552 = smul.u32 8, %s24
        %p2553 = scmp.lt.s32.totalorder %s23, 1
        %s2554 = scalar_select %p2553, %s23, 1
        %p2555 = scmp.lt.s32.totalorder %s2552, 15
        %s2556 = scalar_select %p2555, %s2552, 15
        %s2557 = smul.addr %s2556, 2
        %s2558 = smul.addr %s2554, 32
        %s2559 = sadd.s32 %s2557, %s2558
        %s2560 = smul.addr %s2559, 8
        %s2561 = scalar_lea.vmem %s4, %s2560
      $region60: #{residual_block.4} parent=55 // pred_fallthru
        _
      // Predicated region
      $region61: #{residual_block.4} parent=55 // pred_check
        %p2562 = pneg %p174
      $region62: #{residual_block.4} parent=55 // pred_check_branch
        %2564 = sbr.rel (%p2562) target = $region64
      $region63: #{residual_block.4} parent=55 // pred_region
        %p2565 = scmp.lt.s32.totalorder %s23, 1
        %s2566 = scalar_select %p2565, %s23, 1
        %p2567 = scmp.lt.s32.totalorder %s24, 1
        %s2568 = scalar_select %p2567, %s24, 1
        %s2569 = smul.addr %s2566, 2
        %s2570 = sadd.s32 %s2568, %s2569
        %s2571 = smul.addr %s2570, 2
        %s2572 = scalar_lea.vmem %s5, %s2571
      $region64: #{residual_block.4} parent=55 // pred_fallthru
        _
    $region56: #{residual_block.4} parent=5 // pred_fallthru
      _
  $region6: #{residual_block.4} parent=0 // loop_footer
    %s16 = sadd.s32 1, %s12
  $region7: #{residual_block.4} parent=0 // loop_footer_branch
    %11 = sbr.rel target = $region3
  $region8: #{residual_block.4} parent=0 // loop_exit
    _

</llo_original>
